<compile_context>
chip_gen: v5e
topology: v5e:2x2
jax: 0.10.0
libtpu: 0.0.40
codegen_flags: <defaults>
</compile_context>

<pallas_src>
import functools

import jax
import jax.numpy as jnp
from jax import lax
from jax.experimental import pallas as pl
from jax.experimental.pallas import tpu as pltpu


# ---------------------------------------------------------------------------
# tile pickers
# ---------------------------------------------------------------------------
def _pick_pass1_row_tile(H, W, Cin, Cout, budget_bytes=8 * 1024 * 1024):
    """Largest even row tile (output rows) that divides 2*H and fits the VMEM budget."""
    Ho = 2 * H
    if Ho <= 2:
        return Ho
    cap = min(Ho // 2, 64)          # keep >=2 tiles (exercises halo), 64 rows amortizes overhead
    best = 2
    th = 2
    while th <= cap:
        if Ho % th == 0:
            per_step = (2 * th * 2 * W * Cout * 4        # double-buffered y tile (f32)
                        + (th + 2) * (W + 2) * Cin * 2   # xpad scratch (bf16)
                        + 2 * th * W * Cout * 4          # even/odd accumulators (f32)
                        + 2 * H * W * Cin * 2)           # resident input image (bf16, 2 bufs)
            if per_step <= budget_bytes:
                best = th
        th += 2
    return best


def _pick_pass2_row_tile(num_rows):
    """Largest multiple-of-8 divisor of num_rows (<=1024), else the full extent."""
    best = num_rows
    for tr in range(8, min(num_rows, 1024) + 1, 8):
        if num_rows % tr == 0:
            best = tr
    return best


# ---------------------------------------------------------------------------
# Pass 1: in-kernel nearest x2 upsample + 3x3 conv + bias, with BN partial stats
# ---------------------------------------------------------------------------
def _upconv_stats_kernel(x_ref, w_ref, b_ref, y_ref, st_ref, xpad_ref, *, H, W, TH):
    """One (batch, row-tile) grid step.

    x_ref   : (H, W, Cin)        bf16  original-resolution image (this batch element)
    w_ref   : (3, 4, Cin, Cout)  bf16  3x3 weights with the x2 column upsample folded in
    b_ref   : (1, Cout)          f32   conv bias
    y_ref   : (TH, 2, W, Cout)   f32   conv+bias tile, output columns split by parity
    st_ref  : (2, Cout)          f32   per-tile [sum, sum_of_squares] for BatchNorm
    xpad_ref: (TH+2, W+2, Cin)   bf16  scratch: x2 row-upsampled slab with zero halo
    """
    THH = TH // 2
    Cin = x_ref.shape[-1]
    Cout = y_ref.shape[-1]

    t = pl.program_id(1)
    h0 = pl.multiple_of(t * THH, THH)            # first original input row of this tile

    # ---- nearest x2 ROW upsample, in-kernel (no upsampled tensor in HBM) ----
    body = x_ref[pl.ds(h0, THH), :, :]                                   # (THH, W, Cin)
    body_up = jnp.broadcast_to(body[:, None, :, :], (THH, 2, W, Cin))
    body_up = body_up.reshape(TH, W, Cin)                                # (TH, W, Cin)

    top = x_ref[pl.ds(jnp.maximum(h0 - 1, 0), 1), :, :]                  # (1, W, Cin)
    top = jnp.where(h0 > 0, top, jnp.zeros_like(top))
    bot = x_ref[pl.ds(jnp.minimum(h0 + THH, H - 1), 1), :, :]            # (1, W, Cin)
    bot = jnp.where(h0 + THH < H, bot, jnp.zeros_like(bot))

    # assemble the row-upsampled slab with a 1-row / 1-col zero halo in VMEM scratch
    xpad_ref[...] = jnp.zeros(xpad_ref.shape, xpad_ref.dtype)
    xpad_ref[1:TH + 1, 1:W + 1, :] = body_up
    xpad_ref[0:1, 1:W + 1, :] = top
    xpad_ref[TH + 1:TH + 2, 1:W + 1, :] = bot
    xp = xpad_ref[...]                                                   # (TH+2, W+2, Cin)

    # ---- 3x3 conv with the x2 COLUMN upsample folded into the weights ----
    #   even output col 2q  : w[kh,0] @ origcol(q-1)  +  (w[kh,1]+w[kh,2]) @ origcol(q)
    #   odd  output col 2q+1: (w[kh,0]+w[kh,1]) @ origcol(q)  +  w[kh,2] @ origcol(q+1)
    w = w_ref[...]
    dn = (((2,), (0,)), ((), ()))
    acc_e = jnp.zeros((TH, W, Cout), jnp.float32)
    acc_o = jnp.zeros((TH, W, Cout), jnp.float32)
    for kh in range(3):                                                  # statically unrolled
        left = xp[kh:kh + TH, 0:W, :]         # original col q-1 (zero at q=0)
        mid = xp[kh:kh + TH, 1:W + 1, :]      # original col q
        right = xp[kh:kh + TH, 2:W + 2, :]    # original col q+1 (zero at q=W-1)
        acc_e += lax.dot_general(left, w[kh, 0], dn, preferred_element_type=jnp.float32)
        acc_e += lax.dot_general(mid, w[kh, 1], dn, preferred_element_type=jnp.float32)
        acc_o += lax.dot_general(mid, w[kh, 2], dn, preferred_element_type=jnp.float32)
        acc_o += lax.dot_general(right, w[kh, 3], dn, preferred_element_type=jnp.float32)

    bvec = b_ref[...].reshape(1, 1, Cout)
    acc_e = acc_e + bvec
    acc_o = acc_o + bvec

    y_ref[:, 0, :, :] = acc_e
    y_ref[:, 1, :, :] = acc_o

    # one-pass BN partial stats (var = E[x^2] - mean^2 later, so no second sweep over acc)
    s = jnp.sum(acc_e, axis=(0, 1), keepdims=True) + jnp.sum(acc_o, axis=(0, 1), keepdims=True)
    ss = (jnp.sum(acc_e * acc_e, axis=(0, 1), keepdims=True)
          + jnp.sum(acc_o * acc_o, axis=(0, 1), keepdims=True))
    st_ref[0:1, :] = s.reshape(1, Cout)
    st_ref[1:2, :] = ss.reshape(1, Cout)


# ---------------------------------------------------------------------------
# Pass 2: lane-dense fused BatchNorm (scale/shift) + ReLU
# ---------------------------------------------------------------------------
def _bn_relu_kernel(y_ref, scale_ref, shift_ref, o_ref):
    o_ref[...] = jnp.maximum(y_ref[...] * scale_ref[...] + shift_ref[...], 0.0).astype(o_ref.dtype)


# ---------------------------------------------------------------------------
# Wrapper
# ---------------------------------------------------------------------------
def up_conv_batch_relu(x_nchw, weight, bias, gamma, beta, eps=1e-5):
    """x_nchw: (N, Cin, H, W), weight: (3, 3, Cin, Cout) HWIO. Returns (N, Cout, 2H, 2W)."""
    N, Cin, H, W = x_nchw.shape
    Cout = weight.shape[-1]
    Ho, Wo = 2 * H, 2 * W

    # NCHW -> NHWC + bf16 for the MXU (f32 accumulation inside the kernel).
    x = jnp.transpose(x_nchw, (0, 2, 3, 1)).astype(jnp.bfloat16)         # (N, H, W, Cin)

    # Fold the nearest x2 column upsample into the 3x3 taps (4 combos per kh).
    wf = weight.astype(jnp.float32)
    wc = jnp.stack([wf[:, 0], wf[:, 1] + wf[:, 2], wf[:, 0] + wf[:, 1], wf[:, 2]],
                   axis=1).astype(jnp.bfloat16)                          # (3, 4, Cin, Cout)
    b2 = bias.reshape(1, Cout).astype(jnp.float32)

    TH = _pick_pass1_row_tile(H, W, Cin, Cout)
    T = Ho // TH

    kern = functools.partial(_upconv_stats_kernel, H=H, W=W, TH=TH)
    y_split, stats = pl.pallas_call(
        kern,
        out_shape=(jax.ShapeDtypeStruct((N, Ho, 2, W, Cout), jnp.float32),
                   jax.ShapeDtypeStruct((N, T, 2, Cout), jnp.float32)),
        grid_spec=pltpu.PrefetchScalarGridSpec(
            num_scalar_prefetch=0,
            grid=(N, T),
            in_specs=[
                # full original image per batch element; constant across the row-tile axis
                pl.BlockSpec((None, H, W, Cin), lambda n, t: (n, 0, 0, 0)),
                pl.BlockSpec((3, 4, Cin, Cout), lambda n, t: (0, 0, 0, 0)),
                pl.BlockSpec((1, Cout), lambda n, t: (0, 0)),
            ],
            out_specs=[
                pl.BlockSpec((None, TH, 2, W, Cout), lambda n, t: (n, t, 0, 0, 0)),
                pl.BlockSpec((None, None, 2, Cout), lambda n, t: (n, t, 0, 0)),
            ],
            scratch_shapes=[pltpu.VMEM((TH + 2, W + 2, Cin), jnp.bfloat16)],
        ),
        compiler_params=pltpu.CompilerParams(
            dimension_semantics=("parallel", "parallel"),
            vmem_limit_bytes=48 * 1024 * 1024),
    )(x, wc, b2)

    # tiny JAX reduction over the per-tile partials -> training-mode (biased) batch stats
    cnt = jnp.float32(N * Ho * Wo)
    ssum = jnp.sum(stats[:, :, 0, :], axis=(0, 1))
    ssq = jnp.sum(stats[:, :, 1, :], axis=(0, 1))
    mean = ssum / cnt
    var = jnp.maximum(ssq / cnt - mean * mean, 0.0)
    inv = lax.rsqrt(var + eps)
    scale = gamma.astype(jnp.float32) * inv
    shift = beta.astype(jnp.float32) - mean * scale

    # Pass 2: flatten to (rows, 2*W*Cout) -> lane-dense (>=128) loads/stores.
    L = 2 * W * Cout
    R = N * Ho
    y2 = y_split.reshape(R, L)
    scale_row = jnp.tile(scale, 2 * W).reshape(1, L)
    shift_row = jnp.tile(shift, 2 * W).reshape(1, L)

    TR = _pick_pass2_row_tile(R)
    out2 = pl.pallas_call(
        _bn_relu_kernel,
        out_shape=jax.ShapeDtypeStruct((R, L), x_nchw.dtype),
        grid=(R // TR,),
        in_specs=[
            pl.BlockSpec((TR, L), lambda r: (r, 0)),
            pl.BlockSpec((1, L), lambda r: (0, 0)),
            pl.BlockSpec((1, L), lambda r: (0, 0)),
        ],
        out_specs=pl.BlockSpec((TR, L), lambda r: (r, 0)),
        compiler_params=pltpu.CompilerParams(
            dimension_semantics=("parallel",),
            vmem_limit_bytes=48 * 1024 * 1024),
    )(y2, scale_row, shift_row)

    # de-interleave the even/odd column split and go back to NCHW (single transpose)
    out = out2.reshape(N, Ho, 2, W, Cout)
    out = jnp.transpose(out, (0, 4, 1, 3, 2)).reshape(N, Cout, Ho, Wo)
    return out


# ---------------------------------------------------------------------------
# Pure-JAX f32 reference (for validation)
# ---------------------------------------------------------------------------
def reference(x_nchw, weight, bias, gamma, beta, eps=1e-5):
    x = jnp.transpose(x_nchw, (0, 2, 3, 1))
    x = jnp.repeat(jnp.repeat(x, 2, axis=1), 2, axis=2)
    y = lax.conv_general_dilated(
        x, weight, window_strides=(1, 1), padding=((1, 1), (1, 1)),
        dimension_numbers=("NHWC", "HWIO", "NHWC"))
    y = y + bias.reshape(1, 1, 1, -1)
    mean = jnp.mean(y, axis=(0, 1, 2), keepdims=True)
    var = jnp.mean((y - mean) ** 2, axis=(0, 1, 2), keepdims=True)
    y = (y - mean) * lax.rsqrt(var + eps) * gamma.reshape(1, 1, 1, -1) \
        + beta.reshape(1, 1, 1, -1)
    y = jnp.maximum(y, 0.0)
    return jnp.transpose(y, (0, 3, 1, 2))


if __name__ == "__main__":
    key = jax.random.PRNGKey(0)
    k_x, k_w, k_b, k_g, k_be = jax.random.split(key, 5)

    N, Cin, Cout, H, W = 2, 4, 8, 16, 16

    x = jax.random.normal(k_x, (N, Cin, H, W), dtype=jnp.float32)
    weight = 0.1 * jax.random.normal(k_w, (3, 3, Cin, Cout), dtype=jnp.float32)   # HWIO
    bias = 0.1 * jax.random.normal(k_b, (Cout,), dtype=jnp.float32)
    gamma = 1.0 + 0.1 * jax.random.normal(k_g, (Cout,), dtype=jnp.float32)
    beta = 0.1 * jax.random.normal(k_be, (Cout,), dtype=jnp.float32)

    fn = jax.jit(up_conv_batch_relu)
    out = jax.block_until_ready(fn(x, weight, bias, gamma, beta))

    ref = reference(x, weight, bias, gamma, beta)
    assert out.shape == (N, Cout, 2 * H, 2 * W)
    # bf16 MXU inputs (f32 accumulation) vs f32 reference: tolerance covers bf16 rounding
    # while still catching indexing / weight-folding bugs (which would be O(1) errors).
    err = float(jnp.max(jnp.abs(out - ref)))
    assert jnp.allclose(out, ref, rtol=3e-2, atol=3e-2), err

    print("KERNEL_OK")
</pallas_src>

<mosaic_0001>
module attributes {stable_mosaic.version = 11 : i64} {
  func.func @_upconv_stats_kernel(%arg0: i32, %arg1: i32, %arg2: memref<1x16x16x4xbf16, #tpu.memory_space<vmem>>, %arg3: memref<3x4x4x8xbf16, #tpu.memory_space<vmem>>, %arg4: memref<1x8xf32, #tpu.memory_space<vmem>>, %arg5: memref<1x16x2x16x8xf32, #tpu.memory_space<vmem>>, %arg6: memref<1x1x2x8xf32, #tpu.memory_space<vmem>>, %arg7: memref<18x18x4xbf16, #tpu.memory_space<vmem>>) attributes {dimension_semantics = [#tpu.dimension_semantics<parallel>, #tpu.dimension_semantics<parallel>], iteration_bounds = array<i64: 2, 2>, scalar_prefetch = 0 : i64, scratch_operands = 1 : i64, tpu.core_type = #tpu.core_type<tc>, window_params = [{transform_indices = @transform_0, window_bounds = array<i64: 1, 16, 16, 4>}, {pipeline_mode = #tpu.pipeline_mode<synchronous>, transform_indices = @transform_1, window_bounds = array<i64: 3, 4, 4, 8>}, {pipeline_mode = #tpu.pipeline_mode<synchronous>, transform_indices = @transform_2, window_bounds = array<i64: 1, 8>}, {transform_indices = @transform_3, window_bounds = array<i64: 1, 16, 2, 16, 8>}, {transform_indices = @transform_4, window_bounds = array<i64: 1, 1, 2, 8>}]} {
    %c8_i32 = arith.constant 8 : i32
    %0 = arith.muli %arg1, %c8_i32 : i32
    %1 = tpu.assume_multiple %0, 8 : i32
    %c0 = arith.constant 0 : index
    %2 = arith.index_cast %1 : i32 to index
    %c0_0 = arith.constant 0 : index
    %c0_1 = arith.constant 0 : index
    %3 = vector.load %arg2[%c0, %2, %c0_0, %c0_1] : memref<1x16x16x4xbf16, #tpu.memory_space<vmem>>, vector<1x8x16x4xbf16>
    %4 = vector.shape_cast %3 : vector<1x8x16x4xbf16> to vector<8x16x4xbf16>
    %5 = vector.shape_cast %4 : vector<8x16x4xbf16> to vector<8x1x16x4xbf16>
    %6 = vector.shape_cast %5 : vector<8x1x16x4xbf16> to vector<8x1x16x4xbf16>
    %7 = vector.broadcast %6 : vector<8x1x16x4xbf16> to vector<8x2x16x4xbf16>
    %8 = vector.shape_cast %7 : vector<8x2x16x4xbf16> to vector<16x16x4xbf16>
    %c1_i32 = arith.constant 1 : i32
    %9 = arith.subi %1, %c1_i32 : i32
    %c0_i32 = arith.constant 0 : i32
    %10 = arith.maxsi %9, %c0_i32 : i32
    %c0_2 = arith.constant 0 : index
    %11 = arith.index_cast %10 : i32 to index
    %c0_3 = arith.constant 0 : index
    %c0_4 = arith.constant 0 : index
    %12 = vector.load %arg2[%c0_2, %11, %c0_3, %c0_4] : memref<1x16x16x4xbf16, #tpu.memory_space<vmem>>, vector<1x1x16x4xbf16>
    %13 = vector.shape_cast %12 : vector<1x1x16x4xbf16> to vector<1x16x4xbf16>
    %c0_i32_5 = arith.constant 0 : i32
    %14 = arith.cmpi sgt, %1, %c0_i32_5 : i32
    %cst = arith.constant 0.000000e+00 : bf16
    %15 = vector.broadcast %cst : bf16 to vector<1x16x4xbf16>
    %16 = arith.select %14, %13, %15 : vector<1x16x4xbf16>
    %c8_i32_6 = arith.constant 8 : i32
    %17 = arith.addi %1, %c8_i32_6 : i32
    %c15_i32 = arith.constant 15 : i32
    %18 = arith.minsi %17, %c15_i32 : i32
    %c0_7 = arith.constant 0 : index
    %19 = arith.index_cast %18 : i32 to index
    %c0_8 = arith.constant 0 : index
    %c0_9 = arith.constant 0 : index
    %20 = vector.load %arg2[%c0_7, %19, %c0_8, %c0_9] : memref<1x16x16x4xbf16, #tpu.memory_space<vmem>>, vector<1x1x16x4xbf16>
    %21 = vector.shape_cast %20 : vector<1x1x16x4xbf16> to vector<1x16x4xbf16>
    %c8_i32_10 = arith.constant 8 : i32
    %22 = arith.addi %1, %c8_i32_10 : i32
    %c16_i32 = arith.constant 16 : i32
    %23 = arith.cmpi slt, %22, %c16_i32 : i32
    %cst_11 = arith.constant 0.000000e+00 : bf16
    %24 = vector.broadcast %cst_11 : bf16 to vector<1x16x4xbf16>
    %25 = arith.select %23, %21, %24 : vector<1x16x4xbf16>
    %cst_12 = arith.constant 0.000000e+00 : bf16
    %26 = vector.broadcast %cst_12 : bf16 to vector<18x18x4xbf16>
    %c0_13 = arith.constant 0 : index
    %c0_14 = arith.constant 0 : index
    %c0_15 = arith.constant 0 : index
    %27 = vector.load %arg7[%c0_13, %c0_14, %c0_15] : memref<18x18x4xbf16, #tpu.memory_space<vmem>>, vector<18x18x4xbf16>
    tpu.vector_store %arg7[%c0_13, %c0_14, %c0_15], %26 {strides = array<i32>} : memref<18x18x4xbf16, #tpu.memory_space<vmem>>, vector<18x18x4xbf16>,
    %c1 = arith.constant 1 : index
    %c1_16 = arith.constant 1 : index
    %c0_17 = arith.constant 0 : index
    %28 = vector.load %arg7[%c1, %c1_16, %c0_17] : memref<18x18x4xbf16, #tpu.memory_space<vmem>>, vector<16x16x4xbf16>
    tpu.vector_store %arg7[%c1, %c1_16, %c0_17], %8 {strides = array<i32>} : memref<18x18x4xbf16, #tpu.memory_space<vmem>>, vector<16x16x4xbf16>,
    %c0_18 = arith.constant 0 : index
    %c1_19 = arith.constant 1 : index
    %c0_20 = arith.constant 0 : index
    %29 = vector.load %arg7[%c0_18, %c1_19, %c0_20] : memref<18x18x4xbf16, #tpu.memory_space<vmem>>, vector<1x16x4xbf16>
    tpu.vector_store %arg7[%c0_18, %c1_19, %c0_20], %16 {strides = array<i32>} : memref<18x18x4xbf16, #tpu.memory_space<vmem>>, vector<1x16x4xbf16>,
    %c17 = arith.constant 17 : index
    %c1_21 = arith.constant 1 : index
    %c0_22 = arith.constant 0 : index
    %30 = vector.load %arg7[%c17, %c1_21, %c0_22] : memref<18x18x4xbf16, #tpu.memory_space<vmem>>, vector<1x16x4xbf16>
    tpu.vector_store %arg7[%c17, %c1_21, %c0_22], %25 {strides = array<i32>} : memref<18x18x4xbf16, #tpu.memory_space<vmem>>, vector<1x16x4xbf16>,
    %c0_23 = arith.constant 0 : index
    %c0_24 = arith.constant 0 : index
    %c0_25 = arith.constant 0 : index
    %31 = vector.load %arg7[%c0_23, %c0_24, %c0_25] : memref<18x18x4xbf16, #tpu.memory_space<vmem>>, vector<18x18x4xbf16>
    %c0_26 = arith.constant 0 : index
    %c0_27 = arith.constant 0 : index
    %c0_28 = arith.constant 0 : index
    %c0_29 = arith.constant 0 : index
    %32 = vector.load %arg3[%c0_26, %c0_27, %c0_28, %c0_29] : memref<3x4x4x8xbf16, #tpu.memory_space<vmem>>, vector<3x4x4x8xbf16>
    %cst_30 = arith.constant 0.000000e+00 : f32
    %33 = vector.broadcast %cst_30 : f32 to vector<16x16x8xf32>
    %cst_31 = arith.constant 0.000000e+00 : f32
    %34 = vector.broadcast %cst_31 : f32 to vector<16x16x8xf32>
    %35 = vector.extract_strided_slice %31 {offsets = [0, 0, 0], sizes = [16, 16, 4], strides = [1, 1, 1]} : vector<18x18x4xbf16> to vector<16x16x4xbf16>
    %36 = vector.extract_strided_slice %31 {offsets = [0, 1, 0], sizes = [16, 16, 4], strides = [1, 1, 1]} : vector<18x18x4xbf16> to vector<16x16x4xbf16>
    %37 = vector.extract_strided_slice %31 {offsets = [0, 2, 0], sizes = [16, 16, 4], strides = [1, 1, 1]} : vector<18x18x4xbf16> to vector<16x16x4xbf16>
    %38 = vector.extract_strided_slice %32 {offsets = [0, 0, 0, 0], sizes = [1, 1, 4, 8], strides = [1, 1, 1, 1]} : vector<3x4x4x8xbf16> to vector<1x1x4x8xbf16>
    %39 = vector.shape_cast %38 : vector<1x1x4x8xbf16> to vector<4x8xbf16>
    %cst_32 = arith.constant dense<0.000000e+00> : vector<16x16x8xf32>
    %40 = tpu.matmul %35, %39, %cst_32 {dimension_numbers = #tpu.dot_dimension_numbers<[2], [0], [0, 1], [1], [0, 0, 0, 1, 1, 1], [], []>} : vector<16x16x4xbf16>, vector<4x8xbf16>, vector<16x16x8xf32> -> vector<16x16x8xf32>
    %41 = arith.addf %33, %40 : vector<16x16x8xf32>
    %42 = vector.extract_strided_slice %32 {offsets = [0, 1, 0, 0], sizes = [1, 1, 4, 8], strides = [1, 1, 1, 1]} : vector<3x4x4x8xbf16> to vector<1x1x4x8xbf16>
    %43 = vector.shape_cast %42 : vector<1x1x4x8xbf16> to vector<4x8xbf16>
    %cst_33 = arith.constant dense<0.000000e+00> : vector<16x16x8xf32>
    %44 = tpu.matmul %36, %43, %cst_33 {dimension_numbers = #tpu.dot_dimension_numbers<[2], [0], [0, 1], [1], [0, 0, 0, 1, 1, 1], [], []>} : vector<16x16x4xbf16>, vector<4x8xbf16>, vector<16x16x8xf32> -> vector<16x16x8xf32>
    %45 = arith.addf %41, %44 : vector<16x16x8xf32>
    %46 = vector.extract_strided_slice %32 {offsets = [0, 2, 0, 0], sizes = [1, 1, 4, 8], strides = [1, 1, 1, 1]} : vector<3x4x4x8xbf16> to vector<1x1x4x8xbf16>
    %47 = vector.shape_cast %46 : vector<1x1x4x8xbf16> to vector<4x8xbf16>
    %cst_34 = arith.constant dense<0.000000e+00> : vector<16x16x8xf32>
    %48 = tpu.matmul %36, %47, %cst_34 {dimension_numbers = #tpu.dot_dimension_numbers<[2], [0], [0, 1], [1], [0, 0, 0, 1, 1, 1], [], []>} : vector<16x16x4xbf16>, vector<4x8xbf16>, vector<16x16x8xf32> -> vector<16x16x8xf32>
    %49 = arith.addf %34, %48 : vector<16x16x8xf32>
    %50 = vector.extract_strided_slice %32 {offsets = [0, 3, 0, 0], sizes = [1, 1, 4, 8], strides = [1, 1, 1, 1]} : vector<3x4x4x8xbf16> to vector<1x1x4x8xbf16>
    %51 = vector.shape_cast %50 : vector<1x1x4x8xbf16> to vector<4x8xbf16>
    %cst_35 = arith.constant dense<0.000000e+00> : vector<16x16x8xf32>
    %52 = tpu.matmul %37, %51, %cst_35 {dimension_numbers = #tpu.dot_dimension_numbers<[2], [0], [0, 1], [1], [0, 0, 0, 1, 1, 1], [], []>} : vector<16x16x4xbf16>, vector<4x8xbf16>, vector<16x16x8xf32> -> vector<16x16x8xf32>
    %53 = arith.addf %49, %52 : vector<16x16x8xf32>
    %54 = vector.extract_strided_slice %31 {offsets = [1, 0, 0], sizes = [16, 16, 4], strides = [1, 1, 1]} : vector<18x18x4xbf16> to vector<16x16x4xbf16>
    %55 = vector.extract_strided_slice %31 {offsets = [1, 1, 0], sizes = [16, 16, 4], strides = [1, 1, 1]} : vector<18x18x4xbf16> to vector<16x16x4xbf16>
    %56 = vector.extract_strided_slice %31 {offsets = [1, 2, 0], sizes = [16, 16, 4], strides = [1, 1, 1]} : vector<18x18x4xbf16> to vector<16x16x4xbf16>
    %57 = vector.extract_strided_slice %32 {offsets = [1, 0, 0, 0], sizes = [1, 1, 4, 8], strides = [1, 1, 1, 1]} : vector<3x4x4x8xbf16> to vector<1x1x4x8xbf16>
    %58 = vector.shape_cast %57 : vector<1x1x4x8xbf16> to vector<4x8xbf16>
    %cst_36 = arith.constant dense<0.000000e+00> : vector<16x16x8xf32>
    %59 = tpu.matmul %54, %58, %cst_36 {dimension_numbers = #tpu.dot_dimension_numbers<[2], [0], [0, 1], [1], [0, 0, 0, 1, 1, 1], [], []>} : vector<16x16x4xbf16>, vector<4x8xbf16>, vector<16x16x8xf32> -> vector<16x16x8xf32>
    %60 = arith.addf %45, %59 : vector<16x16x8xf32>
    %61 = vector.extract_strided_slice %32 {offsets = [1, 1, 0, 0], sizes = [1, 1, 4, 8], strides = [1, 1, 1, 1]} : vector<3x4x4x8xbf16> to vector<1x1x4x8xbf16>
    %62 = vector.shape_cast %61 : vector<1x1x4x8xbf16> to vector<4x8xbf16>
    %cst_37 = arith.constant dense<0.000000e+00> : vector<16x16x8xf32>
    %63 = tpu.matmul %55, %62, %cst_37 {dimension_numbers = #tpu.dot_dimension_numbers<[2], [0], [0, 1], [1], [0, 0, 0, 1, 1, 1], [], []>} : vector<16x16x4xbf16>, vector<4x8xbf16>, vector<16x16x8xf32> -> vector<16x16x8xf32>
    %64 = arith.addf %60, %63 : vector<16x16x8xf32>
    %65 = vector.extract_strided_slice %32 {offsets = [1, 2, 0, 0], sizes = [1, 1, 4, 8], strides = [1, 1, 1, 1]} : vector<3x4x4x8xbf16> to vector<1x1x4x8xbf16>
    %66 = vector.shape_cast %65 : vector<1x1x4x8xbf16> to vector<4x8xbf16>
    %cst_38 = arith.constant dense<0.000000e+00> : vector<16x16x8xf32>
    %67 = tpu.matmul %55, %66, %cst_38 {dimension_numbers = #tpu.dot_dimension_numbers<[2], [0], [0, 1], [1], [0, 0, 0, 1, 1, 1], [], []>} : vector<16x16x4xbf16>, vector<4x8xbf16>, vector<16x16x8xf32> -> vector<16x16x8xf32>
    %68 = arith.addf %53, %67 : vector<16x16x8xf32>
    %69 = vector.extract_strided_slice %32 {offsets = [1, 3, 0, 0], sizes = [1, 1, 4, 8], strides = [1, 1, 1, 1]} : vector<3x4x4x8xbf16> to vector<1x1x4x8xbf16>
    %70 = vector.shape_cast %69 : vector<1x1x4x8xbf16> to vector<4x8xbf16>
    %cst_39 = arith.constant dense<0.000000e+00> : vector<16x16x8xf32>
    %71 = tpu.matmul %56, %70, %cst_39 {dimension_numbers = #tpu.dot_dimension_numbers<[2], [0], [0, 1], [1], [0, 0, 0, 1, 1, 1], [], []>} : vector<16x16x4xbf16>, vector<4x8xbf16>, vector<16x16x8xf32> -> vector<16x16x8xf32>
    %72 = arith.addf %68, %71 : vector<16x16x8xf32>
    %73 = vector.extract_strided_slice %31 {offsets = [2, 0, 0], sizes = [16, 16, 4], strides = [1, 1, 1]} : vector<18x18x4xbf16> to vector<16x16x4xbf16>
    %74 = vector.extract_strided_slice %31 {offsets = [2, 1, 0], sizes = [16, 16, 4], strides = [1, 1, 1]} : vector<18x18x4xbf16> to vector<16x16x4xbf16>
    %75 = vector.extract_strided_slice %31 {offsets = [2, 2, 0], sizes = [16, 16, 4], strides = [1, 1, 1]} : vector<18x18x4xbf16> to vector<16x16x4xbf16>
    %76 = vector.extract_strided_slice %32 {offsets = [2, 0, 0, 0], sizes = [1, 1, 4, 8], strides = [1, 1, 1, 1]} : vector<3x4x4x8xbf16> to vector<1x1x4x8xbf16>
    %77 = vector.shape_cast %76 : vector<1x1x4x8xbf16> to vector<4x8xbf16>
    %cst_40 = arith.constant dense<0.000000e+00> : vector<16x16x8xf32>
    %78 = tpu.matmul %73, %77, %cst_40 {dimension_numbers = #tpu.dot_dimension_numbers<[2], [0], [0, 1], [1], [0, 0, 0, 1, 1, 1], [], []>} : vector<16x16x4xbf16>, vector<4x8xbf16>, vector<16x16x8xf32> -> vector<16x16x8xf32>
    %79 = arith.addf %64, %78 : vector<16x16x8xf32>
    %80 = vector.extract_strided_slice %32 {offsets = [2, 1, 0, 0], sizes = [1, 1, 4, 8], strides = [1, 1, 1, 1]} : vector<3x4x4x8xbf16> to vector<1x1x4x8xbf16>
    %81 = vector.shape_cast %80 : vector<1x1x4x8xbf16> to vector<4x8xbf16>
    %cst_41 = arith.constant dense<0.000000e+00> : vector<16x16x8xf32>
    %82 = tpu.matmul %74, %81, %cst_41 {dimension_numbers = #tpu.dot_dimension_numbers<[2], [0], [0, 1], [1], [0, 0, 0, 1, 1, 1], [], []>} : vector<16x16x4xbf16>, vector<4x8xbf16>, vector<16x16x8xf32> -> vector<16x16x8xf32>
    %83 = arith.addf %79, %82 : vector<16x16x8xf32>
    %84 = vector.extract_strided_slice %32 {offsets = [2, 2, 0, 0], sizes = [1, 1, 4, 8], strides = [1, 1, 1, 1]} : vector<3x4x4x8xbf16> to vector<1x1x4x8xbf16>
    %85 = vector.shape_cast %84 : vector<1x1x4x8xbf16> to vector<4x8xbf16>
    %cst_42 = arith.constant dense<0.000000e+00> : vector<16x16x8xf32>
    %86 = tpu.matmul %74, %85, %cst_42 {dimension_numbers = #tpu.dot_dimension_numbers<[2], [0], [0, 1], [1], [0, 0, 0, 1, 1, 1], [], []>} : vector<16x16x4xbf16>, vector<4x8xbf16>, vector<16x16x8xf32> -> vector<16x16x8xf32>
    %87 = arith.addf %72, %86 : vector<16x16x8xf32>
    %88 = vector.extract_strided_slice %32 {offsets = [2, 3, 0, 0], sizes = [1, 1, 4, 8], strides = [1, 1, 1, 1]} : vector<3x4x4x8xbf16> to vector<1x1x4x8xbf16>
    %89 = vector.shape_cast %88 : vector<1x1x4x8xbf16> to vector<4x8xbf16>
    %cst_43 = arith.constant dense<0.000000e+00> : vector<16x16x8xf32>
    %90 = tpu.matmul %75, %89, %cst_43 {dimension_numbers = #tpu.dot_dimension_numbers<[2], [0], [0, 1], [1], [0, 0, 0, 1, 1, 1], [], []>} : vector<16x16x4xbf16>, vector<4x8xbf16>, vector<16x16x8xf32> -> vector<16x16x8xf32>
    %91 = arith.addf %87, %90 : vector<16x16x8xf32>
    %c0_44 = arith.constant 0 : index
    %c0_45 = arith.constant 0 : index
    %92 = vector.load %arg4[%c0_44, %c0_45] : memref<1x8xf32, #tpu.memory_space<vmem>>, vector<1x8xf32>
    %93 = vector.shape_cast %92 : vector<1x8xf32> to vector<1x1x8xf32>
    %94 = vector.broadcast %93 : vector<1x1x8xf32> to vector<16x16x8xf32>
    %95 = arith.addf %83, %94 : vector<16x16x8xf32>
    %96 = vector.broadcast %93 : vector<1x1x8xf32> to vector<16x16x8xf32>
    %97 = arith.addf %91, %96 : vector<16x16x8xf32>
    %c0_46 = arith.constant 0 : index
    %c0_47 = arith.constant 0 : index
    %c0_48 = arith.constant 0 : index
    %c0_49 = arith.constant 0 : index
    %c0_50 = arith.constant 0 : index
    %98 = vector.load %arg5[%c0_46, %c0_47, %c0_48, %c0_49, %c0_50] : memref<1x16x2x16x8xf32, #tpu.memory_space<vmem>>, vector<1x16x1x16x8xf32>
    %99 = vector.shape_cast %98 : vector<1x16x1x16x8xf32> to vector<16x16x8xf32>
    %100 = vector.shape_cast %95 : vector<16x16x8xf32> to vector<1x16x1x16x8xf32>
    tpu.vector_store %arg5[%c0_46, %c0_47, %c0_48, %c0_49, %c0_50], %100 {strides = array<i32>} : memref<1x16x2x16x8xf32, #tpu.memory_space<vmem>>, vector<1x16x1x16x8xf32>,
    %c0_51 = arith.constant 0 : index
    %c0_52 = arith.constant 0 : index
    %c1_53 = arith.constant 1 : index
    %c0_54 = arith.constant 0 : index
    %c0_55 = arith.constant 0 : index
    %101 = vector.load %arg5[%c0_51, %c0_52, %c1_53, %c0_54, %c0_55] : memref<1x16x2x16x8xf32, #tpu.memory_space<vmem>>, vector<1x16x1x16x8xf32>
    %102 = vector.shape_cast %101 : vector<1x16x1x16x8xf32> to vector<16x16x8xf32>
    %103 = vector.shape_cast %97 : vector<16x16x8xf32> to vector<1x16x1x16x8xf32>
    tpu.vector_store %arg5[%c0_51, %c0_52, %c1_53, %c0_54, %c0_55], %103 {strides = array<i32>} : memref<1x16x2x16x8xf32, #tpu.memory_space<vmem>>, vector<1x16x1x16x8xf32>,
    %cst_56 = arith.constant dense<0.000000e+00> : vector<8xf32>
    %104 = vector.multi_reduction <add>, %95, %cst_56 [0, 1] : vector<16x16x8xf32> to vector<8xf32>
    %105 = vector.shape_cast %104 : vector<8xf32> to vector<1x1x8xf32>
    %cst_57 = arith.constant dense<0.000000e+00> : vector<8xf32>
    %106 = vector.multi_reduction <add>, %97, %cst_57 [0, 1] : vector<16x16x8xf32> to vector<8xf32>
    %107 = vector.shape_cast %106 : vector<8xf32> to vector<1x1x8xf32>
    %108 = arith.addf %105, %107 : vector<1x1x8xf32>
    %109 = arith.mulf %95, %95 : vector<16x16x8xf32>
    %cst_58 = arith.constant dense<0.000000e+00> : vector<8xf32>
    %110 = vector.multi_reduction <add>, %109, %cst_58 [0, 1] : vector<16x16x8xf32> to vector<8xf32>
    %111 = vector.shape_cast %110 : vector<8xf32> to vector<1x1x8xf32>
    %112 = arith.mulf %97, %97 : vector<16x16x8xf32>
    %cst_59 = arith.constant dense<0.000000e+00> : vector<8xf32>
    %113 = vector.multi_reduction <add>, %112, %cst_59 [0, 1] : vector<16x16x8xf32> to vector<8xf32>
    %114 = vector.shape_cast %113 : vector<8xf32> to vector<1x1x8xf32>
    %115 = arith.addf %111, %114 : vector<1x1x8xf32>
    %116 = vector.shape_cast %108 : vector<1x1x8xf32> to vector<1x8xf32>
    %c0_60 = arith.constant 0 : index
    %c0_61 = arith.constant 0 : index
    %c0_62 = arith.constant 0 : index
    %c0_63 = arith.constant 0 : index
    %117 = vector.load %arg6[%c0_60, %c0_61, %c0_62, %c0_63] : memref<1x1x2x8xf32, #tpu.memory_space<vmem>>, vector<1x1x1x8xf32>
    %118 = vector.shape_cast %117 : vector<1x1x1x8xf32> to vector<1x8xf32>
    %119 = vector.shape_cast %116 : vector<1x8xf32> to vector<1x1x1x8xf32>
    tpu.vector_store %arg6[%c0_60, %c0_61, %c0_62, %c0_63], %119 {strides = array<i32>} : memref<1x1x2x8xf32, #tpu.memory_space<vmem>>, vector<1x1x1x8xf32>,
    %120 = vector.shape_cast %115 : vector<1x1x8xf32> to vector<1x8xf32>
    %c0_64 = arith.constant 0 : index
    %c0_65 = arith.constant 0 : index
    %c1_66 = arith.constant 1 : index
    %c0_67 = arith.constant 0 : index
    %121 = vector.load %arg6[%c0_64, %c0_65, %c1_66, %c0_67] : memref<1x1x2x8xf32, #tpu.memory_space<vmem>>, vector<1x1x1x8xf32>
    %122 = vector.shape_cast %121 : vector<1x1x1x8xf32> to vector<1x8xf32>
    %123 = vector.shape_cast %120 : vector<1x8xf32> to vector<1x1x1x8xf32>
    tpu.vector_store %arg6[%c0_64, %c0_65, %c1_66, %c0_67], %123 {strides = array<i32>} : memref<1x1x2x8xf32, #tpu.memory_space<vmem>>, vector<1x1x1x8xf32>,
    return
  }
  func.func @transform_0(%arg0: i32, %arg1: i32) -> (i32, i32, i32, i32) {
    %c0_i32 = arith.constant 0 : i32
    %c0_i32_0 = arith.constant 0 : i32
    %c0_i32_1 = arith.constant 0 : i32
    %c0_i32_2 = arith.constant 0 : i32
    return %arg0, %c0_i32, %c0_i32_0, %c0_i32_1 : i32, i32, i32, i32
  }
  func.func @transform_1(%arg0: i32, %arg1: i32) -> (i32, i32, i32, i32) {
    %c0_i32 = arith.constant 0 : i32
    %c0_i32_0 = arith.constant 0 : i32
    %c0_i32_1 = arith.constant 0 : i32
    %c0_i32_2 = arith.constant 0 : i32
    %c0_i32_3 = arith.constant 0 : i32
    return %c0_i32, %c0_i32_0, %c0_i32_1, %c0_i32_2 : i32, i32, i32, i32
  }
  func.func @transform_2(%arg0: i32, %arg1: i32) -> (i32, i32) {
    %c0_i32 = arith.constant 0 : i32
    %c0_i32_0 = arith.constant 0 : i32
    %c0_i32_1 = arith.constant 0 : i32
    return %c0_i32, %c0_i32_0 : i32, i32
  }
  func.func @transform_3(%arg0: i32, %arg1: i32) -> (i32, i32, i32, i32, i32) {
    %c0_i32 = arith.constant 0 : i32
    %c0_i32_0 = arith.constant 0 : i32
    %c0_i32_1 = arith.constant 0 : i32
    %c0_i32_2 = arith.constant 0 : i32
    return %arg0, %arg1, %c0_i32, %c0_i32_0, %c0_i32_1 : i32, i32, i32, i32, i32
  }
  func.func @transform_4(%arg0: i32, %arg1: i32) -> (i32, i32, i32, i32) {
    %c0_i32 = arith.constant 0 : i32
    %c0_i32_0 = arith.constant 0 : i32
    %c0_i32_1 = arith.constant 0 : i32
    return %arg0, %arg1, %c0_i32, %c0_i32_0 : i32, i32, i32, i32
  }
}

module attributes {stable_mosaic.version = 11 : i64} {
  func.func @_bn_relu_kernel(%arg0: i32, %arg1: memref<64x256xf32, #tpu.memory_space<vmem>>, %arg2: memref<1x256xf32, #tpu.memory_space<vmem>>, %arg3: memref<1x256xf32, #tpu.memory_space<vmem>>, %arg4: memref<64x256xf32, #tpu.memory_space<vmem>>) attributes {dimension_semantics = [#tpu.dimension_semantics<parallel>], iteration_bounds = array<i64: 1>, scalar_prefetch = 0 : i64, scratch_operands = 0 : i64, tpu.core_type = #tpu.core_type<tc>, window_params = [{transform_indices = @transform_0, window_bounds = array<i64: 64, 256>}, {pipeline_mode = #tpu.pipeline_mode<synchronous>, transform_indices = @transform_1, window_bounds = array<i64: 1, 256>}, {pipeline_mode = #tpu.pipeline_mode<synchronous>, transform_indices = @transform_2, window_bounds = array<i64: 1, 256>}, {transform_indices = @transform_3, window_bounds = array<i64: 64, 256>}]} {
    %c0 = arith.constant 0 : index
    %c0_0 = arith.constant 0 : index
    %0 = vector.load %arg1[%c0, %c0_0] : memref<64x256xf32, #tpu.memory_space<vmem>>, vector<64x256xf32>
    %c0_1 = arith.constant 0 : index
    %c0_2 = arith.constant 0 : index
    %1 = vector.load %arg2[%c0_1, %c0_2] : memref<1x256xf32, #tpu.memory_space<vmem>>, vector<1x256xf32>
    %2 = vector.broadcast %1 : vector<1x256xf32> to vector<64x256xf32>
    %3 = arith.mulf %0, %2 : vector<64x256xf32>
    %c0_3 = arith.constant 0 : index
    %c0_4 = arith.constant 0 : index
    %4 = vector.load %arg3[%c0_3, %c0_4] : memref<1x256xf32, #tpu.memory_space<vmem>>, vector<1x256xf32>
    %5 = vector.broadcast %4 : vector<1x256xf32> to vector<64x256xf32>
    %6 = arith.addf %3, %5 : vector<64x256xf32>
    %cst = arith.constant 0.000000e+00 : f32
    %7 = vector.broadcast %cst : f32 to vector<64x256xf32>
    %8 = arith.maximumf %6, %7 : vector<64x256xf32>
    %c0_5 = arith.constant 0 : index
    %c0_6 = arith.constant 0 : index
    %9 = vector.load %arg4[%c0_5, %c0_6] : memref<64x256xf32, #tpu.memory_space<vmem>>, vector<64x256xf32>
    tpu.vector_store %arg4[%c0_5, %c0_6], %8 {strides = array<i32>} : memref<64x256xf32, #tpu.memory_space<vmem>>, vector<64x256xf32>,
    return
  }
  func.func @transform_0(%arg0: i32) -> (i32, i32) {
    %c0_i32 = arith.constant 0 : i32
    %c0_i32_0 = arith.constant 0 : i32
    return %arg0, %c0_i32 : i32, i32
  }
  func.func @transform_1(%arg0: i32) -> (i32, i32) {
    %c0_i32 = arith.constant 0 : i32
    %c0_i32_0 = arith.constant 0 : i32
    %c0_i32_1 = arith.constant 0 : i32
    return %c0_i32, %c0_i32_0 : i32, i32
  }
  func.func @transform_2(%arg0: i32) -> (i32, i32) {
    %c0_i32 = arith.constant 0 : i32
    %c0_i32_0 = arith.constant 0 : i32
    %c0_i32_1 = arith.constant 0 : i32
    return %c0_i32, %c0_i32_0 : i32, i32
  }
  func.func @transform_3(%arg0: i32) -> (i32, i32) {
    %c0_i32 = arith.constant 0 : i32
    %c0_i32_0 = arith.constant 0 : i32
    return %arg0, %c0_i32 : i32, i32
  }
}

</mosaic_0001>

<llo_original>
// kernel: tile.18
$region0: #{tile.18}
  #allocation0 [shape = 's32[1]{0}', space=sflag, size = 0x4, scoped, tag = 'scoped memory for tile.18']
  %s0 = inlined_call_operand.vmem [shape: f32[8], index: 0, kind: input, shape index: {}]
  %s1 = inlined_call_operand.vmem [shape: f32[32,8], index: 1, kind: output, shape index: {}]
  // Predicated region
  $region2: #{tile.18} parent=0 // pred_check
    _
  $region3: #{tile.18} parent=0 // pred_check_branch
    %3 = sbr.rel (0) target = $region5
  $region4: #{tile.18} parent=0 // pred_region
    _
  $region5: #{tile.18} parent=0 // pred_fallthru
    _
  %v4 = vld [vmem:[%s0] ss:$0 sm:$0xff]
  %5 = vst [vmem:[%s1] sm:$0xff] %v4
  %s6 = scalar_lea.vmem %s1, 8
  %7 = vst [vmem:[%s6] sm:$0xff] %v4
  %s8 = scalar_lea.vmem %s1, 16
  %9 = vst [vmem:[%s8] sm:$0xff] %v4
  %s10 = scalar_lea.vmem %s1, 24
  %11 = vst [vmem:[%s10] sm:$0xff] %v4

// kernel: tile.19
$region0: #{tile.19}
  %s0 = inlined_call_operand.vmem [shape: f32[32,8], index: 0, kind: input, shape index: {}]
  %s1 = inlined_call_operand.vmem [shape: f32[1,256], index: 1, kind: output, shape index: {}]
  $region1: #{tile.19} parent=0
    #allocation0 [shape = 'u8[8192]{0}', space=vmem, size = 0x2000, scoped, tag = 'scoped mem for output reshape']
    %s2 = smov 3
    %v3 = vld [vmem:[%s0] ss:$16 sm:%s2]
    %vm4 = vcmask 64512
    %5 = vst.msk [vmem:[#allocation0] ss:$8 sm:$0x3] %vm4, %v3
    %s6 = scalar_lea.vmem %s0, 15
    %s7 = smov 3
    %v8 = vld [vmem:[%s6] ss:$16 sm:%s7]
    %9 = vrot.lane.b32.xlu0 %v8, 120
    %v10 = vpop.permute.xlu0 %9
    %vm11 = vcmask 1048512
    %12 = vst.msk [vmem:[#allocation0] ss:$8 sm:$0x3] %vm11, %v10
    %s13 = scalar_lea.vmem %s0, 14
    %s14 = smov 3
    %v15 = vld [vmem:[%s13] ss:$16 sm:%s14]
    %16 = vrot.lane.b32.xlu0 %v15, 112
    %v17 = vpop.permute.xlu0 %16
    %vm18 = vcmask 982912
    %19 = vst.msk [vmem:[#allocation0] ss:$8 sm:$0x3] %vm18, %v17
    %s20 = scalar_lea.vmem %s0, 13
    %s21 = smov 3
    %v22 = vld [vmem:[%s20] ss:$16 sm:%s21]
    %23 = vrot.lane.b32.xlu0 %v22, 104
    %v24 = vpop.permute.xlu0 %23
    %vm25 = vcmask 917312
    %26 = vst.msk [vmem:[#allocation0] ss:$8 sm:$0x3] %vm25, %v24
    %s27 = scalar_lea.vmem %s0, 12
    %s28 = smov 3
    %v29 = vld [vmem:[%s27] ss:$16 sm:%s28]
    %30 = vrot.lane.b32.xlu0 %v29, 96
    %v31 = vpop.permute.xlu0 %30
    %vm32 = vcmask 851712
    %33 = vst.msk [vmem:[#allocation0] ss:$8 sm:$0x3] %vm32, %v31
    %s34 = scalar_lea.vmem %s0, 11
    %s35 = smov 3
    %v36 = vld [vmem:[%s34] ss:$16 sm:%s35]
    %37 = vrot.lane.b32.xlu0 %v36, 88
    %v38 = vpop.permute.xlu0 %37
    %vm39 = vcmask 786112
    %40 = vst.msk [vmem:[#allocation0] ss:$8 sm:$0x3] %vm39, %v38
    %s41 = scalar_lea.vmem %s0, 10
    %s42 = smov 3
    %v43 = vld [vmem:[%s41] ss:$16 sm:%s42]
    %44 = vrot.lane.b32.xlu0 %v43, 80
    %v45 = vpop.permute.xlu0 %44
    %vm46 = vcmask 720512
    %47 = vst.msk [vmem:[#allocation0] ss:$8 sm:$0x3] %vm46, %v45
    %s48 = scalar_lea.vmem %s0, 9
    %s49 = smov 3
    %v50 = vld [vmem:[%s48] ss:$16 sm:%s49]
    %51 = vrot.lane.b32.xlu0 %v50, 72
    %v52 = vpop.permute.xlu0 %51
    %vm53 = vcmask 654912
    %54 = vst.msk [vmem:[#allocation0] ss:$8 sm:$0x3] %vm53, %v52
    %s55 = scalar_lea.vmem %s0, 8
    %s56 = smov 3
    %v57 = vld [vmem:[%s55] ss:$16 sm:%s56]
    %58 = vrot.lane.b32.xlu0 %v57, 64
    %v59 = vpop.permute.xlu0 %58
    %vm60 = vcmask 589312
    %61 = vst.msk [vmem:[#allocation0] ss:$8 sm:$0x3] %vm60, %v59
    %s62 = scalar_lea.vmem %s0, 7
    %s63 = smov 3
    %v64 = vld [vmem:[%s62] ss:$16 sm:%s63]
    %65 = vrot.lane.b32.xlu0 %v64, 56
    %v66 = vpop.permute.xlu0 %65
    %vm67 = vcmask 523712
    %68 = vst.msk [vmem:[#allocation0] ss:$8 sm:$0x3] %vm67, %v66
    %s69 = scalar_lea.vmem %s0, 6
    %s70 = smov 3
    %v71 = vld [vmem:[%s69] ss:$16 sm:%s70]
    %72 = vrot.lane.b32.xlu0 %v71, 48
    %v73 = vpop.permute.xlu0 %72
    %vm74 = vcmask 458112
    %75 = vst.msk [vmem:[#allocation0] ss:$8 sm:$0x3] %vm74, %v73
    %s76 = scalar_lea.vmem %s0, 5
    %s77 = smov 3
    %v78 = vld [vmem:[%s76] ss:$16 sm:%s77]
    %79 = vrot.lane.b32.xlu0 %v78, 40
    %v80 = vpop.permute.xlu0 %79
    %vm81 = vcmask 392512
    %82 = vst.msk [vmem:[#allocation0] ss:$8 sm:$0x3] %vm81, %v80
    %s83 = scalar_lea.vmem %s0, 4
    %s84 = smov 3
    %v85 = vld [vmem:[%s83] ss:$16 sm:%s84]
    %86 = vrot.lane.b32.xlu0 %v85, 32
    %v87 = vpop.permute.xlu0 %86
    %vm88 = vcmask 326912
    %89 = vst.msk [vmem:[#allocation0] ss:$8 sm:$0x3] %vm88, %v87
    %s90 = scalar_lea.vmem %s0, 3
    %s91 = smov 3
    %v92 = vld [vmem:[%s90] ss:$16 sm:%s91]
    %93 = vrot.lane.b32.xlu0 %v92, 24
    %v94 = vpop.permute.xlu0 %93
    %vm95 = vcmask 261312
    %96 = vst.msk [vmem:[#allocation0] ss:$8 sm:$0x3] %vm95, %v94
    %s97 = scalar_lea.vmem %s0, 2
    %s98 = smov 3
    %v99 = vld [vmem:[%s97] ss:$16 sm:%s98]
    %100 = vrot.lane.b32.xlu0 %v99, 16
    %v101 = vpop.permute.xlu0 %100
    %vm102 = vcmask 195712
    %103 = vst.msk [vmem:[#allocation0] ss:$8 sm:$0x3] %vm102, %v101
    %s104 = scalar_lea.vmem %s0, 1
    %s105 = smov 3
    %v106 = vld [vmem:[%s104] ss:$16 sm:%s105]
    %107 = vrot.lane.b32.xlu0 %v106, 8
    %v108 = vpop.permute.xlu0 %107
    %vm109 = vcmask 130112
    %110 = vst.msk [vmem:[#allocation0] ss:$8 sm:$0x3] %vm109, %v108
    %s112 = ssub.s32 2, 1
    %v113 = vld [vmem:[#allocation0] sm:%s112]
    %s115 = ssub.s32 2, 1
    %116 = vst [vmem:[%s1] sm:%s115] %v113
    %s117 = scalar_lea.vmem [#allocation0], 8
    %v118 = vld [vmem:[%s117] sm:%s112]
    %s120 = ssub.s32 2, 1
    %s121 = scalar_lea.vmem %s1, 1
    %122 = vst [vmem:[%s121] sm:%s120] %v118

// kernel: up_conv_batch_relu.3
$region0: #{up_conv_batch_relu.3}
  #allocation0 [shape = 'u32[]', space=smem, size = 0x4, offset = 0x4, fixed_abs, tag = 'smem constant byte address 0x4 - core index']
  #allocation1 [shape = 'u32[72,128]{1,0:T(1,128)}', space=vmem, size = 0x9000, scoped, tag = 'internal scratch']
  %s0 = inlined_call_operand.vmem [shape: f32[64,256], index: 0, kind: input, shape index: {}]
  %s1 = inlined_call_operand.vmem [shape: f32[1,256], index: 1, kind: input, shape index: {}]
  %s2 = inlined_call_operand.vmem [shape: f32[1,256], index: 2, kind: input, shape index: {}]
  %s3 = inlined_call_operand.vmem [shape: f32[64,256], index: 3, kind: output, shape index: {}]
  %s4 = sld [smem:[#allocation0]]
  $region22: #{up_conv_batch_relu.3} parent=0
    _
  %s6 = ssub.s32 1, %s4
  %s7 = scalar_select 0, %s6, %s4
  // Predicated region
  $region2: #{up_conv_batch_relu.3} parent=0 // pred_check
    _
  $region3: #{up_conv_batch_relu.3} parent=0 // pred_check_branch
    %9 = sbr.rel (0) target = $region5
  $region4: #{up_conv_batch_relu.3} parent=0 // pred_region
    _
  $region5: #{up_conv_batch_relu.3} parent=0 // pred_fallthru
    _
  // Predicated region
  $region6: #{up_conv_batch_relu.3} parent=0 // pred_check
    _
  $region7: #{up_conv_batch_relu.3} parent=0 // pred_check_branch
    %11 = sbr.rel (0) target = $region9
  $region8: #{up_conv_batch_relu.3} parent=0 // pred_region
    _
  $region9: #{up_conv_batch_relu.3} parent=0 // pred_fallthru
    _
  // Predicated region
  $region10: #{up_conv_batch_relu.3} parent=0 // pred_check
    _
  $region11: #{up_conv_batch_relu.3} parent=0 // pred_check_branch
    %13 = sbr.rel (0) target = $region13
  $region12: #{up_conv_batch_relu.3} parent=0 // pred_region
    _
  $region13: #{up_conv_batch_relu.3} parent=0 // pred_fallthru
    _
  %v14 = vld [vmem:[%s0] sm:$0xff]
  %v15 = vld [vmem:[%s0 + $0x8] sm:$0xff]
  %v16 = vld [vmem:[%s0 + $0x10] sm:$0xff]
  %v17 = vld [vmem:[%s0 + $0x18] sm:$0xff]
  %v18 = vld [vmem:[%s0 + $0x20] sm:$0xff]
  %v19 = vld [vmem:[%s0 + $0x28] sm:$0xff]
  %v20 = vld [vmem:[%s0 + $0x30] sm:$0xff]
  %v21 = vld [vmem:[%s0 + $0x38] sm:$0xff]
  %v22 = vld [vmem:[%s0 + $0x40] sm:$0xff]
  %v23 = vld [vmem:[%s0 + $0x48] sm:$0xff]
  %v24 = vld [vmem:[%s0 + $0x50] sm:$0xff]
  %v25 = vld [vmem:[%s0 + $0x58] sm:$0xff]
  %v26 = vld [vmem:[%s0 + $0x60] sm:$0xff]
  %v27 = vld [vmem:[%s0 + $0x68] sm:$0xff]
  %v28 = vld [vmem:[%s0 + $0x70] sm:$0xff]
  %v29 = vld [vmem:[%s0 + $0x78] sm:$0xff]
  %v30 = vld [vmem:[%s1] sm:$0x3]
  %v32 = vperm.slane %v30, 0
  %v33 = vperm.slane %v30, 1
  %v36 = vmul.f32 %v14, %v32
  %v37 = vmul.f32 %v15, %v33
  %v38 = vmul.f32 %v16, %v32
  %v39 = vmul.f32 %v17, %v33
  %v40 = vmul.f32 %v18, %v32
  %v41 = vmul.f32 %v19, %v33
  %v42 = vmul.f32 %v20, %v32
  %v43 = vmul.f32 %v21, %v33
  %v44 = vmul.f32 %v22, %v32
  %v45 = vmul.f32 %v23, %v33
  %v46 = vmul.f32 %v24, %v32
  %v47 = vmul.f32 %v25, %v33
  %v48 = vmul.f32 %v26, %v32
  %v49 = vmul.f32 %v27, %v33
  %v50 = vmul.f32 %v28, %v32
  %v51 = vmul.f32 %v29, %v33
  %v52 = vld [vmem:[%s2] sm:$0x3]
  %v54 = vperm.slane %v52, 0
  %v55 = vperm.slane %v52, 1
  %v58 = vadd.f32 %v36, %v54
  %v59 = vadd.f32 %v37, %v55
  %v60 = vadd.f32 %v38, %v54
  %v61 = vadd.f32 %v39, %v55
  %v62 = vadd.f32 %v40, %v54
  %v63 = vadd.f32 %v41, %v55
  %v64 = vadd.f32 %v42, %v54
  %v65 = vadd.f32 %v43, %v55
  %v66 = vadd.f32 %v44, %v54
  %v67 = vadd.f32 %v45, %v55
  %v68 = vadd.f32 %v46, %v54
  %v69 = vadd.f32 %v47, %v55
  %v70 = vadd.f32 %v48, %v54
  %v71 = vadd.f32 %v49, %v55
  %v72 = vadd.f32 %v50, %v54
  %v73 = vadd.f32 %v51, %v55
  %v74 = vmax.f32 %v58, 0.0
  %v75 = vmax.f32 %v59, 0.0
  %v76 = vmax.f32 %v60, 0.0
  %v77 = vmax.f32 %v61, 0.0
  %v78 = vmax.f32 %v62, 0.0
  %v79 = vmax.f32 %v63, 0.0
  %v80 = vmax.f32 %v64, 0.0
  %v81 = vmax.f32 %v65, 0.0
  %v82 = vmax.f32 %v66, 0.0
  %v83 = vmax.f32 %v67, 0.0
  %v84 = vmax.f32 %v68, 0.0
  %v85 = vmax.f32 %v69, 0.0
  %v86 = vmax.f32 %v70, 0.0
  %v87 = vmax.f32 %v71, 0.0
  %v88 = vmax.f32 %v72, 0.0
  %v89 = vmax.f32 %v73, 0.0
  %90 = vst [vmem:[%s3] sm:$0xff] %v74
  %91 = vst [vmem:[%s3 + $0x8] sm:$0xff] %v75
  %92 = vst [vmem:[%s3 + $0x10] sm:$0xff] %v76
  %93 = vst [vmem:[%s3 + $0x18] sm:$0xff] %v77
  %94 = vst [vmem:[%s3 + $0x20] sm:$0xff] %v78
  %95 = vst [vmem:[%s3 + $0x28] sm:$0xff] %v79
  %96 = vst [vmem:[%s3 + $0x30] sm:$0xff] %v80
  %97 = vst [vmem:[%s3 + $0x38] sm:$0xff] %v81
  %98 = vst [vmem:[%s3 + $0x40] sm:$0xff] %v82
  %99 = vst [vmem:[%s3 + $0x48] sm:$0xff] %v83
  %100 = vst [vmem:[%s3 + $0x50] sm:$0xff] %v84
  %101 = vst [vmem:[%s3 + $0x58] sm:$0xff] %v85
  %102 = vst [vmem:[%s3 + $0x60] sm:$0xff] %v86
  %103 = vst [vmem:[%s3 + $0x68] sm:$0xff] %v87
  %104 = vst [vmem:[%s3 + $0x70] sm:$0xff] %v88
  %105 = vst [vmem:[%s3 + $0x78] sm:$0xff] %v89
  // Predicated region
  $region14: #{up_conv_batch_relu.3} parent=0 // pred_check
    _
  $region15: #{up_conv_batch_relu.3} parent=0 // pred_check_branch
    %107 = sbr.rel (0) target = $region17
  $region16: #{up_conv_batch_relu.3} parent=0 // pred_region
    _
  $region17: #{up_conv_batch_relu.3} parent=0 // pred_fallthru
    _
  // Predicated region
  $region18: #{up_conv_batch_relu.3} parent=0 // pred_check
    _
  $region19: #{up_conv_batch_relu.3} parent=0 // pred_check_branch
    %109 = sbr.rel (0) target = $region21
  $region20: #{up_conv_batch_relu.3} parent=0 // pred_region
    _
  $region21: #{up_conv_batch_relu.3} parent=0 // pred_fallthru
    _

// kernel: up_conv_batch_relu.2
$region0: #{up_conv_batch_relu.2}
  #allocation0 [shape = 'u32[]', space=smem, size = 0x4, offset = 0x4, fixed_abs, tag = 'smem constant byte address 0x4 - core index']
  #allocation1 [shape = 'u32[72,128]{1,0:T(1,128)}', space=vmem, size = 0x9000, scoped, tag = 'internal scratch']
  #allocation2 [shape = 'bf16[18,18,4]{2,1,0:T(8,128)(2,1)}', space=vmem, size = 0x1b000, scoped, tag = 'scratch operand']
  %s0 = inlined_call_operand.vmem [shape: bf16[2,16,16,4], index: 0, kind: input, shape index: {}]
  %s1 = inlined_call_operand.vmem [shape: bf16[3,4,4,8], index: 1, kind: input, shape index: {}]
  %s2 = inlined_call_operand.vmem [shape: f32[1,8], index: 2, kind: input, shape index: {}]
  %s3 = inlined_call_operand.vmem [shape: f32[2,32,2,16,8], index: 3, kind: output, shape index: {0}]
  %s4 = inlined_call_operand.vmem [shape: f32[2,2,2,8], index: 4, kind: output, shape index: {1}]
  %5 = xla_tuple %s3, %s4
  %s6 = sld [smem:[#allocation0]]
  $region53: #{up_conv_batch_relu.2} parent=0
    _
  %s8 = ssub.s32 1, %s6
  %s9 = scalar_select 0, %s8, %s6
  loop: start=0, step=1, limit=6
  $region2: #{up_conv_batch_relu.2} parent=0 // loop_pre_header
    _
  $region3: #{up_conv_batch_relu.2} parent=0 // loop_header
    %s11 = sphi 0, %s15
    %p12 = scmp.ge.s32.totalorder %s11, 6
    %s18 = sphi 0, %s30
    %s19 = sphi 0, %s26
    %s20 = sphi 0, %s18
    %s21 = sphi 0, %s19
    %s22 = sphi 0, %s20
    %s23 = sphi 0, %s21
    %s33 = sphi 0, %s35
    %s36 = sphi 0, %s33
    %s37 = sphi 0, %s36
    %s53 = sphi 0, %s37
    %s57 = sphi 0, %s57
    %s59 = sphi 0, %s57
    %s60 = sphi 0, %s59
    %s74 = sphi 0, %s60
    %s78 = sphi 0, %s78
    %s80 = sphi 0, %s78
    %s81 = sphi 0, %s80
    %s95 = sphi 0, %s81
    %s103 = sphi 0, %s105
    %s106 = sphi 0, %s103
    %s107 = sphi 0, %s106
    %s123 = sphi 0, %s107
    %s131 = sphi 0, %s133
    %s134 = sphi 0, %s131
    %s135 = sphi 0, %s134
    %s151 = sphi 0, %s135
  $region4: #{up_conv_batch_relu.2} parent=0 // loop_header_branch
    %14 = sbr.rel (%p12) target = $region8
  $region5: #{up_conv_batch_relu.2} parent=0 // loop_body
    %s16 = ssub.s32 %s11, 1
    %s17 = ssub.s32 %s11, 2
    %s24 = sadd.s32 1, %s19
    %p25 = scmp.ge.s32.totalorder %s24, 2
    %s26 = scalar_select %p25, 0, %s24
    %s27 = sadd.s32 1, %s18
    %s28 = scalar_select %p25, %s27, %s18
    %p29 = scmp.ge.s32.totalorder %s28, 2
    %s30 = scalar_select %p29, 0, %s28
    %s31 = ssub.s32 %s18, %s30
    %p32 = scmp.eq.s32.totalorder %s31, 0
    %s34 = sadd.s32 %s33, 1
    %s35 = scalar_select %p32, %s33, %s34
    %p38 = pneg %p32
    %p39 = scmp.eq.s32.totalorder %s11, 3
    %p40 = por %p38, %p39
    %p41 = scmp.ne.s32.totalorder %s33, %s36
    %p42 = scmp.eq.s32.totalorder %s11, 0
    %p43 = por %p41, %p42
    %p44 = scmp.ne.s32.totalorder %s33, %s36
    %p45 = scmp.eq.s32.totalorder %s16, 3
    %p46 = por %p44, %p45
    %p47 = scmp.ne.s32.totalorder %s36, %s37
    %p48 = scmp.eq.s32.totalorder %s16, 0
    %p49 = por %p47, %p48
    %p50 = scmp.ne.s32.totalorder %s36, %s37
    %p51 = scmp.eq.s32.totalorder %s17, 3
    %p52 = por %p50, %p51
    %p54 = scmp.ne.s32.totalorder %s37, %s53
    %p55 = scmp.eq.s32.totalorder %s17, 0
    %p56 = por %p54, %p55
    %s58 = sadd.s32 %s57, 1
    %p61 = scmp.eq.s32.totalorder %s11, 3
    %p62 = scmp.ne.s32.totalorder %s57, %s59
    %p63 = scmp.eq.s32.totalorder %s11, 0
    %p64 = por %p62, %p63
    %p65 = scmp.ne.s32.totalorder %s57, %s59
    %p66 = scmp.eq.s32.totalorder %s16, 3
    %p67 = por %p65, %p66
    %p68 = scmp.ne.s32.totalorder %s59, %s60
    %p69 = scmp.eq.s32.totalorder %s16, 0
    %p70 = por %p68, %p69
    %p71 = scmp.ne.s32.totalorder %s59, %s60
    %p72 = scmp.eq.s32.totalorder %s17, 3
    %p73 = por %p71, %p72
    %p75 = scmp.ne.s32.totalorder %s60, %s74
    %p76 = scmp.eq.s32.totalorder %s17, 0
    %p77 = por %p75, %p76
    %s79 = sadd.s32 %s78, 1
    %p82 = scmp.eq.s32.totalorder %s11, 3
    %p83 = scmp.ne.s32.totalorder %s78, %s80
    %p84 = scmp.eq.s32.totalorder %s11, 0
    %p85 = por %p83, %p84
    %p86 = scmp.ne.s32.totalorder %s78, %s80
    %p87 = scmp.eq.s32.totalorder %s16, 3
    %p88 = por %p86, %p87
    %p89 = scmp.ne.s32.totalorder %s80, %s81
    %p90 = scmp.eq.s32.totalorder %s16, 0
    %p91 = por %p89, %p90
    %p92 = scmp.ne.s32.totalorder %s80, %s81
    %p93 = scmp.eq.s32.totalorder %s17, 3
    %p94 = por %p92, %p93
    %p96 = scmp.ne.s32.totalorder %s81, %s95
    %p97 = scmp.eq.s32.totalorder %s17, 0
    %p98 = por %p96, %p97
    %s99 = ssub.s32 %s18, %s30
    %s100 = ssub.s32 %s19, %s26
    %s101 = sor.u32 %s99, %s100
    %p102 = scmp.eq.s32.totalorder %s101, 0
    %s104 = sadd.s32 %s103, 1
    %s105 = scalar_select %p102, %s103, %s104
    %p108 = pneg %p102
    %p109 = scmp.eq.s32.totalorder %s11, 3
    %p110 = por %p108, %p109
    %p111 = scmp.ne.s32.totalorder %s103, %s106
    %p112 = scmp.eq.s32.totalorder %s11, 0
    %p113 = por %p111, %p112
    %p114 = scmp.ne.s32.totalorder %s103, %s106
    %p115 = scmp.eq.s32.totalorder %s16, 3
    %p116 = por %p114, %p115
    %p117 = scmp.ne.s32.totalorder %s106, %s107
    %p118 = scmp.eq.s32.totalorder %s16, 0
    %p119 = por %p117, %p118
    %p120 = scmp.ne.s32.totalorder %s106, %s107
    %p121 = scmp.eq.s32.totalorder %s17, 3
    %p122 = por %p120, %p121
    %p124 = scmp.ne.s32.totalorder %s107, %s123
    %p125 = scmp.eq.s32.totalorder %s17, 0
    %p126 = por %p124, %p125
    %s127 = ssub.s32 %s18, %s30
    %s128 = ssub.s32 %s19, %s26
    %s129 = sor.u32 %s127, %s128
    %p130 = scmp.eq.s32.totalorder %s129, 0
    %s132 = sadd.s32 %s131, 1
    %s133 = scalar_select %p130, %s131, %s132
    %p136 = pneg %p130
    %p137 = scmp.eq.s32.totalorder %s11, 3
    %p138 = por %p136, %p137
    %p139 = scmp.ne.s32.totalorder %s131, %s134
    %p140 = scmp.eq.s32.totalorder %s11, 0
    %p141 = por %p139, %p140
    %p142 = scmp.ne.s32.totalorder %s131, %s134
    %p143 = scmp.eq.s32.totalorder %s16, 3
    %p144 = por %p142, %p143
    %p145 = scmp.ne.s32.totalorder %s134, %s135
    %p146 = scmp.eq.s32.totalorder %s16, 0
    %p147 = por %p145, %p146
    %p148 = scmp.ne.s32.totalorder %s134, %s135
    %p149 = scmp.eq.s32.totalorder %s17, 3
    %p150 = por %p148, %p149
    %p152 = scmp.ne.s32.totalorder %s135, %s151
    %p153 = scmp.eq.s32.totalorder %s17, 0
    %p154 = por %p152, %p153
    %p155 = scmp.le.s32.totalorder 1, %s11
    %p156 = scmp.lt.s32.totalorder %s11, 5
    %p157 = pnand %p155, %p156
    %p158 = pneg %p157
    // Predicated region
    $region9: #{up_conv_batch_relu.2} parent=5 // pred_check
      _
    $region10: #{up_conv_batch_relu.2} parent=5 // pred_check_branch
      %160 = sbr.rel (%p157) target = $region12
    $region11: #{up_conv_batch_relu.2} parent=5 // pred_region
      %s161 = ssub.s32 %s11, 1
      // Predicated region
      $region13: #{up_conv_batch_relu.2} parent=11 // pred_check
        %p162 = pneg %p70
      $region14: #{up_conv_batch_relu.2} parent=11 // pred_check_branch
        %164 = sbr.rel (%p162) target = $region16
      $region15: #{up_conv_batch_relu.2} parent=11 // pred_region
        _
      $region16: #{up_conv_batch_relu.2} parent=11 // pred_fallthru
        _
      // Predicated region
      $region17: #{up_conv_batch_relu.2} parent=11 // pred_check
        %p165 = pneg %p91
      $region18: #{up_conv_batch_relu.2} parent=11 // pred_check_branch
        %167 = sbr.rel (%p165) target = $region20
      $region19: #{up_conv_batch_relu.2} parent=11 // pred_region
        _
      $region20: #{up_conv_batch_relu.2} parent=11 // pred_fallthru
        _
    $region12: #{up_conv_batch_relu.2} parent=5 // pred_fallthru
      _
    %p168 = scmp.lt.s32.totalorder %s11, 4
    // Predicated region
    $region21: #{up_conv_batch_relu.2} parent=5 // pred_check
      %p169 = pneg %p168
    $region22: #{up_conv_batch_relu.2} parent=5 // pred_check_branch
      %171 = sbr.rel (%p169) target = $region24
    $region23: #{up_conv_batch_relu.2} parent=5 // pred_region
      // Predicated region
      $region25: #{up_conv_batch_relu.2} parent=23 // pred_check
        %p172 = pneg %p43
      $region26: #{up_conv_batch_relu.2} parent=23 // pred_check_branch
        %174 = sbr.rel (%p172) target = $region28
      $region27: #{up_conv_batch_relu.2} parent=23 // pred_region
        %p175 = scmp.lt.s32.totalorder %s18, 1
        %s176 = scalar_select %p175, %s18, 1
        %s177 = smul.addr %s176, 32
        %s178 = smul.addr %s177, 4
        %s179 = scalar_lea.vmem %s0, %s178
      $region28: #{up_conv_batch_relu.2} parent=23 // pred_fallthru
        _
    $region24: #{up_conv_batch_relu.2} parent=5 // pred_fallthru
      _
    %p180 = scmp.le.s32.totalorder 1, %s11
    %p181 = scmp.lt.s32.totalorder %s11, 5
    %p182 = pnand %p180, %p181
    %p183 = pneg %p182
    // Predicated region
    $region29: #{up_conv_batch_relu.2} parent=5 // pred_check
      _
    $region30: #{up_conv_batch_relu.2} parent=5 // pred_check_branch
      %185 = sbr.rel (%p182) target = $region32
    $region31: #{up_conv_batch_relu.2} parent=5 // pred_region
      %s186 = ssub.s32 %s11, 1
      %p187 = scmp.lt.s32.totalorder %s20, 1
      %s188 = scalar_select %p187, %s20, 1
      %s189 = smul.addr %s188, 32
      %s190 = smul.addr %s189, 4
      %s191 = scalar_lea.vmem %s0, %s190
      %p192 = pneg %p49
      %p193 = pneg %p46
      %p194 = pneg %p70
      %p195 = pneg %p67
      %p196 = pneg %p91
      %p197 = pneg %p88
      %p198 = pneg %p119
      %p199 = pneg %p116
      %s200 = smul.u32 16, %s21
      %p201 = scmp.lt.s32.totalorder %s20, 1
      %s202 = scalar_select %p201, %s20, 1
      %p203 = scmp.lt.s32.totalorder %s200, 31
      %s204 = scalar_select %p203, %s200, 31
      %s205 = smul.addr %s204, 4
      %s206 = smul.addr %s202, 128
      %s207 = sadd.s32 %s205, %s206
      %s208 = smul.addr %s207, 8
      %s209 = scalar_lea.vmem %s3, %s208
      %p210 = pneg %p147
      %p211 = pneg %p144
      %p212 = scmp.lt.s32.totalorder %s20, 1
      %s213 = scalar_select %p212, %s20, 1
      %p214 = scmp.lt.s32.totalorder %s21, 1
      %s215 = scalar_select %p214, %s21, 1
      %s216 = smul.addr %s213, 2
      %s217 = sadd.s32 %s215, %s216
      %s218 = smul.addr %s217, 2
      %s219 = scalar_lea.vmem %s4, %s218
      %p220 = scmp.lt.s32.totalorder %s20, 1
      %s221 = scalar_select %p220, %s20, 1
      %s222 = smul.addr %s221, 32
      %s223 = smul.addr %s222, 4
      %s224 = scalar_lea.vmem %s0, %s223
      %s225 = smul.u32 16, %s21
      %p226 = scmp.lt.s32.totalorder %s20, 1
      %s227 = scalar_select %p226, %s20, 1
      %p228 = scmp.lt.s32.totalorder %s225, 31
      %s229 = scalar_select %p228, %s225, 31
      %s230 = smul.addr %s229, 4
      %s231 = smul.addr %s227, 128
      %s232 = sadd.s32 %s230, %s231
      %s233 = smul.addr %s232, 8
      %s234 = scalar_lea.vmem %s3, %s233
      %s235 = smul.u32 16, %s21
      %p236 = scmp.lt.s32.totalorder %s20, 1
      %s237 = scalar_select %p236, %s20, 1
      %p238 = scmp.lt.s32.totalorder %s21, 1
      %s239 = scalar_select %p238, %s21, 1
      %s240 = smul.addr %s237, 2
      %s241 = sadd.s32 %s239, %s240
      %s242 = smul.addr %s241, 2
      %s243 = scalar_lea.vmem %s4, %s242
      %s245 = smul.u32 %s21, 8
      %s246 = smul.u32 %s245, 2
      %s247 = smul.addr %s246, 4
      %s248 = scalar_lea.vmem %s224, %s247
      %v249 = vld [vmem:[%s248] sm:$0xf]
      %v250 = vld [vmem:[%s248 + $0x4] sm:$0xf]
      %v251 = vld [vmem:[%s248 + $0x8] sm:$0xf]
      %v252 = vld [vmem:[%s248 + $0xc] sm:$0xf]
      %v253 = vld [vmem:[%s248 + $0x10] sm:$0xf]
      %v254 = vld [vmem:[%s248 + $0x14] sm:$0xf]
      %v255 = vld [vmem:[%s248 + $0x18] sm:$0xf]
      %v256 = vld [vmem:[%s248 + $0x1c] sm:$0xf]
      %v257 = vld [vmem:[%s248 + $0x20] sm:$0xf]
      %v258 = vld [vmem:[%s248 + $0x24] sm:$0xf]
      %v259 = vld [vmem:[%s248 + $0x28] sm:$0xf]
      %v260 = vld [vmem:[%s248 + $0x2c] sm:$0xf]
      %v261 = vld [vmem:[%s248 + $0x30] sm:$0xf]
      %v262 = vld [vmem:[%s248 + $0x34] sm:$0xf]
      %v263 = vld [vmem:[%s248 + $0x38] sm:$0xf]
      %v264 = vld [vmem:[%s248 + $0x3c] sm:$0xf]
      %s265 = ssub.s32 %s245, 1
      %p266 = scmp.gt.s32.totalorder %s265, 0
      %s267 = scalar_select %p266, %s265, 0
      %s268 = smul.u32 %s267, 2
      %s269 = smul.addr %s268, 4
      %s270 = scalar_lea.vmem %s224, %s269
      %v271 = vld [vmem:[%s270] sm:$0xf]
      %v272 = vld [vmem:[%s270 + $0x4] sm:$0xf]
      %p273 = scmp.gt.s32.totalorder %s245, 0
      %s274 = scalar_select %p273, 1, 0
      %v275 = vstv %s274
      %vm276 = vcmp.eq.s32.totalorder %v275, 1
      %v277 = vsel %vm276, %v271, 0
      %v278 = vsel %vm276, %v272, 0
      %s279 = sadd.s32 %s245, 8
      %p280 = scmp.lt.s32.totalorder %s279, 15
      %s281 = scalar_select %p280, %s279, 15
      %s282 = smul.u32 %s281, 2
      %s283 = smul.addr %s282, 4
      %s284 = scalar_lea.vmem %s224, %s283
      %v285 = vld [vmem:[%s284] sm:$0xf]
      %v286 = vld [vmem:[%s284 + $0x4] sm:$0xf]
      %p287 = scmp.lt.s32.totalorder %s279, 16
      %s288 = scalar_select %p287, 1, 0
      %v289 = vstv %s288
      %vm290 = vcmp.eq.s32.totalorder %v289, 1
      %v291 = vsel %vm290, %v285, 0
      %v292 = vsel %vm290, %v286, 0
      %vm293 = vcmask 27648
      %294 = vst.msk [vmem:[#allocation2] sm:$0xf] %vm293, 0
      %295 = vst.msk [vmem:[#allocation2 + $0x4] sm:$0xf] %vm293, 0
      %vm296 = vcmask 24576
      %297 = vst.msk [vmem:[#allocation2 + $0x8] sm:$0x1] %vm296, 0
      %298 = vst.msk [vmem:[#allocation2 + $0xc] sm:$0xf] %vm293, 0
      %299 = vst.msk [vmem:[#allocation2 + $0x10] sm:$0xf] %vm293, 0
      %300 = vst.msk [vmem:[#allocation2 + $0x14] sm:$0x1] %vm296, 0
      %301 = vst.msk [vmem:[#allocation2 + $0x18] sm:$0xf] %vm293, 0
      %302 = vst.msk [vmem:[#allocation2 + $0x1c] sm:$0xf] %vm293, 0
      %303 = vst.msk [vmem:[#allocation2 + $0x20] sm:$0x1] %vm296, 0
      %304 = vst.msk [vmem:[#allocation2 + $0x24] sm:$0xf] %vm293, 0
      %305 = vst.msk [vmem:[#allocation2 + $0x28] sm:$0xf] %vm293, 0
      %306 = vst.msk [vmem:[#allocation2 + $0x2c] sm:$0x1] %vm296, 0
      %307 = vst.msk [vmem:[#allocation2 + $0x30] sm:$0xf] %vm293, 0
      %308 = vst.msk [vmem:[#allocation2 + $0x34] sm:$0xf] %vm293, 0
      %309 = vst.msk [vmem:[#allocation2 + $0x38] sm:$0x1] %vm296, 0
      %310 = vst.msk [vmem:[#allocation2 + $0x3c] sm:$0xf] %vm293, 0
      %311 = vst.msk [vmem:[#allocation2 + $0x40] sm:$0xf] %vm293, 0
      %312 = vst.msk [vmem:[#allocation2 + $0x44] sm:$0x1] %vm296, 0
      %313 = vst.msk [vmem:[#allocation2 + $0x48] sm:$0xf] %vm293, 0
      %314 = vst.msk [vmem:[#allocation2 + $0x4c] sm:$0xf] %vm293, 0
      %315 = vst.msk [vmem:[#allocation2 + $0x50] sm:$0x1] %vm296, 0
      %316 = vst.msk [vmem:[#allocation2 + $0x54] sm:$0xf] %vm293, 0
      %317 = vst.msk [vmem:[#allocation2 + $0x58] sm:$0xf] %vm293, 0
      %318 = vst.msk [vmem:[#allocation2 + $0x5c] sm:$0x1] %vm296, 0
      %319 = vst.msk [vmem:[#allocation2 + $0x60] sm:$0xf] %vm293, 0
      %320 = vst.msk [vmem:[#allocation2 + $0x64] sm:$0xf] %vm293, 0
      %321 = vst.msk [vmem:[#allocation2 + $0x68] sm:$0x1] %vm296, 0
      %322 = vst.msk [vmem:[#allocation2 + $0x6c] sm:$0xf] %vm293, 0
      %323 = vst.msk [vmem:[#allocation2 + $0x70] sm:$0xf] %vm293, 0
      %324 = vst.msk [vmem:[#allocation2 + $0x74] sm:$0x1] %vm296, 0
      %325 = vst.msk [vmem:[#allocation2 + $0x78] sm:$0xf] %vm293, 0
      %326 = vst.msk [vmem:[#allocation2 + $0x7c] sm:$0xf] %vm293, 0
      %327 = vst.msk [vmem:[#allocation2 + $0x80] sm:$0x1] %vm296, 0
      %328 = vst.msk [vmem:[#allocation2 + $0x84] sm:$0xf] %vm293, 0
      %329 = vst.msk [vmem:[#allocation2 + $0x88] sm:$0xf] %vm293, 0
      %330 = vst.msk [vmem:[#allocation2 + $0x8c] sm:$0x1] %vm296, 0
      %331 = vst.msk [vmem:[#allocation2 + $0x90] sm:$0xf] %vm293, 0
      %332 = vst.msk [vmem:[#allocation2 + $0x94] sm:$0xf] %vm293, 0
      %333 = vst.msk [vmem:[#allocation2 + $0x98] sm:$0x1] %vm296, 0
      %334 = vst.msk [vmem:[#allocation2 + $0x9c] sm:$0xf] %vm293, 0
      %335 = vst.msk [vmem:[#allocation2 + $0xa0] sm:$0xf] %vm293, 0
      %336 = vst.msk [vmem:[#allocation2 + $0xa4] sm:$0x1] %vm296, 0
      %337 = vst.msk [vmem:[#allocation2 + $0xa8] sm:$0xf] %vm293, 0
      %338 = vst.msk [vmem:[#allocation2 + $0xac] sm:$0xf] %vm293, 0
      %339 = vst.msk [vmem:[#allocation2 + $0xb0] sm:$0x1] %vm296, 0
      %340 = vst.msk [vmem:[#allocation2 + $0xb4] sm:$0xf] %vm293, 0
      %341 = vst.msk [vmem:[#allocation2 + $0xb8] sm:$0xf] %vm293, 0
      %342 = vst.msk [vmem:[#allocation2 + $0xbc] sm:$0x1] %vm296, 0
      %343 = vst.msk [vmem:[#allocation2 + $0xc0] sm:$0xf] %vm293, 0
      %344 = vst.msk [vmem:[#allocation2 + $0xc4] sm:$0xf] %vm293, 0
      %345 = vst.msk [vmem:[#allocation2 + $0xc8] sm:$0x1] %vm296, 0
      %346 = vst.msk [vmem:[#allocation2 + $0xcc] sm:$0xf] %vm293, 0
      %347 = vst.msk [vmem:[#allocation2 + $0xd0] sm:$0xf] %vm293, 0
      %348 = vst.msk [vmem:[#allocation2 + $0xd4] sm:$0x1] %vm296, 0
      %vm349 = vsmask.f32 256
      %vm350 = vsmask.f32 4368
      %vm351 = vmor %vm349, %vm350
      %v353 = vshrl.u32 %v249, 16
      %v355 = vrot.slane %v353, 7
      %v356 = vshll.u32 %v249, 16
      %v358 = vor.u32 %v355, %v356
      %v359 = vrot.slane %v355, 4
      %v361 = vshrl.u32 %v250, 16
      %v363 = vrot.slane %v361, 7
      %v364 = vshll.u32 %v250, 16
      %v366 = vor.u32 %v363, %v364
      %v367 = vsel %vm351, %v359, %v366
      %v368 = vrot.slane %v363, 4
      %v370 = vshrl.u32 %v251, 16
      %v372 = vrot.slane %v370, 7
      %v373 = vshll.u32 %v251, 16
      %v375 = vor.u32 %v372, %v373
      %v376 = vrot.slane %v372, 4
      %v378 = vshrl.u32 %v252, 16
      %v380 = vrot.slane %v378, 7
      %v381 = vshll.u32 %v252, 16
      %v383 = vor.u32 %v380, %v381
      %v384 = vsel %vm351, %v376, %v383
      %v385 = vrot.slane %v380, 4
      %v387 = vshrl.u32 %v253, 16
      %v389 = vrot.slane %v387, 7
      %v390 = vshll.u32 %v253, 16
      %v392 = vor.u32 %v389, %v390
      %v393 = vrot.slane %v389, 4
      %v395 = vshrl.u32 %v254, 16
      %v397 = vrot.slane %v395, 7
      %v398 = vshll.u32 %v254, 16
      %v400 = vor.u32 %v397, %v398
      %v401 = vsel %vm351, %v393, %v400
      %v402 = vrot.slane %v397, 4
      %v404 = vshrl.u32 %v255, 16
      %v406 = vrot.slane %v404, 7
      %v407 = vshll.u32 %v255, 16
      %v409 = vor.u32 %v406, %v407
      %v410 = vrot.slane %v406, 4
      %v412 = vshrl.u32 %v256, 16
      %v414 = vrot.slane %v412, 7
      %v415 = vshll.u32 %v256, 16
      %v417 = vor.u32 %v414, %v415
      %v418 = vsel %vm351, %v410, %v417
      %v419 = vrot.slane %v414, 4
      %v421 = vshrl.u32 %v257, 16
      %v423 = vrot.slane %v421, 7
      %v424 = vshll.u32 %v257, 16
      %v426 = vor.u32 %v423, %v424
      %v427 = vrot.slane %v423, 4
      %v429 = vshrl.u32 %v258, 16
      %v431 = vrot.slane %v429, 7
      %v432 = vshll.u32 %v258, 16
      %v434 = vor.u32 %v431, %v432
      %v435 = vsel %vm351, %v427, %v434
      %v436 = vrot.slane %v431, 4
      %v438 = vshrl.u32 %v259, 16
      %v440 = vrot.slane %v438, 7
      %v441 = vshll.u32 %v259, 16
      %v443 = vor.u32 %v440, %v441
      %v444 = vrot.slane %v440, 4
      %v446 = vshrl.u32 %v260, 16
      %v448 = vrot.slane %v446, 7
      %v449 = vshll.u32 %v260, 16
      %v451 = vor.u32 %v448, %v449
      %v452 = vsel %vm351, %v444, %v451
      %v453 = vrot.slane %v448, 4
      %v455 = vshrl.u32 %v261, 16
      %v457 = vrot.slane %v455, 7
      %v458 = vshll.u32 %v261, 16
      %v460 = vor.u32 %v457, %v458
      %v461 = vrot.slane %v457, 4
      %v463 = vshrl.u32 %v262, 16
      %v465 = vrot.slane %v463, 7
      %v466 = vshll.u32 %v262, 16
      %v468 = vor.u32 %v465, %v466
      %v469 = vsel %vm351, %v461, %v468
      %v470 = vrot.slane %v465, 4
      %v472 = vshrl.u32 %v263, 16
      %v474 = vrot.slane %v472, 7
      %v475 = vshll.u32 %v263, 16
      %v477 = vor.u32 %v474, %v475
      %v478 = vrot.slane %v474, 4
      %v480 = vshrl.u32 %v264, 16
      %v482 = vrot.slane %v480, 7
      %v483 = vshll.u32 %v264, 16
      %v485 = vor.u32 %v482, %v483
      %v486 = vsel %vm351, %v478, %v485
      %v487 = vrot.slane %v482, 4
      %s512 = scalar_lea.vmem [#allocation2], 12
      %vm513 = vcmask 27648
      %vm514 = vsmask.f32 7938
      %vm515 = vmand %vm513, %vm514
      %v516 = vld [vmem:[%s512] sm:$0xf]
      %v517 = vsel %vm515, %v358, %v516
      %518 = vst [vmem:[%s512] sm:$0xf] %v517
      %519 = vst.msk [vmem:[%s512 + $0x4] sm:$0xf] %vm293, %v367
      %vm520 = vcmask 24576
      %vm521 = vmand %vm520, %vm349
      %v522 = vld [vmem:[%s512 + $0x8] sm:$0x1]
      %v523 = vsel %vm521, %v368, %v522
      %524 = vst [vmem:[%s512 + $0x8] sm:$0x1] %v523
      %v525 = vld [vmem:[%s512 + $0xc] sm:$0xf]
      %v526 = vsel %vm515, %v358, %v525
      %527 = vst [vmem:[%s512 + $0xc] sm:$0xf] %v526
      %528 = vst.msk [vmem:[%s512 + $0x10] sm:$0xf] %vm293, %v367
      %v529 = vld [vmem:[%s512 + $0x14] sm:$0x1]
      %v530 = vsel %vm521, %v368, %v529
      %531 = vst [vmem:[%s512 + $0x14] sm:$0x1] %v530
      %v532 = vld [vmem:[%s512 + $0x18] sm:$0xf]
      %v533 = vsel %vm515, %v375, %v532
      %534 = vst [vmem:[%s512 + $0x18] sm:$0xf] %v533
      %535 = vst.msk [vmem:[%s512 + $0x1c] sm:$0xf] %vm293, %v384
      %v536 = vld [vmem:[%s512 + $0x20] sm:$0x1]
      %v537 = vsel %vm521, %v385, %v536
      %538 = vst [vmem:[%s512 + $0x20] sm:$0x1] %v537
      %v539 = vld [vmem:[%s512 + $0x24] sm:$0xf]
      %v540 = vsel %vm515, %v375, %v539
      %541 = vst [vmem:[%s512 + $0x24] sm:$0xf] %v540
      %542 = vst.msk [vmem:[%s512 + $0x28] sm:$0xf] %vm293, %v384
      %v543 = vld [vmem:[%s512 + $0x2c] sm:$0x1]
      %v544 = vsel %vm521, %v385, %v543
      %545 = vst [vmem:[%s512 + $0x2c] sm:$0x1] %v544
      %v546 = vld [vmem:[%s512 + $0x30] sm:$0xf]
      %v547 = vsel %vm515, %v392, %v546
      %548 = vst [vmem:[%s512 + $0x30] sm:$0xf] %v547
      %549 = vst.msk [vmem:[%s512 + $0x34] sm:$0xf] %vm293, %v401
      %v550 = vld [vmem:[%s512 + $0x38] sm:$0x1]
      %v551 = vsel %vm521, %v402, %v550
      %552 = vst [vmem:[%s512 + $0x38] sm:$0x1] %v551
      %v553 = vld [vmem:[%s512 + $0x3c] sm:$0xf]
      %v554 = vsel %vm515, %v392, %v553
      %555 = vst [vmem:[%s512 + $0x3c] sm:$0xf] %v554
      %556 = vst.msk [vmem:[%s512 + $0x40] sm:$0xf] %vm293, %v401
      %v557 = vld [vmem:[%s512 + $0x44] sm:$0x1]
      %v558 = vsel %vm521, %v402, %v557
      %559 = vst [vmem:[%s512 + $0x44] sm:$0x1] %v558
      %v560 = vld [vmem:[%s512 + $0x48] sm:$0xf]
      %v561 = vsel %vm515, %v409, %v560
      %562 = vst [vmem:[%s512 + $0x48] sm:$0xf] %v561
      %563 = vst.msk [vmem:[%s512 + $0x4c] sm:$0xf] %vm293, %v418
      %v564 = vld [vmem:[%s512 + $0x50] sm:$0x1]
      %v565 = vsel %vm521, %v419, %v564
      %566 = vst [vmem:[%s512 + $0x50] sm:$0x1] %v565
      %v567 = vld [vmem:[%s512 + $0x54] sm:$0xf]
      %v568 = vsel %vm515, %v409, %v567
      %569 = vst [vmem:[%s512 + $0x54] sm:$0xf] %v568
      %570 = vst.msk [vmem:[%s512 + $0x58] sm:$0xf] %vm293, %v418
      %v571 = vld [vmem:[%s512 + $0x5c] sm:$0x1]
      %v572 = vsel %vm521, %v419, %v571
      %573 = vst [vmem:[%s512 + $0x5c] sm:$0x1] %v572
      %v574 = vld [vmem:[%s512 + $0x60] sm:$0xf]
      %v575 = vsel %vm515, %v426, %v574
      %576 = vst [vmem:[%s512 + $0x60] sm:$0xf] %v575
      %577 = vst.msk [vmem:[%s512 + $0x64] sm:$0xf] %vm293, %v435
      %v578 = vld [vmem:[%s512 + $0x68] sm:$0x1]
      %v579 = vsel %vm521, %v436, %v578
      %580 = vst [vmem:[%s512 + $0x68] sm:$0x1] %v579
      %v581 = vld [vmem:[%s512 + $0x6c] sm:$0xf]
      %v582 = vsel %vm515, %v426, %v581
      %583 = vst [vmem:[%s512 + $0x6c] sm:$0xf] %v582
      %584 = vst.msk [vmem:[%s512 + $0x70] sm:$0xf] %vm293, %v435
      %v585 = vld [vmem:[%s512 + $0x74] sm:$0x1]
      %v586 = vsel %vm521, %v436, %v585
      %587 = vst [vmem:[%s512 + $0x74] sm:$0x1] %v586
      %v588 = vld [vmem:[%s512 + $0x78] sm:$0xf]
      %v589 = vsel %vm515, %v443, %v588
      %590 = vst [vmem:[%s512 + $0x78] sm:$0xf] %v589
      %591 = vst.msk [vmem:[%s512 + $0x7c] sm:$0xf] %vm293, %v452
      %v592 = vld [vmem:[%s512 + $0x80] sm:$0x1]
      %v593 = vsel %vm521, %v453, %v592
      %594 = vst [vmem:[%s512 + $0x80] sm:$0x1] %v593
      %v595 = vld [vmem:[%s512 + $0x84] sm:$0xf]
      %v596 = vsel %vm515, %v443, %v595
      %597 = vst [vmem:[%s512 + $0x84] sm:$0xf] %v596
      %598 = vst.msk [vmem:[%s512 + $0x88] sm:$0xf] %vm293, %v452
      %v599 = vld [vmem:[%s512 + $0x8c] sm:$0x1]
      %v600 = vsel %vm521, %v453, %v599
      %601 = vst [vmem:[%s512 + $0x8c] sm:$0x1] %v600
      %v602 = vld [vmem:[%s512 + $0x90] sm:$0xf]
      %v603 = vsel %vm515, %v460, %v602
      %604 = vst [vmem:[%s512 + $0x90] sm:$0xf] %v603
      %605 = vst.msk [vmem:[%s512 + $0x94] sm:$0xf] %vm293, %v469
      %v606 = vld [vmem:[%s512 + $0x98] sm:$0x1]
      %v607 = vsel %vm521, %v470, %v606
      %608 = vst [vmem:[%s512 + $0x98] sm:$0x1] %v607
      %v609 = vld [vmem:[%s512 + $0x9c] sm:$0xf]
      %v610 = vsel %vm515, %v460, %v609
      %611 = vst [vmem:[%s512 + $0x9c] sm:$0xf] %v610
      %612 = vst.msk [vmem:[%s512 + $0xa0] sm:$0xf] %vm293, %v469
      %v613 = vld [vmem:[%s512 + $0xa4] sm:$0x1]
      %v614 = vsel %vm521, %v470, %v613
      %615 = vst [vmem:[%s512 + $0xa4] sm:$0x1] %v614
      %v616 = vld [vmem:[%s512 + $0xa8] sm:$0xf]
      %v617 = vsel %vm515, %v477, %v616
      %618 = vst [vmem:[%s512 + $0xa8] sm:$0xf] %v617
      %619 = vst.msk [vmem:[%s512 + $0xac] sm:$0xf] %vm293, %v486
      %v620 = vld [vmem:[%s512 + $0xb0] sm:$0x1]
      %v621 = vsel %vm521, %v487, %v620
      %622 = vst [vmem:[%s512 + $0xb0] sm:$0x1] %v621
      %v623 = vld [vmem:[%s512 + $0xb4] sm:$0xf]
      %v624 = vsel %vm515, %v477, %v623
      %625 = vst [vmem:[%s512 + $0xb4] sm:$0xf] %v624
      %626 = vst.msk [vmem:[%s512 + $0xb8] sm:$0xf] %vm293, %v486
      %v627 = vld [vmem:[%s512 + $0xbc] sm:$0x1]
      %v628 = vsel %vm521, %v487, %v627
      %629 = vst [vmem:[%s512 + $0xbc] sm:$0x1] %v628
      %v631 = vshrl.u32 %v277, 16
      %v633 = vrot.slane %v631, 7
      %v634 = vshll.u32 %v277, 16
      %v636 = vor.u32 %v633, %v634
      %v637 = vrot.slane %v633, 4
      %v639 = vshrl.u32 %v278, 16
      %v641 = vrot.slane %v639, 7
      %v642 = vshll.u32 %v278, 16
      %v644 = vor.u32 %v641, %v642
      %v645 = vsel %vm351, %v637, %v644
      %v646 = vrot.slane %v641, 4
      %v650 = vld [vmem:[#allocation2] sm:$0xf]
      %v651 = vsel %vm515, %v636, %v650
      %652 = vst [vmem:[#allocation2] sm:$0xf] %v651
      %653 = vst.msk [vmem:[#allocation2 + $0x4] sm:$0xf] %vm293, %v645
      %v654 = vld [vmem:[#allocation2 + $0x8] sm:$0x1]
      %v655 = vsel %vm521, %v646, %v654
      %656 = vst [vmem:[#allocation2 + $0x8] sm:$0x1] %v655
      %v658 = vshrl.u32 %v291, 16
      %v660 = vrot.slane %v658, 7
      %v661 = vshll.u32 %v291, 16
      %v663 = vor.u32 %v660, %v661
      %v664 = vrot.slane %v660, 4
      %v666 = vshrl.u32 %v292, 16
      %v668 = vrot.slane %v666, 7
      %v669 = vshll.u32 %v292, 16
      %v671 = vor.u32 %v668, %v669
      %v672 = vsel %vm351, %v664, %v671
      %v673 = vrot.slane %v668, 4
      %s677 = scalar_lea.vmem [#allocation2], 204
      %v678 = vld [vmem:[%s677] sm:$0xf]
      %v679 = vsel %vm515, %v663, %v678
      %680 = vst [vmem:[%s677] sm:$0xf] %v679
      %681 = vst.msk [vmem:[%s677 + $0x4] sm:$0xf] %vm293, %v672
      %v682 = vld [vmem:[%s677 + $0x8] sm:$0x1]
      %v683 = vsel %vm521, %v673, %v682
      %684 = vst [vmem:[%s677 + $0x8] sm:$0x1] %v683
      %v685 = vld [vmem:[#allocation2] sm:$0xf]
      %v686 = vld [vmem:[#allocation2 + $0x4] sm:$0xf]
      %v687 = vld [vmem:[#allocation2 + $0x8] sm:$0x1]
      %v688 = vld [vmem:[#allocation2 + $0xc] sm:$0xf]
      %v689 = vld [vmem:[#allocation2 + $0x10] sm:$0xf]
      %v690 = vld [vmem:[#allocation2 + $0x14] sm:$0x1]
      %v691 = vld [vmem:[#allocation2 + $0x18] sm:$0xf]
      %v692 = vld [vmem:[#allocation2 + $0x1c] sm:$0xf]
      %v693 = vld [vmem:[#allocation2 + $0x20] sm:$0x1]
      %v694 = vld [vmem:[#allocation2 + $0x24] sm:$0xf]
      %v695 = vld [vmem:[#allocation2 + $0x28] sm:$0xf]
      %v696 = vld [vmem:[#allocation2 + $0x2c] sm:$0x1]
      %v697 = vld [vmem:[#allocation2 + $0x30] sm:$0xf]
      %v698 = vld [vmem:[#allocation2 + $0x34] sm:$0xf]
      %v699 = vld [vmem:[#allocation2 + $0x38] sm:$0x1]
      %v700 = vld [vmem:[#allocation2 + $0x3c] sm:$0xf]
      %v701 = vld [vmem:[#allocation2 + $0x40] sm:$0xf]
      %v702 = vld [vmem:[#allocation2 + $0x44] sm:$0x1]
      %v703 = vld [vmem:[#allocation2 + $0x48] sm:$0xf]
      %v704 = vld [vmem:[#allocation2 + $0x4c] sm:$0xf]
      %v705 = vld [vmem:[#allocation2 + $0x50] sm:$0x1]
      %v706 = vld [vmem:[#allocation2 + $0x54] sm:$0xf]
      %v707 = vld [vmem:[#allocation2 + $0x58] sm:$0xf]
      %v708 = vld [vmem:[#allocation2 + $0x5c] sm:$0x1]
      %v709 = vld [vmem:[#allocation2 + $0x60] sm:$0xf]
      %v710 = vld [vmem:[#allocation2 + $0x64] sm:$0xf]
      %v711 = vld [vmem:[#allocation2 + $0x68] sm:$0x1]
      %v712 = vld [vmem:[#allocation2 + $0x6c] sm:$0xf]
      %v713 = vld [vmem:[#allocation2 + $0x70] sm:$0xf]
      %v714 = vld [vmem:[#allocation2 + $0x74] sm:$0x1]
      %v715 = vld [vmem:[#allocation2 + $0x78] sm:$0xf]
      %v716 = vld [vmem:[#allocation2 + $0x7c] sm:$0xf]
      %v717 = vld [vmem:[#allocation2 + $0x80] sm:$0x1]
      %v718 = vld [vmem:[#allocation2 + $0x84] sm:$0xf]
      %v719 = vld [vmem:[#allocation2 + $0x88] sm:$0xf]
      %v720 = vld [vmem:[#allocation2 + $0x8c] sm:$0x1]
      %v721 = vld [vmem:[#allocation2 + $0x90] sm:$0xf]
      %v722 = vld [vmem:[#allocation2 + $0x94] sm:$0xf]
      %v723 = vld [vmem:[#allocation2 + $0x98] sm:$0x1]
      %v724 = vld [vmem:[#allocation2 + $0x9c] sm:$0xf]
      %v725 = vld [vmem:[#allocation2 + $0xa0] sm:$0xf]
      %v726 = vld [vmem:[#allocation2 + $0xa4] sm:$0x1]
      %v727 = vld [vmem:[#allocation2 + $0xa8] sm:$0xf]
      %v728 = vld [vmem:[#allocation2 + $0xac] sm:$0xf]
      %v729 = vld [vmem:[#allocation2 + $0xb0] sm:$0x1]
      %v730 = vld [vmem:[#allocation2 + $0xb4] sm:$0xf]
      %v731 = vld [vmem:[#allocation2 + $0xb8] sm:$0xf]
      %v732 = vld [vmem:[#allocation2 + $0xbc] sm:$0x1]
      %v733 = vld [vmem:[#allocation2 + $0xc0] sm:$0xf]
      %v734 = vld [vmem:[#allocation2 + $0xc4] sm:$0xf]
      %v735 = vld [vmem:[#allocation2 + $0xc8] sm:$0x1]
      %v736 = vld [vmem:[#allocation2 + $0xcc] sm:$0xf]
      %v737 = vld [vmem:[#allocation2 + $0xd0] sm:$0xf]
      %v738 = vld [vmem:[#allocation2 + $0xd4] sm:$0x1]
      %v739 = vld [vmem:[%s1] sm:$0x3]
      %v740 = vld [vmem:[%s1 + $0x2] sm:$0x3]
      %v741 = vld [vmem:[%s1 + $0x4] sm:$0x3]
      %v742 = vld [vmem:[%s1 + $0x6] sm:$0x3]
      %v743 = vld [vmem:[%s1 + $0x8] sm:$0x3]
      %v744 = vld [vmem:[%s1 + $0xa] sm:$0x3]
      %v745 = vld [vmem:[%s1 + $0xc] sm:$0x3]
      %v746 = vld [vmem:[%s1 + $0xe] sm:$0x3]
      %v747 = vld [vmem:[%s1 + $0x10] sm:$0x3]
      %v748 = vld [vmem:[%s1 + $0x12] sm:$0x3]
      %v749 = vld [vmem:[%s1 + $0x14] sm:$0x3]
      %v750 = vld [vmem:[%s1 + $0x16] sm:$0x3]
      %vm751 = vsmask.f32 3328
      %vm752 = vsmask.f32 7440
      %vm753 = vmor %vm751, %vm752
      %v755 = vshrl.u32 %v685, 16
      %v757 = vrot.slane %v755, 4
      %v758 = vshll.u32 %v685, 16
      %v760 = vrot.slane %v758, 5
      %v761 = vor.u32 %v757, %v760
      %v762 = vrot.slane %v761, 4
      %v764 = vshll.u32 %v686, 16
      %v766 = vrot.slane %v764, 5
      %v767 = vsel %vm753, %v762, %v766
      %v768 = vshrl.u32 %v686, 16
      %v770 = vrot.slane %v768, 4
      %v771 = vor.u32 %v770, %v766
      %v772 = vrot.slane %v771, 4
      %v774 = vshll.u32 %v687, 16
      %v776 = vrot.slane %v774, 5
      %v777 = vsel %vm753, %v772, %v776
      %v779 = vshrl.u32 %v688, 16
      %v781 = vrot.slane %v779, 4
      %v782 = vshll.u32 %v688, 16
      %v784 = vrot.slane %v782, 5
      %v785 = vor.u32 %v781, %v784
      %v786 = vrot.slane %v785, 4
      %v788 = vshll.u32 %v689, 16
      %v790 = vrot.slane %v788, 5
      %v791 = vsel %vm753, %v786, %v790
      %v792 = vshrl.u32 %v689, 16
      %v794 = vrot.slane %v792, 4
      %v795 = vor.u32 %v794, %v790
      %v796 = vrot.slane %v795, 4
      %v798 = vshll.u32 %v690, 16
      %v800 = vrot.slane %v798, 5
      %v801 = vsel %vm753, %v796, %v800
      %v803 = vshrl.u32 %v691, 16
      %v805 = vrot.slane %v803, 4
      %v806 = vshll.u32 %v691, 16
      %v808 = vrot.slane %v806, 5
      %v809 = vor.u32 %v805, %v808
      %v810 = vrot.slane %v809, 4
      %v812 = vshll.u32 %v692, 16
      %v814 = vrot.slane %v812, 5
      %v815 = vsel %vm753, %v810, %v814
      %v816 = vshrl.u32 %v692, 16
      %v818 = vrot.slane %v816, 4
      %v819 = vor.u32 %v818, %v814
      %v820 = vrot.slane %v819, 4
      %v822 = vshll.u32 %v693, 16
      %v824 = vrot.slane %v822, 5
      %v825 = vsel %vm753, %v820, %v824
      %v827 = vshrl.u32 %v694, 16
      %v829 = vrot.slane %v827, 4
      %v830 = vshll.u32 %v694, 16
      %v832 = vrot.slane %v830, 5
      %v833 = vor.u32 %v829, %v832
      %v834 = vrot.slane %v833, 4
      %v836 = vshll.u32 %v695, 16
      %v838 = vrot.slane %v836, 5
      %v839 = vsel %vm753, %v834, %v838
      %v840 = vshrl.u32 %v695, 16
      %v842 = vrot.slane %v840, 4
      %v843 = vor.u32 %v842, %v838
      %v844 = vrot.slane %v843, 4
      %v846 = vshll.u32 %v696, 16
      %v848 = vrot.slane %v846, 5
      %v849 = vsel %vm753, %v844, %v848
      %v851 = vshrl.u32 %v697, 16
      %v853 = vrot.slane %v851, 4
      %v854 = vshll.u32 %v697, 16
      %v856 = vrot.slane %v854, 5
      %v857 = vor.u32 %v853, %v856
      %v858 = vrot.slane %v857, 4
      %v860 = vshll.u32 %v698, 16
      %v862 = vrot.slane %v860, 5
      %v863 = vsel %vm753, %v858, %v862
      %v864 = vshrl.u32 %v698, 16
      %v866 = vrot.slane %v864, 4
      %v867 = vor.u32 %v866, %v862
      %v868 = vrot.slane %v867, 4
      %v870 = vshll.u32 %v699, 16
      %v872 = vrot.slane %v870, 5
      %v873 = vsel %vm753, %v868, %v872
      %v875 = vshrl.u32 %v700, 16
      %v877 = vrot.slane %v875, 4
      %v878 = vshll.u32 %v700, 16
      %v880 = vrot.slane %v878, 5
      %v881 = vor.u32 %v877, %v880
      %v882 = vrot.slane %v881, 4
      %v884 = vshll.u32 %v701, 16
      %v886 = vrot.slane %v884, 5
      %v887 = vsel %vm753, %v882, %v886
      %v888 = vshrl.u32 %v701, 16
      %v890 = vrot.slane %v888, 4
      %v891 = vor.u32 %v890, %v886
      %v892 = vrot.slane %v891, 4
      %v894 = vshll.u32 %v702, 16
      %v896 = vrot.slane %v894, 5
      %v897 = vsel %vm753, %v892, %v896
      %v899 = vshrl.u32 %v703, 16
      %v901 = vrot.slane %v899, 4
      %v902 = vshll.u32 %v703, 16
      %v904 = vrot.slane %v902, 5
      %v905 = vor.u32 %v901, %v904
      %v906 = vrot.slane %v905, 4
      %v908 = vshll.u32 %v704, 16
      %v910 = vrot.slane %v908, 5
      %v911 = vsel %vm753, %v906, %v910
      %v912 = vshrl.u32 %v704, 16
      %v914 = vrot.slane %v912, 4
      %v915 = vor.u32 %v914, %v910
      %v916 = vrot.slane %v915, 4
      %v918 = vshll.u32 %v705, 16
      %v920 = vrot.slane %v918, 5
      %v921 = vsel %vm753, %v916, %v920
      %v923 = vshrl.u32 %v706, 16
      %v925 = vrot.slane %v923, 4
      %v926 = vshll.u32 %v706, 16
      %v928 = vrot.slane %v926, 5
      %v929 = vor.u32 %v925, %v928
      %v930 = vrot.slane %v929, 4
      %v932 = vshll.u32 %v707, 16
      %v934 = vrot.slane %v932, 5
      %v935 = vsel %vm753, %v930, %v934
      %v936 = vshrl.u32 %v707, 16
      %v938 = vrot.slane %v936, 4
      %v939 = vor.u32 %v938, %v934
      %v940 = vrot.slane %v939, 4
      %v942 = vshll.u32 %v708, 16
      %v944 = vrot.slane %v942, 5
      %v945 = vsel %vm753, %v940, %v944
      %v947 = vshrl.u32 %v709, 16
      %v949 = vrot.slane %v947, 4
      %v950 = vshll.u32 %v709, 16
      %v952 = vrot.slane %v950, 5
      %v953 = vor.u32 %v949, %v952
      %v954 = vrot.slane %v953, 4
      %v956 = vshll.u32 %v710, 16
      %v958 = vrot.slane %v956, 5
      %v959 = vsel %vm753, %v954, %v958
      %v960 = vshrl.u32 %v710, 16
      %v962 = vrot.slane %v960, 4
      %v963 = vor.u32 %v962, %v958
      %v964 = vrot.slane %v963, 4
      %v966 = vshll.u32 %v711, 16
      %v968 = vrot.slane %v966, 5
      %v969 = vsel %vm753, %v964, %v968
      %v971 = vshrl.u32 %v712, 16
      %v973 = vrot.slane %v971, 4
      %v974 = vshll.u32 %v712, 16
      %v976 = vrot.slane %v974, 5
      %v977 = vor.u32 %v973, %v976
      %v978 = vrot.slane %v977, 4
      %v980 = vshll.u32 %v713, 16
      %v982 = vrot.slane %v980, 5
      %v983 = vsel %vm753, %v978, %v982
      %v984 = vshrl.u32 %v713, 16
      %v986 = vrot.slane %v984, 4
      %v987 = vor.u32 %v986, %v982
      %v988 = vrot.slane %v987, 4
      %v990 = vshll.u32 %v714, 16
      %v992 = vrot.slane %v990, 5
      %v993 = vsel %vm753, %v988, %v992
      %v995 = vshrl.u32 %v715, 16
      %v997 = vrot.slane %v995, 4
      %v998 = vshll.u32 %v715, 16
      %v1000 = vrot.slane %v998, 5
      %v1001 = vor.u32 %v997, %v1000
      %v1002 = vrot.slane %v1001, 4
      %v1004 = vshll.u32 %v716, 16
      %v1006 = vrot.slane %v1004, 5
      %v1007 = vsel %vm753, %v1002, %v1006
      %v1008 = vshrl.u32 %v716, 16
      %v1010 = vrot.slane %v1008, 4
      %v1011 = vor.u32 %v1010, %v1006
      %v1012 = vrot.slane %v1011, 4
      %v1014 = vshll.u32 %v717, 16
      %v1016 = vrot.slane %v1014, 5
      %v1017 = vsel %vm753, %v1012, %v1016
      %v1019 = vshrl.u32 %v718, 16
      %v1021 = vrot.slane %v1019, 4
      %v1022 = vshll.u32 %v718, 16
      %v1024 = vrot.slane %v1022, 5
      %v1025 = vor.u32 %v1021, %v1024
      %v1026 = vrot.slane %v1025, 4
      %v1028 = vshll.u32 %v719, 16
      %v1030 = vrot.slane %v1028, 5
      %v1031 = vsel %vm753, %v1026, %v1030
      %v1032 = vshrl.u32 %v719, 16
      %v1034 = vrot.slane %v1032, 4
      %v1035 = vor.u32 %v1034, %v1030
      %v1036 = vrot.slane %v1035, 4
      %v1038 = vshll.u32 %v720, 16
      %v1040 = vrot.slane %v1038, 5
      %v1041 = vsel %vm753, %v1036, %v1040
      %v1043 = vshrl.u32 %v721, 16
      %v1045 = vrot.slane %v1043, 4
      %v1046 = vshll.u32 %v721, 16
      %v1048 = vrot.slane %v1046, 5
      %v1049 = vor.u32 %v1045, %v1048
      %v1050 = vrot.slane %v1049, 4
      %v1052 = vshll.u32 %v722, 16
      %v1054 = vrot.slane %v1052, 5
      %v1055 = vsel %vm753, %v1050, %v1054
      %v1056 = vshrl.u32 %v722, 16
      %v1058 = vrot.slane %v1056, 4
      %v1059 = vor.u32 %v1058, %v1054
      %v1060 = vrot.slane %v1059, 4
      %v1062 = vshll.u32 %v723, 16
      %v1064 = vrot.slane %v1062, 5
      %v1065 = vsel %vm753, %v1060, %v1064
      %v1067 = vshrl.u32 %v724, 16
      %v1069 = vrot.slane %v1067, 4
      %v1070 = vshll.u32 %v724, 16
      %v1072 = vrot.slane %v1070, 5
      %v1073 = vor.u32 %v1069, %v1072
      %v1074 = vrot.slane %v1073, 4
      %v1076 = vshll.u32 %v725, 16
      %v1078 = vrot.slane %v1076, 5
      %v1079 = vsel %vm753, %v1074, %v1078
      %v1080 = vshrl.u32 %v725, 16
      %v1082 = vrot.slane %v1080, 4
      %v1083 = vor.u32 %v1082, %v1078
      %v1084 = vrot.slane %v1083, 4
      %v1086 = vshll.u32 %v726, 16
      %v1088 = vrot.slane %v1086, 5
      %v1089 = vsel %vm753, %v1084, %v1088
      %v1091 = vshrl.u32 %v727, 16
      %v1093 = vrot.slane %v1091, 4
      %v1094 = vshll.u32 %v727, 16
      %v1096 = vrot.slane %v1094, 5
      %v1097 = vor.u32 %v1093, %v1096
      %v1098 = vrot.slane %v1097, 4
      %v1100 = vshll.u32 %v728, 16
      %v1102 = vrot.slane %v1100, 5
      %v1103 = vsel %vm753, %v1098, %v1102
      %v1104 = vshrl.u32 %v728, 16
      %v1106 = vrot.slane %v1104, 4
      %v1107 = vor.u32 %v1106, %v1102
      %v1108 = vrot.slane %v1107, 4
      %v1110 = vshll.u32 %v729, 16
      %v1112 = vrot.slane %v1110, 5
      %v1113 = vsel %vm753, %v1108, %v1112
      %v1115 = vshrl.u32 %v730, 16
      %v1117 = vrot.slane %v1115, 4
      %v1118 = vshll.u32 %v730, 16
      %v1120 = vrot.slane %v1118, 5
      %v1121 = vor.u32 %v1117, %v1120
      %v1122 = vrot.slane %v1121, 4
      %v1124 = vshll.u32 %v731, 16
      %v1126 = vrot.slane %v1124, 5
      %v1127 = vsel %vm753, %v1122, %v1126
      %v1128 = vshrl.u32 %v731, 16
      %v1130 = vrot.slane %v1128, 4
      %v1131 = vor.u32 %v1130, %v1126
      %v1132 = vrot.slane %v1131, 4
      %v1134 = vshll.u32 %v732, 16
      %v1136 = vrot.slane %v1134, 5
      %v1137 = vsel %vm753, %v1132, %v1136
      %v1138 = vunpack.c.l.b16 %v767
      %v1139 = vunpack.c.l.b16 %v777
      %v1140 = vunpack.c.l.b16 %v791
      %v1141 = vunpack.c.l.b16 %v801
      %v1142 = vunpack.c.l.b16 %v815
      %v1143 = vunpack.c.l.b16 %v825
      %v1144 = vunpack.c.l.b16 %v839
      %v1145 = vunpack.c.l.b16 %v849
      %v1146 = vunpack.c.l.b16 %v863
      %v1147 = vunpack.c.l.b16 %v873
      %v1148 = vunpack.c.l.b16 %v887
      %v1149 = vunpack.c.l.b16 %v897
      %v1150 = vunpack.c.l.b16 %v911
      %v1151 = vunpack.c.l.b16 %v921
      %v1152 = vunpack.c.l.b16 %v935
      %v1153 = vunpack.c.l.b16 %v945
      %v1154 = vunpack.c.l.b16 %v959
      %v1155 = vunpack.c.l.b16 %v969
      %v1156 = vunpack.c.l.b16 %v983
      %v1157 = vunpack.c.l.b16 %v993
      %v1158 = vunpack.c.l.b16 %v1007
      %v1159 = vunpack.c.l.b16 %v1017
      %v1160 = vunpack.c.l.b16 %v1031
      %v1161 = vunpack.c.l.b16 %v1041
      %v1162 = vunpack.c.l.b16 %v1055
      %v1163 = vunpack.c.l.b16 %v1065
      %v1164 = vunpack.c.l.b16 %v1079
      %v1165 = vunpack.c.l.b16 %v1089
      %v1166 = vunpack.c.l.b16 %v1103
      %v1167 = vunpack.c.l.b16 %v1113
      %v1168 = vunpack.c.l.b16 %v1127
      %v1169 = vunpack.c.l.b16 %v1137
      %v1170 = vpack.c.b16 %v1139, %v1138
      %v1171 = vpack.c.b16 %v1141, %v1140
      %v1172 = vpack.c.b16 %v1143, %v1142
      %v1173 = vpack.c.b16 %v1145, %v1144
      %v1174 = vpack.c.b16 %v1147, %v1146
      %v1175 = vpack.c.b16 %v1149, %v1148
      %v1176 = vpack.c.b16 %v1151, %v1150
      %v1177 = vpack.c.b16 %v1153, %v1152
      %v1178 = vpack.c.b16 %v1155, %v1154
      %v1179 = vpack.c.b16 %v1157, %v1156
      %v1180 = vpack.c.b16 %v1159, %v1158
      %v1181 = vpack.c.b16 %v1161, %v1160
      %v1182 = vpack.c.b16 %v1163, %v1162
      %v1183 = vpack.c.b16 %v1165, %v1164
      %v1184 = vpack.c.b16 %v1167, %v1166
      %v1185 = vpack.c.b16 %v1169, %v1168
      %vm1186 = vcmask 31744
      %v1188 = vsel %vm1186, %v1170, 0
      %v1191 = vsel %vm1186, %v1171, 0
      %v1194 = vsel %vm1186, %v1172, 0
      %v1197 = vsel %vm1186, %v1173, 0
      %v1200 = vsel %vm1186, %v1174, 0
      %v1203 = vsel %vm1186, %v1175, 0
      %v1206 = vsel %vm1186, %v1176, 0
      %v1209 = vsel %vm1186, %v1177, 0
      %v1212 = vsel %vm1186, %v1178, 0
      %v1215 = vsel %vm1186, %v1179, 0
      %v1218 = vsel %vm1186, %v1180, 0
      %v1221 = vsel %vm1186, %v1181, 0
      %v1224 = vsel %vm1186, %v1182, 0
      %v1227 = vsel %vm1186, %v1183, 0
      %v1230 = vsel %vm1186, %v1184, 0
      %v1233 = vsel %vm1186, %v1185, 0
      %vm1235 = vcmask 1041408
      %v1237 = vsel %vm1235, %v740, 0
      %1239 = vmatpush.bf16.msra.mxu0 0
      %1240 = vmatpush.bf16.msra.mxu0 0
      %1241 = vmatpush.bf16.msra.mxu0 0
      %1242 = vmatpush.bf16.msra.mxu0 0
      %1243 = vmatpush.bf16.msra.mxu0 0
      %1244 = vmatpush.bf16.msra.mxu0 0
      %1245 = vmatpush.bf16.msra.mxu0 0
      %1246 = vmatpush.bf16.msra.mxu0 %v1237
      %1247 = vmatmul.bf16.gmra.mxu0 %v1188
      %v1248 = vpop.f32.mrf.mxu0
      %v1249 = vadd.f32 0.0, %v1248
      %v1250 = vpop.f32.mrf.mxu0
      %v1251 = vadd.f32 0.0, %v1250
      %1252 = vmatmul.bf16.gmra.mxu0 %v1191
      %v1253 = vpop.f32.mrf.mxu0
      %v1254 = vadd.f32 0.0, %v1253
      %v1255 = vpop.f32.mrf.mxu0
      %v1256 = vadd.f32 0.0, %v1255
      %1257 = vmatmul.bf16.gmra.mxu0 %v1194
      %v1258 = vpop.f32.mrf.mxu0
      %v1259 = vadd.f32 0.0, %v1258
      %v1260 = vpop.f32.mrf.mxu0
      %v1261 = vadd.f32 0.0, %v1260
      %1262 = vmatmul.bf16.gmra.mxu0 %v1197
      %v1263 = vpop.f32.mrf.mxu0
      %v1264 = vadd.f32 0.0, %v1263
      %v1265 = vpop.f32.mrf.mxu0
      %v1266 = vadd.f32 0.0, %v1265
      %1267 = vmatmul.bf16.gmra.mxu0 %v1200
      %v1268 = vpop.f32.mrf.mxu0
      %v1269 = vadd.f32 0.0, %v1268
      %v1270 = vpop.f32.mrf.mxu0
      %v1271 = vadd.f32 0.0, %v1270
      %1272 = vmatmul.bf16.gmra.mxu0 %v1203
      %v1273 = vpop.f32.mrf.mxu0
      %v1274 = vadd.f32 0.0, %v1273
      %v1275 = vpop.f32.mrf.mxu0
      %v1276 = vadd.f32 0.0, %v1275
      %1277 = vmatmul.bf16.gmra.mxu0 %v1206
      %v1278 = vpop.f32.mrf.mxu0
      %v1279 = vadd.f32 0.0, %v1278
      %v1280 = vpop.f32.mrf.mxu0
      %v1281 = vadd.f32 0.0, %v1280
      %1282 = vmatmul.bf16.gmra.mxu0 %v1209
      %v1283 = vpop.f32.mrf.mxu0
      %v1284 = vadd.f32 0.0, %v1283
      %v1285 = vpop.f32.mrf.mxu0
      %v1286 = vadd.f32 0.0, %v1285
      %1287 = vmatmul.bf16.gmra.mxu0 %v1212
      %v1288 = vpop.f32.mrf.mxu0
      %v1289 = vadd.f32 0.0, %v1288
      %v1290 = vpop.f32.mrf.mxu0
      %v1291 = vadd.f32 0.0, %v1290
      %1292 = vmatmul.bf16.gmra.mxu0 %v1215
      %v1293 = vpop.f32.mrf.mxu0
      %v1294 = vadd.f32 0.0, %v1293
      %v1295 = vpop.f32.mrf.mxu0
      %v1296 = vadd.f32 0.0, %v1295
      %1297 = vmatmul.bf16.gmra.mxu0 %v1218
      %v1298 = vpop.f32.mrf.mxu0
      %v1299 = vadd.f32 0.0, %v1298
      %v1300 = vpop.f32.mrf.mxu0
      %v1301 = vadd.f32 0.0, %v1300
      %1302 = vmatmul.bf16.gmra.mxu0 %v1221
      %v1303 = vpop.f32.mrf.mxu0
      %v1304 = vadd.f32 0.0, %v1303
      %v1305 = vpop.f32.mrf.mxu0
      %v1306 = vadd.f32 0.0, %v1305
      %1307 = vmatmul.bf16.gmra.mxu0 %v1224
      %v1308 = vpop.f32.mrf.mxu0
      %v1309 = vadd.f32 0.0, %v1308
      %v1310 = vpop.f32.mrf.mxu0
      %v1311 = vadd.f32 0.0, %v1310
      %1312 = vmatmul.bf16.gmra.mxu0 %v1227
      %v1313 = vpop.f32.mrf.mxu0
      %v1314 = vadd.f32 0.0, %v1313
      %v1315 = vpop.f32.mrf.mxu0
      %v1316 = vadd.f32 0.0, %v1315
      %1317 = vmatmul.bf16.gmra.mxu0 %v1230
      %v1318 = vpop.f32.mrf.mxu0
      %v1319 = vadd.f32 0.0, %v1318
      %v1320 = vpop.f32.mrf.mxu0
      %v1321 = vadd.f32 0.0, %v1320
      %1322 = vmatmul.bf16.gmra.mxu0 %v1233
      %v1323 = vpop.f32.mrf.mxu0
      %v1324 = vadd.f32 0.0, %v1323
      %v1325 = vpop.f32.mrf.mxu0
      %v1326 = vadd.f32 0.0, %v1325
      %1327 = vdwg.mxu0
      %v1360 = vunpack.c.l.b16 %v685
      %v1361 = vunpack.c.l.b16 %v686
      %v1362 = vunpack.c.l.b16 %v688
      %v1363 = vunpack.c.l.b16 %v689
      %v1364 = vunpack.c.l.b16 %v691
      %v1365 = vunpack.c.l.b16 %v692
      %v1366 = vunpack.c.l.b16 %v694
      %v1367 = vunpack.c.l.b16 %v695
      %v1368 = vunpack.c.l.b16 %v697
      %v1369 = vunpack.c.l.b16 %v698
      %v1370 = vunpack.c.l.b16 %v700
      %v1371 = vunpack.c.l.b16 %v701
      %v1372 = vunpack.c.l.b16 %v703
      %v1373 = vunpack.c.l.b16 %v704
      %v1374 = vunpack.c.l.b16 %v706
      %v1375 = vunpack.c.l.b16 %v707
      %v1376 = vunpack.c.l.b16 %v709
      %v1377 = vunpack.c.l.b16 %v710
      %v1378 = vunpack.c.l.b16 %v712
      %v1379 = vunpack.c.l.b16 %v713
      %v1380 = vunpack.c.l.b16 %v715
      %v1381 = vunpack.c.l.b16 %v716
      %v1382 = vunpack.c.l.b16 %v718
      %v1383 = vunpack.c.l.b16 %v719
      %v1384 = vunpack.c.l.b16 %v721
      %v1385 = vunpack.c.l.b16 %v722
      %v1386 = vunpack.c.l.b16 %v724
      %v1387 = vunpack.c.l.b16 %v725
      %v1388 = vunpack.c.l.b16 %v727
      %v1389 = vunpack.c.l.b16 %v728
      %v1390 = vunpack.c.l.b16 %v730
      %v1391 = vunpack.c.l.b16 %v731
      %v1392 = vpack.c.b16 %v1361, %v1360
      %v1393 = vpack.c.b16 %v1363, %v1362
      %v1394 = vpack.c.b16 %v1365, %v1364
      %v1395 = vpack.c.b16 %v1367, %v1366
      %v1396 = vpack.c.b16 %v1369, %v1368
      %v1397 = vpack.c.b16 %v1371, %v1370
      %v1398 = vpack.c.b16 %v1373, %v1372
      %v1399 = vpack.c.b16 %v1375, %v1374
      %v1400 = vpack.c.b16 %v1377, %v1376
      %v1401 = vpack.c.b16 %v1379, %v1378
      %v1402 = vpack.c.b16 %v1381, %v1380
      %v1403 = vpack.c.b16 %v1383, %v1382
      %v1404 = vpack.c.b16 %v1385, %v1384
      %v1405 = vpack.c.b16 %v1387, %v1386
      %v1406 = vpack.c.b16 %v1389, %v1388
      %v1407 = vpack.c.b16 %v1391, %v1390
      %v1409 = vsel %vm1186, %v1392, 0
      %v1412 = vsel %vm1186, %v1393, 0
      %v1415 = vsel %vm1186, %v1394, 0
      %v1418 = vsel %vm1186, %v1395, 0
      %v1421 = vsel %vm1186, %v1396, 0
      %v1424 = vsel %vm1186, %v1397, 0
      %v1427 = vsel %vm1186, %v1398, 0
      %v1430 = vsel %vm1186, %v1399, 0
      %v1433 = vsel %vm1186, %v1400, 0
      %v1436 = vsel %vm1186, %v1401, 0
      %v1439 = vsel %vm1186, %v1402, 0
      %v1442 = vsel %vm1186, %v1403, 0
      %v1445 = vsel %vm1186, %v1404, 0
      %v1448 = vsel %vm1186, %v1405, 0
      %v1451 = vsel %vm1186, %v1406, 0
      %v1454 = vsel %vm1186, %v1407, 0
      %v1457 = vsel %vm1235, %v739, 0
      %1459 = vmatpush.bf16.msra.mxu0 0
      %1460 = vmatpush.bf16.msra.mxu0 0
      %1461 = vmatpush.bf16.msra.mxu0 0
      %1462 = vmatpush.bf16.msra.mxu0 0
      %1463 = vmatpush.bf16.msra.mxu0 0
      %1464 = vmatpush.bf16.msra.mxu0 0
      %1465 = vmatpush.bf16.msra.mxu0 0
      %1466 = vmatpush.bf16.msra.mxu0 %v1457
      %1467 = vmatmul.bf16.gmra.mxu0 %v1409
      %v1468 = vpop.f32.mrf.mxu0
      %v1469 = vadd.f32 %v1249, %v1468
      %v1470 = vpop.f32.mrf.mxu0
      %v1471 = vadd.f32 %v1251, %v1470
      %1472 = vmatmul.bf16.gmra.mxu0 %v1412
      %v1473 = vpop.f32.mrf.mxu0
      %v1474 = vadd.f32 %v1254, %v1473
      %v1475 = vpop.f32.mrf.mxu0
      %v1476 = vadd.f32 %v1256, %v1475
      %1477 = vmatmul.bf16.gmra.mxu0 %v1415
      %v1478 = vpop.f32.mrf.mxu0
      %v1479 = vadd.f32 %v1259, %v1478
      %v1480 = vpop.f32.mrf.mxu0
      %v1481 = vadd.f32 %v1261, %v1480
      %1482 = vmatmul.bf16.gmra.mxu0 %v1418
      %v1483 = vpop.f32.mrf.mxu0
      %v1484 = vadd.f32 %v1264, %v1483
      %v1485 = vpop.f32.mrf.mxu0
      %v1486 = vadd.f32 %v1266, %v1485
      %1487 = vmatmul.bf16.gmra.mxu0 %v1421
      %v1488 = vpop.f32.mrf.mxu0
      %v1489 = vadd.f32 %v1269, %v1488
      %v1490 = vpop.f32.mrf.mxu0
      %v1491 = vadd.f32 %v1271, %v1490
      %1492 = vmatmul.bf16.gmra.mxu0 %v1424
      %v1493 = vpop.f32.mrf.mxu0
      %v1494 = vadd.f32 %v1274, %v1493
      %v1495 = vpop.f32.mrf.mxu0
      %v1496 = vadd.f32 %v1276, %v1495
      %1497 = vmatmul.bf16.gmra.mxu0 %v1427
      %v1498 = vpop.f32.mrf.mxu0
      %v1499 = vadd.f32 %v1279, %v1498
      %v1500 = vpop.f32.mrf.mxu0
      %v1501 = vadd.f32 %v1281, %v1500
      %1502 = vmatmul.bf16.gmra.mxu0 %v1430
      %v1503 = vpop.f32.mrf.mxu0
      %v1504 = vadd.f32 %v1284, %v1503
      %v1505 = vpop.f32.mrf.mxu0
      %v1506 = vadd.f32 %v1286, %v1505
      %1507 = vmatmul.bf16.gmra.mxu0 %v1433
      %v1508 = vpop.f32.mrf.mxu0
      %v1509 = vadd.f32 %v1289, %v1508
      %v1510 = vpop.f32.mrf.mxu0
      %v1511 = vadd.f32 %v1291, %v1510
      %1512 = vmatmul.bf16.gmra.mxu0 %v1436
      %v1513 = vpop.f32.mrf.mxu0
      %v1514 = vadd.f32 %v1294, %v1513
      %v1515 = vpop.f32.mrf.mxu0
      %v1516 = vadd.f32 %v1296, %v1515
      %1517 = vmatmul.bf16.gmra.mxu0 %v1439
      %v1518 = vpop.f32.mrf.mxu0
      %v1519 = vadd.f32 %v1299, %v1518
      %v1520 = vpop.f32.mrf.mxu0
      %v1521 = vadd.f32 %v1301, %v1520
      %1522 = vmatmul.bf16.gmra.mxu0 %v1442
      %v1523 = vpop.f32.mrf.mxu0
      %v1524 = vadd.f32 %v1304, %v1523
      %v1525 = vpop.f32.mrf.mxu0
      %v1526 = vadd.f32 %v1306, %v1525
      %1527 = vmatmul.bf16.gmra.mxu0 %v1445
      %v1528 = vpop.f32.mrf.mxu0
      %v1529 = vadd.f32 %v1309, %v1528
      %v1530 = vpop.f32.mrf.mxu0
      %v1531 = vadd.f32 %v1311, %v1530
      %1532 = vmatmul.bf16.gmra.mxu0 %v1448
      %v1533 = vpop.f32.mrf.mxu0
      %v1534 = vadd.f32 %v1314, %v1533
      %v1535 = vpop.f32.mrf.mxu0
      %v1536 = vadd.f32 %v1316, %v1535
      %1537 = vmatmul.bf16.gmra.mxu0 %v1451
      %v1538 = vpop.f32.mrf.mxu0
      %v1539 = vadd.f32 %v1319, %v1538
      %v1540 = vpop.f32.mrf.mxu0
      %v1541 = vadd.f32 %v1321, %v1540
      %1542 = vmatmul.bf16.gmra.mxu0 %v1454
      %v1543 = vpop.f32.mrf.mxu0
      %v1544 = vadd.f32 %v1324, %v1543
      %v1545 = vpop.f32.mrf.mxu0
      %v1546 = vadd.f32 %v1326, %v1545
      %1547 = vdwg.mxu0
      %vm1564 = vcmask 1042432
      %vm1565 = vcmask 1046532
      %vm1566 = vmor %vm1564, %vm1565
      %v1567 = vrot.slane %v685, 5
      %v1568 = vrot.slane %v1567, 4
      %v1569 = vrot.slane %v686, 5
      %v1570 = vsel %vm1566, %v1568, %v1569
      %v1571 = vrot.slane %v1569, 4
      %v1572 = vrot.slane %v687, 5
      %v1573 = vsel %vm1566, %v1571, %v1572
      %v1574 = vrot.slane %v688, 5
      %v1575 = vrot.slane %v1574, 4
      %v1576 = vrot.slane %v689, 5
      %v1577 = vsel %vm1566, %v1575, %v1576
      %v1578 = vrot.slane %v1576, 4
      %v1579 = vrot.slane %v690, 5
      %v1580 = vsel %vm1566, %v1578, %v1579
      %v1581 = vrot.slane %v691, 5
      %v1582 = vrot.slane %v1581, 4
      %v1583 = vrot.slane %v692, 5
      %v1584 = vsel %vm1566, %v1582, %v1583
      %v1585 = vrot.slane %v1583, 4
      %v1586 = vrot.slane %v693, 5
      %v1587 = vsel %vm1566, %v1585, %v1586
      %v1588 = vrot.slane %v694, 5
      %v1589 = vrot.slane %v1588, 4
      %v1590 = vrot.slane %v695, 5
      %v1591 = vsel %vm1566, %v1589, %v1590
      %v1592 = vrot.slane %v1590, 4
      %v1593 = vrot.slane %v696, 5
      %v1594 = vsel %vm1566, %v1592, %v1593
      %v1595 = vrot.slane %v697, 5
      %v1596 = vrot.slane %v1595, 4
      %v1597 = vrot.slane %v698, 5
      %v1598 = vsel %vm1566, %v1596, %v1597
      %v1599 = vrot.slane %v1597, 4
      %v1600 = vrot.slane %v699, 5
      %v1601 = vsel %vm1566, %v1599, %v1600
      %v1602 = vrot.slane %v700, 5
      %v1603 = vrot.slane %v1602, 4
      %v1604 = vrot.slane %v701, 5
      %v1605 = vsel %vm1566, %v1603, %v1604
      %v1606 = vrot.slane %v1604, 4
      %v1607 = vrot.slane %v702, 5
      %v1608 = vsel %vm1566, %v1606, %v1607
      %v1609 = vrot.slane %v703, 5
      %v1610 = vrot.slane %v1609, 4
      %v1611 = vrot.slane %v704, 5
      %v1612 = vsel %vm1566, %v1610, %v1611
      %v1613 = vrot.slane %v1611, 4
      %v1614 = vrot.slane %v705, 5
      %v1615 = vsel %vm1566, %v1613, %v1614
      %v1616 = vrot.slane %v706, 5
      %v1617 = vrot.slane %v1616, 4
      %v1618 = vrot.slane %v707, 5
      %v1619 = vsel %vm1566, %v1617, %v1618
      %v1620 = vrot.slane %v1618, 4
      %v1621 = vrot.slane %v708, 5
      %v1622 = vsel %vm1566, %v1620, %v1621
      %v1623 = vrot.slane %v709, 5
      %v1624 = vrot.slane %v1623, 4
      %v1625 = vrot.slane %v710, 5
      %v1626 = vsel %vm1566, %v1624, %v1625
      %v1627 = vrot.slane %v1625, 4
      %v1628 = vrot.slane %v711, 5
      %v1629 = vsel %vm1566, %v1627, %v1628
      %v1630 = vrot.slane %v712, 5
      %v1631 = vrot.slane %v1630, 4
      %v1632 = vrot.slane %v713, 5
      %v1633 = vsel %vm1566, %v1631, %v1632
      %v1634 = vrot.slane %v1632, 4
      %v1635 = vrot.slane %v714, 5
      %v1636 = vsel %vm1566, %v1634, %v1635
      %v1637 = vrot.slane %v715, 5
      %v1638 = vrot.slane %v1637, 4
      %v1639 = vrot.slane %v716, 5
      %v1640 = vsel %vm1566, %v1638, %v1639
      %v1641 = vrot.slane %v1639, 4
      %v1642 = vrot.slane %v717, 5
      %v1643 = vsel %vm1566, %v1641, %v1642
      %v1644 = vrot.slane %v718, 5
      %v1645 = vrot.slane %v1644, 4
      %v1646 = vrot.slane %v719, 5
      %v1647 = vsel %vm1566, %v1645, %v1646
      %v1648 = vrot.slane %v1646, 4
      %v1649 = vrot.slane %v720, 5
      %v1650 = vsel %vm1566, %v1648, %v1649
      %v1651 = vrot.slane %v721, 5
      %v1652 = vrot.slane %v1651, 4
      %v1653 = vrot.slane %v722, 5
      %v1654 = vsel %vm1566, %v1652, %v1653
      %v1655 = vrot.slane %v1653, 4
      %v1656 = vrot.slane %v723, 5
      %v1657 = vsel %vm1566, %v1655, %v1656
      %v1658 = vrot.slane %v724, 5
      %v1659 = vrot.slane %v1658, 4
      %v1660 = vrot.slane %v725, 5
      %v1661 = vsel %vm1566, %v1659, %v1660
      %v1662 = vrot.slane %v1660, 4
      %v1663 = vrot.slane %v726, 5
      %v1664 = vsel %vm1566, %v1662, %v1663
      %v1665 = vrot.slane %v727, 5
      %v1666 = vrot.slane %v1665, 4
      %v1667 = vrot.slane %v728, 5
      %v1668 = vsel %vm1566, %v1666, %v1667
      %v1669 = vrot.slane %v1667, 4
      %v1670 = vrot.slane %v729, 5
      %v1671 = vsel %vm1566, %v1669, %v1670
      %v1672 = vrot.slane %v730, 5
      %v1673 = vrot.slane %v1672, 4
      %v1674 = vrot.slane %v731, 5
      %v1675 = vsel %vm1566, %v1673, %v1674
      %v1676 = vrot.slane %v1674, 4
      %v1677 = vrot.slane %v732, 5
      %v1678 = vsel %vm1566, %v1676, %v1677
      %v1679 = vunpack.c.l.b16 %v1570
      %v1680 = vunpack.c.l.b16 %v1573
      %v1681 = vunpack.c.l.b16 %v1577
      %v1682 = vunpack.c.l.b16 %v1580
      %v1683 = vunpack.c.l.b16 %v1584
      %v1684 = vunpack.c.l.b16 %v1587
      %v1685 = vunpack.c.l.b16 %v1591
      %v1686 = vunpack.c.l.b16 %v1594
      %v1687 = vunpack.c.l.b16 %v1598
      %v1688 = vunpack.c.l.b16 %v1601
      %v1689 = vunpack.c.l.b16 %v1605
      %v1690 = vunpack.c.l.b16 %v1608
      %v1691 = vunpack.c.l.b16 %v1612
      %v1692 = vunpack.c.l.b16 %v1615
      %v1693 = vunpack.c.l.b16 %v1619
      %v1694 = vunpack.c.l.b16 %v1622
      %v1695 = vunpack.c.l.b16 %v1626
      %v1696 = vunpack.c.l.b16 %v1629
      %v1697 = vunpack.c.l.b16 %v1633
      %v1698 = vunpack.c.l.b16 %v1636
      %v1699 = vunpack.c.l.b16 %v1640
      %v1700 = vunpack.c.l.b16 %v1643
      %v1701 = vunpack.c.l.b16 %v1647
      %v1702 = vunpack.c.l.b16 %v1650
      %v1703 = vunpack.c.l.b16 %v1654
      %v1704 = vunpack.c.l.b16 %v1657
      %v1705 = vunpack.c.l.b16 %v1661
      %v1706 = vunpack.c.l.b16 %v1664
      %v1707 = vunpack.c.l.b16 %v1668
      %v1708 = vunpack.c.l.b16 %v1671
      %v1709 = vunpack.c.l.b16 %v1675
      %v1710 = vunpack.c.l.b16 %v1678
      %v1711 = vpack.c.b16 %v1680, %v1679
      %v1712 = vpack.c.b16 %v1682, %v1681
      %v1713 = vpack.c.b16 %v1684, %v1683
      %v1714 = vpack.c.b16 %v1686, %v1685
      %v1715 = vpack.c.b16 %v1688, %v1687
      %v1716 = vpack.c.b16 %v1690, %v1689
      %v1717 = vpack.c.b16 %v1692, %v1691
      %v1718 = vpack.c.b16 %v1694, %v1693
      %v1719 = vpack.c.b16 %v1696, %v1695
      %v1720 = vpack.c.b16 %v1698, %v1697
      %v1721 = vpack.c.b16 %v1700, %v1699
      %v1722 = vpack.c.b16 %v1702, %v1701
      %v1723 = vpack.c.b16 %v1704, %v1703
      %v1724 = vpack.c.b16 %v1706, %v1705
      %v1725 = vpack.c.b16 %v1708, %v1707
      %v1726 = vpack.c.b16 %v1710, %v1709
      %v1728 = vsel %vm1186, %v1711, 0
      %v1731 = vsel %vm1186, %v1712, 0
      %v1734 = vsel %vm1186, %v1713, 0
      %v1737 = vsel %vm1186, %v1714, 0
      %v1740 = vsel %vm1186, %v1715, 0
      %v1743 = vsel %vm1186, %v1716, 0
      %v1746 = vsel %vm1186, %v1717, 0
      %v1749 = vsel %vm1186, %v1718, 0
      %v1752 = vsel %vm1186, %v1719, 0
      %v1755 = vsel %vm1186, %v1720, 0
      %v1758 = vsel %vm1186, %v1721, 0
      %v1761 = vsel %vm1186, %v1722, 0
      %v1764 = vsel %vm1186, %v1723, 0
      %v1767 = vsel %vm1186, %v1724, 0
      %v1770 = vsel %vm1186, %v1725, 0
      %v1773 = vsel %vm1186, %v1726, 0
      %v1776 = vsel %vm1235, %v742, 0
      %1778 = vmatpush.bf16.msra.mxu0 0
      %1779 = vmatpush.bf16.msra.mxu0 0
      %1780 = vmatpush.bf16.msra.mxu0 0
      %1781 = vmatpush.bf16.msra.mxu0 0
      %1782 = vmatpush.bf16.msra.mxu0 0
      %1783 = vmatpush.bf16.msra.mxu0 0
      %1784 = vmatpush.bf16.msra.mxu0 0
      %1785 = vmatpush.bf16.msra.mxu0 %v1776
      %1786 = vmatmul.bf16.gmra.mxu0 %v1728
      %v1787 = vpop.f32.mrf.mxu0
      %v1788 = vadd.f32 0.0, %v1787
      %v1789 = vpop.f32.mrf.mxu0
      %v1790 = vadd.f32 0.0, %v1789
      %1791 = vmatmul.bf16.gmra.mxu0 %v1731
      %v1792 = vpop.f32.mrf.mxu0
      %v1793 = vadd.f32 0.0, %v1792
      %v1794 = vpop.f32.mrf.mxu0
      %v1795 = vadd.f32 0.0, %v1794
      %1796 = vmatmul.bf16.gmra.mxu0 %v1734
      %v1797 = vpop.f32.mrf.mxu0
      %v1798 = vadd.f32 0.0, %v1797
      %v1799 = vpop.f32.mrf.mxu0
      %v1800 = vadd.f32 0.0, %v1799
      %1801 = vmatmul.bf16.gmra.mxu0 %v1737
      %v1802 = vpop.f32.mrf.mxu0
      %v1803 = vadd.f32 0.0, %v1802
      %v1804 = vpop.f32.mrf.mxu0
      %v1805 = vadd.f32 0.0, %v1804
      %1806 = vmatmul.bf16.gmra.mxu0 %v1740
      %v1807 = vpop.f32.mrf.mxu0
      %v1808 = vadd.f32 0.0, %v1807
      %v1809 = vpop.f32.mrf.mxu0
      %v1810 = vadd.f32 0.0, %v1809
      %1811 = vmatmul.bf16.gmra.mxu0 %v1743
      %v1812 = vpop.f32.mrf.mxu0
      %v1813 = vadd.f32 0.0, %v1812
      %v1814 = vpop.f32.mrf.mxu0
      %v1815 = vadd.f32 0.0, %v1814
      %1816 = vmatmul.bf16.gmra.mxu0 %v1746
      %v1817 = vpop.f32.mrf.mxu0
      %v1818 = vadd.f32 0.0, %v1817
      %v1819 = vpop.f32.mrf.mxu0
      %v1820 = vadd.f32 0.0, %v1819
      %1821 = vmatmul.bf16.gmra.mxu0 %v1749
      %v1822 = vpop.f32.mrf.mxu0
      %v1823 = vadd.f32 0.0, %v1822
      %v1824 = vpop.f32.mrf.mxu0
      %v1825 = vadd.f32 0.0, %v1824
      %1826 = vmatmul.bf16.gmra.mxu0 %v1752
      %v1827 = vpop.f32.mrf.mxu0
      %v1828 = vadd.f32 0.0, %v1827
      %v1829 = vpop.f32.mrf.mxu0
      %v1830 = vadd.f32 0.0, %v1829
      %1831 = vmatmul.bf16.gmra.mxu0 %v1755
      %v1832 = vpop.f32.mrf.mxu0
      %v1833 = vadd.f32 0.0, %v1832
      %v1834 = vpop.f32.mrf.mxu0
      %v1835 = vadd.f32 0.0, %v1834
      %1836 = vmatmul.bf16.gmra.mxu0 %v1758
      %v1837 = vpop.f32.mrf.mxu0
      %v1838 = vadd.f32 0.0, %v1837
      %v1839 = vpop.f32.mrf.mxu0
      %v1840 = vadd.f32 0.0, %v1839
      %1841 = vmatmul.bf16.gmra.mxu0 %v1761
      %v1842 = vpop.f32.mrf.mxu0
      %v1843 = vadd.f32 0.0, %v1842
      %v1844 = vpop.f32.mrf.mxu0
      %v1845 = vadd.f32 0.0, %v1844
      %1846 = vmatmul.bf16.gmra.mxu0 %v1764
      %v1847 = vpop.f32.mrf.mxu0
      %v1848 = vadd.f32 0.0, %v1847
      %v1849 = vpop.f32.mrf.mxu0
      %v1850 = vadd.f32 0.0, %v1849
      %1851 = vmatmul.bf16.gmra.mxu0 %v1767
      %v1852 = vpop.f32.mrf.mxu0
      %v1853 = vadd.f32 0.0, %v1852
      %v1854 = vpop.f32.mrf.mxu0
      %v1855 = vadd.f32 0.0, %v1854
      %1856 = vmatmul.bf16.gmra.mxu0 %v1770
      %v1857 = vpop.f32.mrf.mxu0
      %v1858 = vadd.f32 0.0, %v1857
      %v1859 = vpop.f32.mrf.mxu0
      %v1860 = vadd.f32 0.0, %v1859
      %1861 = vmatmul.bf16.gmra.mxu0 %v1773
      %v1862 = vpop.f32.mrf.mxu0
      %v1863 = vadd.f32 0.0, %v1862
      %v1864 = vpop.f32.mrf.mxu0
      %v1865 = vadd.f32 0.0, %v1864
      %1866 = vdwg.mxu0
      %v1868 = vsel %vm1235, %v741, 0
      %1870 = vmatpush.bf16.msra.mxu0 0
      %1871 = vmatpush.bf16.msra.mxu0 0
      %1872 = vmatpush.bf16.msra.mxu0 0
      %1873 = vmatpush.bf16.msra.mxu0 0
      %1874 = vmatpush.bf16.msra.mxu0 0
      %1875 = vmatpush.bf16.msra.mxu0 0
      %1876 = vmatpush.bf16.msra.mxu0 0
      %1877 = vmatpush.bf16.msra.mxu0 %v1868
      %1878 = vmatmul.bf16.gmra.mxu0 %v1188
      %v1879 = vpop.f32.mrf.mxu0
      %v1880 = vadd.f32 %v1788, %v1879
      %v1881 = vpop.f32.mrf.mxu0
      %v1882 = vadd.f32 %v1790, %v1881
      %1883 = vmatmul.bf16.gmra.mxu0 %v1191
      %v1884 = vpop.f32.mrf.mxu0
      %v1885 = vadd.f32 %v1793, %v1884
      %v1886 = vpop.f32.mrf.mxu0
      %v1887 = vadd.f32 %v1795, %v1886
      %1888 = vmatmul.bf16.gmra.mxu0 %v1194
      %v1889 = vpop.f32.mrf.mxu0
      %v1890 = vadd.f32 %v1798, %v1889
      %v1891 = vpop.f32.mrf.mxu0
      %v1892 = vadd.f32 %v1800, %v1891
      %1893 = vmatmul.bf16.gmra.mxu0 %v1197
      %v1894 = vpop.f32.mrf.mxu0
      %v1895 = vadd.f32 %v1803, %v1894
      %v1896 = vpop.f32.mrf.mxu0
      %v1897 = vadd.f32 %v1805, %v1896
      %1898 = vmatmul.bf16.gmra.mxu0 %v1200
      %v1899 = vpop.f32.mrf.mxu0
      %v1900 = vadd.f32 %v1808, %v1899
      %v1901 = vpop.f32.mrf.mxu0
      %v1902 = vadd.f32 %v1810, %v1901
      %1903 = vmatmul.bf16.gmra.mxu0 %v1203
      %v1904 = vpop.f32.mrf.mxu0
      %v1905 = vadd.f32 %v1813, %v1904
      %v1906 = vpop.f32.mrf.mxu0
      %v1907 = vadd.f32 %v1815, %v1906
      %1908 = vmatmul.bf16.gmra.mxu0 %v1206
      %v1909 = vpop.f32.mrf.mxu0
      %v1910 = vadd.f32 %v1818, %v1909
      %v1911 = vpop.f32.mrf.mxu0
      %v1912 = vadd.f32 %v1820, %v1911
      %1913 = vmatmul.bf16.gmra.mxu0 %v1209
      %v1914 = vpop.f32.mrf.mxu0
      %v1915 = vadd.f32 %v1823, %v1914
      %v1916 = vpop.f32.mrf.mxu0
      %v1917 = vadd.f32 %v1825, %v1916
      %1918 = vmatmul.bf16.gmra.mxu0 %v1212
      %v1919 = vpop.f32.mrf.mxu0
      %v1920 = vadd.f32 %v1828, %v1919
      %v1921 = vpop.f32.mrf.mxu0
      %v1922 = vadd.f32 %v1830, %v1921
      %1923 = vmatmul.bf16.gmra.mxu0 %v1215
      %v1924 = vpop.f32.mrf.mxu0
      %v1925 = vadd.f32 %v1833, %v1924
      %v1926 = vpop.f32.mrf.mxu0
      %v1927 = vadd.f32 %v1835, %v1926
      %1928 = vmatmul.bf16.gmra.mxu0 %v1218
      %v1929 = vpop.f32.mrf.mxu0
      %v1930 = vadd.f32 %v1838, %v1929
      %v1931 = vpop.f32.mrf.mxu0
      %v1932 = vadd.f32 %v1840, %v1931
      %1933 = vmatmul.bf16.gmra.mxu0 %v1221
      %v1934 = vpop.f32.mrf.mxu0
      %v1935 = vadd.f32 %v1843, %v1934
      %v1936 = vpop.f32.mrf.mxu0
      %v1937 = vadd.f32 %v1845, %v1936
      %1938 = vmatmul.bf16.gmra.mxu0 %v1224
      %v1939 = vpop.f32.mrf.mxu0
      %v1940 = vadd.f32 %v1848, %v1939
      %v1941 = vpop.f32.mrf.mxu0
      %v1942 = vadd.f32 %v1850, %v1941
      %1943 = vmatmul.bf16.gmra.mxu0 %v1227
      %v1944 = vpop.f32.mrf.mxu0
      %v1945 = vadd.f32 %v1853, %v1944
      %v1946 = vpop.f32.mrf.mxu0
      %v1947 = vadd.f32 %v1855, %v1946
      %1948 = vmatmul.bf16.gmra.mxu0 %v1230
      %v1949 = vpop.f32.mrf.mxu0
      %v1950 = vadd.f32 %v1858, %v1949
      %v1951 = vpop.f32.mrf.mxu0
      %v1952 = vadd.f32 %v1860, %v1951
      %1953 = vmatmul.bf16.gmra.mxu0 %v1233
      %v1954 = vpop.f32.mrf.mxu0
      %v1955 = vadd.f32 %v1863, %v1954
      %v1956 = vpop.f32.mrf.mxu0
      %v1957 = vadd.f32 %v1865, %v1956
      %1958 = vdwg.mxu0
      %v1961 = vunpack.c.l.b16 %v733
      %v1962 = vunpack.c.l.b16 %v734
      %v1963 = vpack.c.b16 %v1962, %v1961
      %v1965 = vsel %vm1186, %v1963, 0
      %v1968 = vsel %vm1235, %v743, 0
      %1970 = vmatpush.bf16.msra.mxu0 0
      %1971 = vmatpush.bf16.msra.mxu0 0
      %1972 = vmatpush.bf16.msra.mxu0 0
      %1973 = vmatpush.bf16.msra.mxu0 0
      %1974 = vmatpush.bf16.msra.mxu0 0
      %1975 = vmatpush.bf16.msra.mxu0 0
      %1976 = vmatpush.bf16.msra.mxu0 0
      %1977 = vmatpush.bf16.msra.mxu0 %v1968
      %1978 = vmatmul.bf16.gmra.mxu0 %v1412
      %v1979 = vpop.f32.mrf.mxu0
      %v1980 = vadd.f32 0.0, %v1979
      %v1981 = vpop.f32.mrf.mxu0
      %v1982 = vadd.f32 0.0, %v1981
      %1983 = vmatmul.bf16.gmra.mxu0 %v1415
      %v1984 = vpop.f32.mrf.mxu0
      %v1985 = vadd.f32 0.0, %v1984
      %v1986 = vpop.f32.mrf.mxu0
      %v1987 = vadd.f32 0.0, %v1986
      %1988 = vmatmul.bf16.gmra.mxu0 %v1418
      %v1989 = vpop.f32.mrf.mxu0
      %v1990 = vadd.f32 0.0, %v1989
      %v1991 = vpop.f32.mrf.mxu0
      %v1992 = vadd.f32 0.0, %v1991
      %1993 = vmatmul.bf16.gmra.mxu0 %v1421
      %v1994 = vpop.f32.mrf.mxu0
      %v1995 = vadd.f32 0.0, %v1994
      %v1996 = vpop.f32.mrf.mxu0
      %v1997 = vadd.f32 0.0, %v1996
      %1998 = vmatmul.bf16.gmra.mxu0 %v1424
      %v1999 = vpop.f32.mrf.mxu0
      %v2000 = vadd.f32 0.0, %v1999
      %v2001 = vpop.f32.mrf.mxu0
      %v2002 = vadd.f32 0.0, %v2001
      %2003 = vmatmul.bf16.gmra.mxu0 %v1427
      %v2004 = vpop.f32.mrf.mxu0
      %v2005 = vadd.f32 0.0, %v2004
      %v2006 = vpop.f32.mrf.mxu0
      %v2007 = vadd.f32 0.0, %v2006
      %2008 = vmatmul.bf16.gmra.mxu0 %v1430
      %v2009 = vpop.f32.mrf.mxu0
      %v2010 = vadd.f32 0.0, %v2009
      %v2011 = vpop.f32.mrf.mxu0
      %v2012 = vadd.f32 0.0, %v2011
      %2013 = vmatmul.bf16.gmra.mxu0 %v1433
      %v2014 = vpop.f32.mrf.mxu0
      %v2015 = vadd.f32 0.0, %v2014
      %v2016 = vpop.f32.mrf.mxu0
      %v2017 = vadd.f32 0.0, %v2016
      %2018 = vmatmul.bf16.gmra.mxu0 %v1436
      %v2019 = vpop.f32.mrf.mxu0
      %v2020 = vadd.f32 0.0, %v2019
      %v2021 = vpop.f32.mrf.mxu0
      %v2022 = vadd.f32 0.0, %v2021
      %2023 = vmatmul.bf16.gmra.mxu0 %v1439
      %v2024 = vpop.f32.mrf.mxu0
      %v2025 = vadd.f32 0.0, %v2024
      %v2026 = vpop.f32.mrf.mxu0
      %v2027 = vadd.f32 0.0, %v2026
      %2028 = vmatmul.bf16.gmra.mxu0 %v1442
      %v2029 = vpop.f32.mrf.mxu0
      %v2030 = vadd.f32 0.0, %v2029
      %v2031 = vpop.f32.mrf.mxu0
      %v2032 = vadd.f32 0.0, %v2031
      %2033 = vmatmul.bf16.gmra.mxu0 %v1445
      %v2034 = vpop.f32.mrf.mxu0
      %v2035 = vadd.f32 0.0, %v2034
      %v2036 = vpop.f32.mrf.mxu0
      %v2037 = vadd.f32 0.0, %v2036
      %2038 = vmatmul.bf16.gmra.mxu0 %v1448
      %v2039 = vpop.f32.mrf.mxu0
      %v2040 = vadd.f32 0.0, %v2039
      %v2041 = vpop.f32.mrf.mxu0
      %v2042 = vadd.f32 0.0, %v2041
      %2043 = vmatmul.bf16.gmra.mxu0 %v1451
      %v2044 = vpop.f32.mrf.mxu0
      %v2045 = vadd.f32 0.0, %v2044
      %v2046 = vpop.f32.mrf.mxu0
      %v2047 = vadd.f32 0.0, %v2046
      %2048 = vmatmul.bf16.gmra.mxu0 %v1454
      %v2049 = vpop.f32.mrf.mxu0
      %v2050 = vadd.f32 0.0, %v2049
      %v2051 = vpop.f32.mrf.mxu0
      %v2052 = vadd.f32 0.0, %v2051
      %2053 = vmatmul.bf16.gmra.mxu0 %v1965
      %v2054 = vpop.f32.mrf.mxu0
      %v2055 = vadd.f32 0.0, %v2054
      %v2056 = vpop.f32.mrf.mxu0
      %v2057 = vadd.f32 0.0, %v2056
      %2058 = vdwg.mxu0
      %v2059 = vadd.f32 %v1469, %v1980
      %v2060 = vadd.f32 %v1471, %v1982
      %v2061 = vadd.f32 %v1474, %v1985
      %v2062 = vadd.f32 %v1476, %v1987
      %v2063 = vadd.f32 %v1479, %v1990
      %v2064 = vadd.f32 %v1481, %v1992
      %v2065 = vadd.f32 %v1484, %v1995
      %v2066 = vadd.f32 %v1486, %v1997
      %v2067 = vadd.f32 %v1489, %v2000
      %v2068 = vadd.f32 %v1491, %v2002
      %v2069 = vadd.f32 %v1494, %v2005
      %v2070 = vadd.f32 %v1496, %v2007
      %v2071 = vadd.f32 %v1499, %v2010
      %v2072 = vadd.f32 %v1501, %v2012
      %v2073 = vadd.f32 %v1504, %v2015
      %v2074 = vadd.f32 %v1506, %v2017
      %v2075 = vadd.f32 %v1509, %v2020
      %v2076 = vadd.f32 %v1511, %v2022
      %v2077 = vadd.f32 %v1514, %v2025
      %v2078 = vadd.f32 %v1516, %v2027
      %v2079 = vadd.f32 %v1519, %v2030
      %v2080 = vadd.f32 %v1521, %v2032
      %v2081 = vadd.f32 %v1524, %v2035
      %v2082 = vadd.f32 %v1526, %v2037
      %v2083 = vadd.f32 %v1529, %v2040
      %v2084 = vadd.f32 %v1531, %v2042
      %v2085 = vadd.f32 %v1534, %v2045
      %v2086 = vadd.f32 %v1536, %v2047
      %v2087 = vadd.f32 %v1539, %v2050
      %v2088 = vadd.f32 %v1541, %v2052
      %v2089 = vadd.f32 %v1544, %v2055
      %v2090 = vadd.f32 %v1546, %v2057
      %v2092 = vshrl.u32 %v733, 16
      %v2094 = vrot.slane %v2092, 4
      %v2095 = vshll.u32 %v733, 16
      %v2097 = vrot.slane %v2095, 5
      %v2098 = vor.u32 %v2094, %v2097
      %v2099 = vrot.slane %v2098, 4
      %v2101 = vshll.u32 %v734, 16
      %v2103 = vrot.slane %v2101, 5
      %v2104 = vsel %vm753, %v2099, %v2103
      %v2105 = vshrl.u32 %v734, 16
      %v2107 = vrot.slane %v2105, 4
      %v2108 = vor.u32 %v2107, %v2103
      %v2109 = vrot.slane %v2108, 4
      %v2111 = vshll.u32 %v735, 16
      %v2113 = vrot.slane %v2111, 5
      %v2114 = vsel %vm753, %v2109, %v2113
      %v2115 = vunpack.c.l.b16 %v2104
      %v2116 = vunpack.c.l.b16 %v2114
      %v2117 = vpack.c.b16 %v2116, %v2115
      %v2119 = vsel %vm1186, %v2117, 0
      %v2122 = vsel %vm1235, %v744, 0
      %2124 = vmatpush.bf16.msra.mxu0 0
      %2125 = vmatpush.bf16.msra.mxu0 0
      %2126 = vmatpush.bf16.msra.mxu0 0
      %2127 = vmatpush.bf16.msra.mxu0 0
      %2128 = vmatpush.bf16.msra.mxu0 0
      %2129 = vmatpush.bf16.msra.mxu0 0
      %2130 = vmatpush.bf16.msra.mxu0 0
      %2131 = vmatpush.bf16.msra.mxu0 %v2122
      %2132 = vmatmul.bf16.gmra.mxu0 %v1191
      %v2133 = vpop.f32.mrf.mxu0
      %v2134 = vadd.f32 0.0, %v2133
      %v2135 = vpop.f32.mrf.mxu0
      %v2136 = vadd.f32 0.0, %v2135
      %2137 = vmatmul.bf16.gmra.mxu0 %v1194
      %v2138 = vpop.f32.mrf.mxu0
      %v2139 = vadd.f32 0.0, %v2138
      %v2140 = vpop.f32.mrf.mxu0
      %v2141 = vadd.f32 0.0, %v2140
      %2142 = vmatmul.bf16.gmra.mxu0 %v1197
      %v2143 = vpop.f32.mrf.mxu0
      %v2144 = vadd.f32 0.0, %v2143
      %v2145 = vpop.f32.mrf.mxu0
      %v2146 = vadd.f32 0.0, %v2145
      %2147 = vmatmul.bf16.gmra.mxu0 %v1200
      %v2148 = vpop.f32.mrf.mxu0
      %v2149 = vadd.f32 0.0, %v2148
      %v2150 = vpop.f32.mrf.mxu0
      %v2151 = vadd.f32 0.0, %v2150
      %2152 = vmatmul.bf16.gmra.mxu0 %v1203
      %v2153 = vpop.f32.mrf.mxu0
      %v2154 = vadd.f32 0.0, %v2153
      %v2155 = vpop.f32.mrf.mxu0
      %v2156 = vadd.f32 0.0, %v2155
      %2157 = vmatmul.bf16.gmra.mxu0 %v1206
      %v2158 = vpop.f32.mrf.mxu0
      %v2159 = vadd.f32 0.0, %v2158
      %v2160 = vpop.f32.mrf.mxu0
      %v2161 = vadd.f32 0.0, %v2160
      %2162 = vmatmul.bf16.gmra.mxu0 %v1209
      %v2163 = vpop.f32.mrf.mxu0
      %v2164 = vadd.f32 0.0, %v2163
      %v2165 = vpop.f32.mrf.mxu0
      %v2166 = vadd.f32 0.0, %v2165
      %2167 = vmatmul.bf16.gmra.mxu0 %v1212
      %v2168 = vpop.f32.mrf.mxu0
      %v2169 = vadd.f32 0.0, %v2168
      %v2170 = vpop.f32.mrf.mxu0
      %v2171 = vadd.f32 0.0, %v2170
      %2172 = vmatmul.bf16.gmra.mxu0 %v1215
      %v2173 = vpop.f32.mrf.mxu0
      %v2174 = vadd.f32 0.0, %v2173
      %v2175 = vpop.f32.mrf.mxu0
      %v2176 = vadd.f32 0.0, %v2175
      %2177 = vmatmul.bf16.gmra.mxu0 %v1218
      %v2178 = vpop.f32.mrf.mxu0
      %v2179 = vadd.f32 0.0, %v2178
      %v2180 = vpop.f32.mrf.mxu0
      %v2181 = vadd.f32 0.0, %v2180
      %2182 = vmatmul.bf16.gmra.mxu0 %v1221
      %v2183 = vpop.f32.mrf.mxu0
      %v2184 = vadd.f32 0.0, %v2183
      %v2185 = vpop.f32.mrf.mxu0
      %v2186 = vadd.f32 0.0, %v2185
      %2187 = vmatmul.bf16.gmra.mxu0 %v1224
      %v2188 = vpop.f32.mrf.mxu0
      %v2189 = vadd.f32 0.0, %v2188
      %v2190 = vpop.f32.mrf.mxu0
      %v2191 = vadd.f32 0.0, %v2190
      %2192 = vmatmul.bf16.gmra.mxu0 %v1227
      %v2193 = vpop.f32.mrf.mxu0
      %v2194 = vadd.f32 0.0, %v2193
      %v2195 = vpop.f32.mrf.mxu0
      %v2196 = vadd.f32 0.0, %v2195
      %2197 = vmatmul.bf16.gmra.mxu0 %v1230
      %v2198 = vpop.f32.mrf.mxu0
      %v2199 = vadd.f32 0.0, %v2198
      %v2200 = vpop.f32.mrf.mxu0
      %v2201 = vadd.f32 0.0, %v2200
      %2202 = vmatmul.bf16.gmra.mxu0 %v1233
      %v2203 = vpop.f32.mrf.mxu0
      %v2204 = vadd.f32 0.0, %v2203
      %v2205 = vpop.f32.mrf.mxu0
      %v2206 = vadd.f32 0.0, %v2205
      %2207 = vmatmul.bf16.gmra.mxu0 %v2119
      %v2208 = vpop.f32.mrf.mxu0
      %v2209 = vadd.f32 0.0, %v2208
      %v2210 = vpop.f32.mrf.mxu0
      %v2211 = vadd.f32 0.0, %v2210
      %2212 = vdwg.mxu0
      %v2213 = vadd.f32 %v2059, %v2134
      %v2214 = vadd.f32 %v2060, %v2136
      %v2215 = vadd.f32 %v2061, %v2139
      %v2216 = vadd.f32 %v2062, %v2141
      %v2217 = vadd.f32 %v2063, %v2144
      %v2218 = vadd.f32 %v2064, %v2146
      %v2219 = vadd.f32 %v2065, %v2149
      %v2220 = vadd.f32 %v2066, %v2151
      %v2221 = vadd.f32 %v2067, %v2154
      %v2222 = vadd.f32 %v2068, %v2156
      %v2223 = vadd.f32 %v2069, %v2159
      %v2224 = vadd.f32 %v2070, %v2161
      %v2225 = vadd.f32 %v2071, %v2164
      %v2226 = vadd.f32 %v2072, %v2166
      %v2227 = vadd.f32 %v2073, %v2169
      %v2228 = vadd.f32 %v2074, %v2171
      %v2229 = vadd.f32 %v2075, %v2174
      %v2230 = vadd.f32 %v2076, %v2176
      %v2231 = vadd.f32 %v2077, %v2179
      %v2232 = vadd.f32 %v2078, %v2181
      %v2233 = vadd.f32 %v2079, %v2184
      %v2234 = vadd.f32 %v2080, %v2186
      %v2235 = vadd.f32 %v2081, %v2189
      %v2236 = vadd.f32 %v2082, %v2191
      %v2237 = vadd.f32 %v2083, %v2194
      %v2238 = vadd.f32 %v2084, %v2196
      %v2239 = vadd.f32 %v2085, %v2199
      %v2240 = vadd.f32 %v2086, %v2201
      %v2241 = vadd.f32 %v2087, %v2204
      %v2242 = vadd.f32 %v2088, %v2206
      %v2243 = vadd.f32 %v2089, %v2209
      %v2244 = vadd.f32 %v2090, %v2211
      %v2246 = vsel %vm1235, %v745, 0
      %2248 = vmatpush.bf16.msra.mxu0 0
      %2249 = vmatpush.bf16.msra.mxu0 0
      %2250 = vmatpush.bf16.msra.mxu0 0
      %2251 = vmatpush.bf16.msra.mxu0 0
      %2252 = vmatpush.bf16.msra.mxu0 0
      %2253 = vmatpush.bf16.msra.mxu0 0
      %2254 = vmatpush.bf16.msra.mxu0 0
      %2255 = vmatpush.bf16.msra.mxu0 %v2246
      %2256 = vmatmul.bf16.gmra.mxu0 %v1191
      %v2257 = vpop.f32.mrf.mxu0
      %v2258 = vadd.f32 0.0, %v2257
      %v2259 = vpop.f32.mrf.mxu0
      %v2260 = vadd.f32 0.0, %v2259
      %2261 = vmatmul.bf16.gmra.mxu0 %v1194
      %v2262 = vpop.f32.mrf.mxu0
      %v2263 = vadd.f32 0.0, %v2262
      %v2264 = vpop.f32.mrf.mxu0
      %v2265 = vadd.f32 0.0, %v2264
      %2266 = vmatmul.bf16.gmra.mxu0 %v1197
      %v2267 = vpop.f32.mrf.mxu0
      %v2268 = vadd.f32 0.0, %v2267
      %v2269 = vpop.f32.mrf.mxu0
      %v2270 = vadd.f32 0.0, %v2269
      %2271 = vmatmul.bf16.gmra.mxu0 %v1200
      %v2272 = vpop.f32.mrf.mxu0
      %v2273 = vadd.f32 0.0, %v2272
      %v2274 = vpop.f32.mrf.mxu0
      %v2275 = vadd.f32 0.0, %v2274
      %2276 = vmatmul.bf16.gmra.mxu0 %v1203
      %v2277 = vpop.f32.mrf.mxu0
      %v2278 = vadd.f32 0.0, %v2277
      %v2279 = vpop.f32.mrf.mxu0
      %v2280 = vadd.f32 0.0, %v2279
      %2281 = vmatmul.bf16.gmra.mxu0 %v1206
      %v2282 = vpop.f32.mrf.mxu0
      %v2283 = vadd.f32 0.0, %v2282
      %v2284 = vpop.f32.mrf.mxu0
      %v2285 = vadd.f32 0.0, %v2284
      %2286 = vmatmul.bf16.gmra.mxu0 %v1209
      %v2287 = vpop.f32.mrf.mxu0
      %v2288 = vadd.f32 0.0, %v2287
      %v2289 = vpop.f32.mrf.mxu0
      %v2290 = vadd.f32 0.0, %v2289
      %2291 = vmatmul.bf16.gmra.mxu0 %v1212
      %v2292 = vpop.f32.mrf.mxu0
      %v2293 = vadd.f32 0.0, %v2292
      %v2294 = vpop.f32.mrf.mxu0
      %v2295 = vadd.f32 0.0, %v2294
      %2296 = vmatmul.bf16.gmra.mxu0 %v1215
      %v2297 = vpop.f32.mrf.mxu0
      %v2298 = vadd.f32 0.0, %v2297
      %v2299 = vpop.f32.mrf.mxu0
      %v2300 = vadd.f32 0.0, %v2299
      %2301 = vmatmul.bf16.gmra.mxu0 %v1218
      %v2302 = vpop.f32.mrf.mxu0
      %v2303 = vadd.f32 0.0, %v2302
      %v2304 = vpop.f32.mrf.mxu0
      %v2305 = vadd.f32 0.0, %v2304
      %2306 = vmatmul.bf16.gmra.mxu0 %v1221
      %v2307 = vpop.f32.mrf.mxu0
      %v2308 = vadd.f32 0.0, %v2307
      %v2309 = vpop.f32.mrf.mxu0
      %v2310 = vadd.f32 0.0, %v2309
      %2311 = vmatmul.bf16.gmra.mxu0 %v1224
      %v2312 = vpop.f32.mrf.mxu0
      %v2313 = vadd.f32 0.0, %v2312
      %v2314 = vpop.f32.mrf.mxu0
      %v2315 = vadd.f32 0.0, %v2314
      %2316 = vmatmul.bf16.gmra.mxu0 %v1227
      %v2317 = vpop.f32.mrf.mxu0
      %v2318 = vadd.f32 0.0, %v2317
      %v2319 = vpop.f32.mrf.mxu0
      %v2320 = vadd.f32 0.0, %v2319
      %2321 = vmatmul.bf16.gmra.mxu0 %v1230
      %v2322 = vpop.f32.mrf.mxu0
      %v2323 = vadd.f32 0.0, %v2322
      %v2324 = vpop.f32.mrf.mxu0
      %v2325 = vadd.f32 0.0, %v2324
      %2326 = vmatmul.bf16.gmra.mxu0 %v1233
      %v2327 = vpop.f32.mrf.mxu0
      %v2328 = vadd.f32 0.0, %v2327
      %v2329 = vpop.f32.mrf.mxu0
      %v2330 = vadd.f32 0.0, %v2329
      %2331 = vmatmul.bf16.gmra.mxu0 %v2119
      %v2332 = vpop.f32.mrf.mxu0
      %v2333 = vadd.f32 0.0, %v2332
      %v2334 = vpop.f32.mrf.mxu0
      %v2335 = vadd.f32 0.0, %v2334
      %2336 = vdwg.mxu0
      %v2337 = vadd.f32 %v1880, %v2258
      %v2338 = vadd.f32 %v1882, %v2260
      %v2339 = vadd.f32 %v1885, %v2263
      %v2340 = vadd.f32 %v1887, %v2265
      %v2341 = vadd.f32 %v1890, %v2268
      %v2342 = vadd.f32 %v1892, %v2270
      %v2343 = vadd.f32 %v1895, %v2273
      %v2344 = vadd.f32 %v1897, %v2275
      %v2345 = vadd.f32 %v1900, %v2278
      %v2346 = vadd.f32 %v1902, %v2280
      %v2347 = vadd.f32 %v1905, %v2283
      %v2348 = vadd.f32 %v1907, %v2285
      %v2349 = vadd.f32 %v1910, %v2288
      %v2350 = vadd.f32 %v1912, %v2290
      %v2351 = vadd.f32 %v1915, %v2293
      %v2352 = vadd.f32 %v1917, %v2295
      %v2353 = vadd.f32 %v1920, %v2298
      %v2354 = vadd.f32 %v1922, %v2300
      %v2355 = vadd.f32 %v1925, %v2303
      %v2356 = vadd.f32 %v1927, %v2305
      %v2357 = vadd.f32 %v1930, %v2308
      %v2358 = vadd.f32 %v1932, %v2310
      %v2359 = vadd.f32 %v1935, %v2313
      %v2360 = vadd.f32 %v1937, %v2315
      %v2361 = vadd.f32 %v1940, %v2318
      %v2362 = vadd.f32 %v1942, %v2320
      %v2363 = vadd.f32 %v1945, %v2323
      %v2364 = vadd.f32 %v1947, %v2325
      %v2365 = vadd.f32 %v1950, %v2328
      %v2366 = vadd.f32 %v1952, %v2330
      %v2367 = vadd.f32 %v1955, %v2333
      %v2368 = vadd.f32 %v1957, %v2335
      %v2370 = vrot.slane %v733, 5
      %v2371 = vrot.slane %v2370, 4
      %v2372 = vrot.slane %v734, 5
      %v2373 = vsel %vm1566, %v2371, %v2372
      %v2374 = vrot.slane %v2372, 4
      %v2375 = vrot.slane %v735, 5
      %v2376 = vsel %vm1566, %v2374, %v2375
      %v2377 = vunpack.c.l.b16 %v2373
      %v2378 = vunpack.c.l.b16 %v2376
      %v2379 = vpack.c.b16 %v2378, %v2377
      %v2381 = vsel %vm1186, %v2379, 0
      %v2384 = vsel %vm1235, %v746, 0
      %2386 = vmatpush.bf16.msra.mxu0 0
      %2387 = vmatpush.bf16.msra.mxu0 0
      %2388 = vmatpush.bf16.msra.mxu0 0
      %2389 = vmatpush.bf16.msra.mxu0 0
      %2390 = vmatpush.bf16.msra.mxu0 0
      %2391 = vmatpush.bf16.msra.mxu0 0
      %2392 = vmatpush.bf16.msra.mxu0 0
      %2393 = vmatpush.bf16.msra.mxu0 %v2384
      %2394 = vmatmul.bf16.gmra.mxu0 %v1731
      %v2395 = vpop.f32.mrf.mxu0
      %v2396 = vadd.f32 0.0, %v2395
      %v2397 = vpop.f32.mrf.mxu0
      %v2398 = vadd.f32 0.0, %v2397
      %2399 = vmatmul.bf16.gmra.mxu0 %v1734
      %v2400 = vpop.f32.mrf.mxu0
      %v2401 = vadd.f32 0.0, %v2400
      %v2402 = vpop.f32.mrf.mxu0
      %v2403 = vadd.f32 0.0, %v2402
      %2404 = vmatmul.bf16.gmra.mxu0 %v1737
      %v2405 = vpop.f32.mrf.mxu0
      %v2406 = vadd.f32 0.0, %v2405
      %v2407 = vpop.f32.mrf.mxu0
      %v2408 = vadd.f32 0.0, %v2407
      %2409 = vmatmul.bf16.gmra.mxu0 %v1740
      %v2410 = vpop.f32.mrf.mxu0
      %v2411 = vadd.f32 0.0, %v2410
      %v2412 = vpop.f32.mrf.mxu0
      %v2413 = vadd.f32 0.0, %v2412
      %2414 = vmatmul.bf16.gmra.mxu0 %v1743
      %v2415 = vpop.f32.mrf.mxu0
      %v2416 = vadd.f32 0.0, %v2415
      %v2417 = vpop.f32.mrf.mxu0
      %v2418 = vadd.f32 0.0, %v2417
      %2419 = vmatmul.bf16.gmra.mxu0 %v1746
      %v2420 = vpop.f32.mrf.mxu0
      %v2421 = vadd.f32 0.0, %v2420
      %v2422 = vpop.f32.mrf.mxu0
      %v2423 = vadd.f32 0.0, %v2422
      %2424 = vmatmul.bf16.gmra.mxu0 %v1749
      %v2425 = vpop.f32.mrf.mxu0
      %v2426 = vadd.f32 0.0, %v2425
      %v2427 = vpop.f32.mrf.mxu0
      %v2428 = vadd.f32 0.0, %v2427
      %2429 = vmatmul.bf16.gmra.mxu0 %v1752
      %v2430 = vpop.f32.mrf.mxu0
      %v2431 = vadd.f32 0.0, %v2430
      %v2432 = vpop.f32.mrf.mxu0
      %v2433 = vadd.f32 0.0, %v2432
      %2434 = vmatmul.bf16.gmra.mxu0 %v1755
      %v2435 = vpop.f32.mrf.mxu0
      %v2436 = vadd.f32 0.0, %v2435
      %v2437 = vpop.f32.mrf.mxu0
      %v2438 = vadd.f32 0.0, %v2437
      %2439 = vmatmul.bf16.gmra.mxu0 %v1758
      %v2440 = vpop.f32.mrf.mxu0
      %v2441 = vadd.f32 0.0, %v2440
      %v2442 = vpop.f32.mrf.mxu0
      %v2443 = vadd.f32 0.0, %v2442
      %2444 = vmatmul.bf16.gmra.mxu0 %v1761
      %v2445 = vpop.f32.mrf.mxu0
      %v2446 = vadd.f32 0.0, %v2445
      %v2447 = vpop.f32.mrf.mxu0
      %v2448 = vadd.f32 0.0, %v2447
      %2449 = vmatmul.bf16.gmra.mxu0 %v1764
      %v2450 = vpop.f32.mrf.mxu0
      %v2451 = vadd.f32 0.0, %v2450
      %v2452 = vpop.f32.mrf.mxu0
      %v2453 = vadd.f32 0.0, %v2452
      %2454 = vmatmul.bf16.gmra.mxu0 %v1767
      %v2455 = vpop.f32.mrf.mxu0
      %v2456 = vadd.f32 0.0, %v2455
      %v2457 = vpop.f32.mrf.mxu0
      %v2458 = vadd.f32 0.0, %v2457
      %2459 = vmatmul.bf16.gmra.mxu0 %v1770
      %v2460 = vpop.f32.mrf.mxu0
      %v2461 = vadd.f32 0.0, %v2460
      %v2462 = vpop.f32.mrf.mxu0
      %v2463 = vadd.f32 0.0, %v2462
      %2464 = vmatmul.bf16.gmra.mxu0 %v1773
      %v2465 = vpop.f32.mrf.mxu0
      %v2466 = vadd.f32 0.0, %v2465
      %v2467 = vpop.f32.mrf.mxu0
      %v2468 = vadd.f32 0.0, %v2467
      %2469 = vmatmul.bf16.gmra.mxu0 %v2381
      %v2470 = vpop.f32.mrf.mxu0
      %v2471 = vadd.f32 0.0, %v2470
      %v2472 = vpop.f32.mrf.mxu0
      %v2473 = vadd.f32 0.0, %v2472
      %2474 = vdwg.mxu0
      %v2475 = vadd.f32 %v2337, %v2396
      %v2476 = vadd.f32 %v2338, %v2398
      %v2477 = vadd.f32 %v2339, %v2401
      %v2478 = vadd.f32 %v2340, %v2403
      %v2479 = vadd.f32 %v2341, %v2406
      %v2480 = vadd.f32 %v2342, %v2408
      %v2481 = vadd.f32 %v2343, %v2411
      %v2482 = vadd.f32 %v2344, %v2413
      %v2483 = vadd.f32 %v2345, %v2416
      %v2484 = vadd.f32 %v2346, %v2418
      %v2485 = vadd.f32 %v2347, %v2421
      %v2486 = vadd.f32 %v2348, %v2423
      %v2487 = vadd.f32 %v2349, %v2426
      %v2488 = vadd.f32 %v2350, %v2428
      %v2489 = vadd.f32 %v2351, %v2431
      %v2490 = vadd.f32 %v2352, %v2433
      %v2491 = vadd.f32 %v2353, %v2436
      %v2492 = vadd.f32 %v2354, %v2438
      %v2493 = vadd.f32 %v2355, %v2441
      %v2494 = vadd.f32 %v2356, %v2443
      %v2495 = vadd.f32 %v2357, %v2446
      %v2496 = vadd.f32 %v2358, %v2448
      %v2497 = vadd.f32 %v2359, %v2451
      %v2498 = vadd.f32 %v2360, %v2453
      %v2499 = vadd.f32 %v2361, %v2456
      %v2500 = vadd.f32 %v2362, %v2458
      %v2501 = vadd.f32 %v2363, %v2461
      %v2502 = vadd.f32 %v2364, %v2463
      %v2503 = vadd.f32 %v2365, %v2466
      %v2504 = vadd.f32 %v2366, %v2468
      %v2505 = vadd.f32 %v2367, %v2471
      %v2506 = vadd.f32 %v2368, %v2473
      %v2509 = vunpack.c.l.b16 %v736
      %v2510 = vunpack.c.l.b16 %v737
      %v2511 = vpack.c.b16 %v2510, %v2509
      %v2513 = vsel %vm1186, %v2511, 0
      %v2516 = vsel %vm1235, %v747, 0
      %2518 = vmatpush.bf16.msra.mxu0 0
      %2519 = vmatpush.bf16.msra.mxu0 0
      %2520 = vmatpush.bf16.msra.mxu0 0
      %2521 = vmatpush.bf16.msra.mxu0 0
      %2522 = vmatpush.bf16.msra.mxu0 0
      %2523 = vmatpush.bf16.msra.mxu0 0
      %2524 = vmatpush.bf16.msra.mxu0 0
      %2525 = vmatpush.bf16.msra.mxu0 %v2516
      %2526 = vmatmul.bf16.gmra.mxu0 %v1415
      %v2527 = vpop.f32.mrf.mxu0
      %v2528 = vadd.f32 0.0, %v2527
      %v2529 = vpop.f32.mrf.mxu0
      %v2530 = vadd.f32 0.0, %v2529
      %2531 = vmatmul.bf16.gmra.mxu0 %v1418
      %v2532 = vpop.f32.mrf.mxu0
      %v2533 = vadd.f32 0.0, %v2532
      %v2534 = vpop.f32.mrf.mxu0
      %v2535 = vadd.f32 0.0, %v2534
      %2536 = vmatmul.bf16.gmra.mxu0 %v1421
      %v2537 = vpop.f32.mrf.mxu0
      %v2538 = vadd.f32 0.0, %v2537
      %v2539 = vpop.f32.mrf.mxu0
      %v2540 = vadd.f32 0.0, %v2539
      %2541 = vmatmul.bf16.gmra.mxu0 %v1424
      %v2542 = vpop.f32.mrf.mxu0
      %v2543 = vadd.f32 0.0, %v2542
      %v2544 = vpop.f32.mrf.mxu0
      %v2545 = vadd.f32 0.0, %v2544
      %2546 = vmatmul.bf16.gmra.mxu0 %v1427
      %v2547 = vpop.f32.mrf.mxu0
      %v2548 = vadd.f32 0.0, %v2547
      %v2549 = vpop.f32.mrf.mxu0
      %v2550 = vadd.f32 0.0, %v2549
      %2551 = vmatmul.bf16.gmra.mxu0 %v1430
      %v2552 = vpop.f32.mrf.mxu0
      %v2553 = vadd.f32 0.0, %v2552
      %v2554 = vpop.f32.mrf.mxu0
      %v2555 = vadd.f32 0.0, %v2554
      %2556 = vmatmul.bf16.gmra.mxu0 %v1433
      %v2557 = vpop.f32.mrf.mxu0
      %v2558 = vadd.f32 0.0, %v2557
      %v2559 = vpop.f32.mrf.mxu0
      %v2560 = vadd.f32 0.0, %v2559
      %2561 = vmatmul.bf16.gmra.mxu0 %v1436
      %v2562 = vpop.f32.mrf.mxu0
      %v2563 = vadd.f32 0.0, %v2562
      %v2564 = vpop.f32.mrf.mxu0
      %v2565 = vadd.f32 0.0, %v2564
      %2566 = vmatmul.bf16.gmra.mxu0 %v1439
      %v2567 = vpop.f32.mrf.mxu0
      %v2568 = vadd.f32 0.0, %v2567
      %v2569 = vpop.f32.mrf.mxu0
      %v2570 = vadd.f32 0.0, %v2569
      %2571 = vmatmul.bf16.gmra.mxu0 %v1442
      %v2572 = vpop.f32.mrf.mxu0
      %v2573 = vadd.f32 0.0, %v2572
      %v2574 = vpop.f32.mrf.mxu0
      %v2575 = vadd.f32 0.0, %v2574
      %2576 = vmatmul.bf16.gmra.mxu0 %v1445
      %v2577 = vpop.f32.mrf.mxu0
      %v2578 = vadd.f32 0.0, %v2577
      %v2579 = vpop.f32.mrf.mxu0
      %v2580 = vadd.f32 0.0, %v2579
      %2581 = vmatmul.bf16.gmra.mxu0 %v1448
      %v2582 = vpop.f32.mrf.mxu0
      %v2583 = vadd.f32 0.0, %v2582
      %v2584 = vpop.f32.mrf.mxu0
      %v2585 = vadd.f32 0.0, %v2584
      %2586 = vmatmul.bf16.gmra.mxu0 %v1451
      %v2587 = vpop.f32.mrf.mxu0
      %v2588 = vadd.f32 0.0, %v2587
      %v2589 = vpop.f32.mrf.mxu0
      %v2590 = vadd.f32 0.0, %v2589
      %2591 = vmatmul.bf16.gmra.mxu0 %v1454
      %v2592 = vpop.f32.mrf.mxu0
      %v2593 = vadd.f32 0.0, %v2592
      %v2594 = vpop.f32.mrf.mxu0
      %v2595 = vadd.f32 0.0, %v2594
      %2596 = vmatmul.bf16.gmra.mxu0 %v1965
      %v2597 = vpop.f32.mrf.mxu0
      %v2598 = vadd.f32 0.0, %v2597
      %v2599 = vpop.f32.mrf.mxu0
      %v2600 = vadd.f32 0.0, %v2599
      %2601 = vmatmul.bf16.gmra.mxu0 %v2513
      %v2602 = vpop.f32.mrf.mxu0
      %v2603 = vadd.f32 0.0, %v2602
      %v2604 = vpop.f32.mrf.mxu0
      %v2605 = vadd.f32 0.0, %v2604
      %2606 = vdwg.mxu0
      %v2607 = vadd.f32 %v2213, %v2528
      %v2608 = vadd.f32 %v2214, %v2530
      %v2609 = vadd.f32 %v2215, %v2533
      %v2610 = vadd.f32 %v2216, %v2535
      %v2611 = vadd.f32 %v2217, %v2538
      %v2612 = vadd.f32 %v2218, %v2540
      %v2613 = vadd.f32 %v2219, %v2543
      %v2614 = vadd.f32 %v2220, %v2545
      %v2615 = vadd.f32 %v2221, %v2548
      %v2616 = vadd.f32 %v2222, %v2550
      %v2617 = vadd.f32 %v2223, %v2553
      %v2618 = vadd.f32 %v2224, %v2555
      %v2619 = vadd.f32 %v2225, %v2558
      %v2620 = vadd.f32 %v2226, %v2560
      %v2621 = vadd.f32 %v2227, %v2563
      %v2622 = vadd.f32 %v2228, %v2565
      %v2623 = vadd.f32 %v2229, %v2568
      %v2624 = vadd.f32 %v2230, %v2570
      %v2625 = vadd.f32 %v2231, %v2573
      %v2626 = vadd.f32 %v2232, %v2575
      %v2627 = vadd.f32 %v2233, %v2578
      %v2628 = vadd.f32 %v2234, %v2580
      %v2629 = vadd.f32 %v2235, %v2583
      %v2630 = vadd.f32 %v2236, %v2585
      %v2631 = vadd.f32 %v2237, %v2588
      %v2632 = vadd.f32 %v2238, %v2590
      %v2633 = vadd.f32 %v2239, %v2593
      %v2634 = vadd.f32 %v2240, %v2595
      %v2635 = vadd.f32 %v2241, %v2598
      %v2636 = vadd.f32 %v2242, %v2600
      %v2637 = vadd.f32 %v2243, %v2603
      %v2638 = vadd.f32 %v2244, %v2605
      %v2640 = vshrl.u32 %v736, 16
      %v2642 = vrot.slane %v2640, 4
      %v2643 = vshll.u32 %v736, 16
      %v2645 = vrot.slane %v2643, 5
      %v2646 = vor.u32 %v2642, %v2645
      %v2647 = vrot.slane %v2646, 4
      %v2649 = vshll.u32 %v737, 16
      %v2651 = vrot.slane %v2649, 5
      %v2652 = vsel %vm753, %v2647, %v2651
      %v2653 = vshrl.u32 %v737, 16
      %v2655 = vrot.slane %v2653, 4
      %v2656 = vor.u32 %v2655, %v2651
      %v2657 = vrot.slane %v2656, 4
      %v2659 = vshll.u32 %v738, 16
      %v2661 = vrot.slane %v2659, 5
      %v2662 = vsel %vm753, %v2657, %v2661
      %v2663 = vunpack.c.l.b16 %v2652
      %v2664 = vunpack.c.l.b16 %v2662
      %v2665 = vpack.c.b16 %v2664, %v2663
      %v2667 = vsel %vm1186, %v2665, 0
      %v2670 = vsel %vm1235, %v748, 0
      %2672 = vmatpush.bf16.msra.mxu0 0
      %2673 = vmatpush.bf16.msra.mxu0 0
      %2674 = vmatpush.bf16.msra.mxu0 0
      %2675 = vmatpush.bf16.msra.mxu0 0
      %2676 = vmatpush.bf16.msra.mxu0 0
      %2677 = vmatpush.bf16.msra.mxu0 0
      %2678 = vmatpush.bf16.msra.mxu0 0
      %2679 = vmatpush.bf16.msra.mxu0 %v2670
      %2680 = vmatmul.bf16.gmra.mxu0 %v1194
      %v2681 = vpop.f32.mrf.mxu0
      %v2682 = vadd.f32 0.0, %v2681
      %v2683 = vpop.f32.mrf.mxu0
      %v2684 = vadd.f32 0.0, %v2683
      %2685 = vmatmul.bf16.gmra.mxu0 %v1197
      %v2686 = vpop.f32.mrf.mxu0
      %v2687 = vadd.f32 0.0, %v2686
      %v2688 = vpop.f32.mrf.mxu0
      %v2689 = vadd.f32 0.0, %v2688
      %2690 = vmatmul.bf16.gmra.mxu0 %v1200
      %v2691 = vpop.f32.mrf.mxu0
      %v2692 = vadd.f32 0.0, %v2691
      %v2693 = vpop.f32.mrf.mxu0
      %v2694 = vadd.f32 0.0, %v2693
      %2695 = vmatmul.bf16.gmra.mxu0 %v1203
      %v2696 = vpop.f32.mrf.mxu0
      %v2697 = vadd.f32 0.0, %v2696
      %v2698 = vpop.f32.mrf.mxu0
      %v2699 = vadd.f32 0.0, %v2698
      %2700 = vmatmul.bf16.gmra.mxu0 %v1206
      %v2701 = vpop.f32.mrf.mxu0
      %v2702 = vadd.f32 0.0, %v2701
      %v2703 = vpop.f32.mrf.mxu0
      %v2704 = vadd.f32 0.0, %v2703
      %2705 = vmatmul.bf16.gmra.mxu0 %v1209
      %v2706 = vpop.f32.mrf.mxu0
      %v2707 = vadd.f32 0.0, %v2706
      %v2708 = vpop.f32.mrf.mxu0
      %v2709 = vadd.f32 0.0, %v2708
      %2710 = vmatmul.bf16.gmra.mxu0 %v1212
      %v2711 = vpop.f32.mrf.mxu0
      %v2712 = vadd.f32 0.0, %v2711
      %v2713 = vpop.f32.mrf.mxu0
      %v2714 = vadd.f32 0.0, %v2713
      %2715 = vmatmul.bf16.gmra.mxu0 %v1215
      %v2716 = vpop.f32.mrf.mxu0
      %v2717 = vadd.f32 0.0, %v2716
      %v2718 = vpop.f32.mrf.mxu0
      %v2719 = vadd.f32 0.0, %v2718
      %2720 = vmatmul.bf16.gmra.mxu0 %v1218
      %v2721 = vpop.f32.mrf.mxu0
      %v2722 = vadd.f32 0.0, %v2721
      %v2723 = vpop.f32.mrf.mxu0
      %v2724 = vadd.f32 0.0, %v2723
      %2725 = vmatmul.bf16.gmra.mxu0 %v1221
      %v2726 = vpop.f32.mrf.mxu0
      %v2727 = vadd.f32 0.0, %v2726
      %v2728 = vpop.f32.mrf.mxu0
      %v2729 = vadd.f32 0.0, %v2728
      %2730 = vmatmul.bf16.gmra.mxu0 %v1224
      %v2731 = vpop.f32.mrf.mxu0
      %v2732 = vadd.f32 0.0, %v2731
      %v2733 = vpop.f32.mrf.mxu0
      %v2734 = vadd.f32 0.0, %v2733
      %2735 = vmatmul.bf16.gmra.mxu0 %v1227
      %v2736 = vpop.f32.mrf.mxu0
      %v2737 = vadd.f32 0.0, %v2736
      %v2738 = vpop.f32.mrf.mxu0
      %v2739 = vadd.f32 0.0, %v2738
      %2740 = vmatmul.bf16.gmra.mxu0 %v1230
      %v2741 = vpop.f32.mrf.mxu0
      %v2742 = vadd.f32 0.0, %v2741
      %v2743 = vpop.f32.mrf.mxu0
      %v2744 = vadd.f32 0.0, %v2743
      %2745 = vmatmul.bf16.gmra.mxu0 %v1233
      %v2746 = vpop.f32.mrf.mxu0
      %v2747 = vadd.f32 0.0, %v2746
      %v2748 = vpop.f32.mrf.mxu0
      %v2749 = vadd.f32 0.0, %v2748
      %2750 = vmatmul.bf16.gmra.mxu0 %v2119
      %v2751 = vpop.f32.mrf.mxu0
      %v2752 = vadd.f32 0.0, %v2751
      %v2753 = vpop.f32.mrf.mxu0
      %v2754 = vadd.f32 0.0, %v2753
      %2755 = vmatmul.bf16.gmra.mxu0 %v2667
      %v2756 = vpop.f32.mrf.mxu0
      %v2757 = vadd.f32 0.0, %v2756
      %v2758 = vpop.f32.mrf.mxu0
      %v2759 = vadd.f32 0.0, %v2758
      %2760 = vdwg.mxu0
      %v2761 = vadd.f32 %v2607, %v2682
      %v2762 = vadd.f32 %v2608, %v2684
      %v2763 = vadd.f32 %v2609, %v2687
      %v2764 = vadd.f32 %v2610, %v2689
      %v2765 = vadd.f32 %v2611, %v2692
      %v2766 = vadd.f32 %v2612, %v2694
      %v2767 = vadd.f32 %v2613, %v2697
      %v2768 = vadd.f32 %v2614, %v2699
      %v2769 = vadd.f32 %v2615, %v2702
      %v2770 = vadd.f32 %v2616, %v2704
      %v2771 = vadd.f32 %v2617, %v2707
      %v2772 = vadd.f32 %v2618, %v2709
      %v2773 = vadd.f32 %v2619, %v2712
      %v2774 = vadd.f32 %v2620, %v2714
      %v2775 = vadd.f32 %v2621, %v2717
      %v2776 = vadd.f32 %v2622, %v2719
      %v2777 = vadd.f32 %v2623, %v2722
      %v2778 = vadd.f32 %v2624, %v2724
      %v2779 = vadd.f32 %v2625, %v2727
      %v2780 = vadd.f32 %v2626, %v2729
      %v2781 = vadd.f32 %v2627, %v2732
      %v2782 = vadd.f32 %v2628, %v2734
      %v2783 = vadd.f32 %v2629, %v2737
      %v2784 = vadd.f32 %v2630, %v2739
      %v2785 = vadd.f32 %v2631, %v2742
      %v2786 = vadd.f32 %v2632, %v2744
      %v2787 = vadd.f32 %v2633, %v2747
      %v2788 = vadd.f32 %v2634, %v2749
      %v2789 = vadd.f32 %v2635, %v2752
      %v2790 = vadd.f32 %v2636, %v2754
      %v2791 = vadd.f32 %v2637, %v2757
      %v2792 = vadd.f32 %v2638, %v2759
      %v2794 = vsel %vm1235, %v749, 0
      %2796 = vmatpush.bf16.msra.mxu0 0
      %2797 = vmatpush.bf16.msra.mxu0 0
      %2798 = vmatpush.bf16.msra.mxu0 0
      %2799 = vmatpush.bf16.msra.mxu0 0
      %2800 = vmatpush.bf16.msra.mxu0 0
      %2801 = vmatpush.bf16.msra.mxu0 0
      %2802 = vmatpush.bf16.msra.mxu0 0
      %2803 = vmatpush.bf16.msra.mxu0 %v2794
      %2804 = vmatmul.bf16.gmra.mxu0 %v1194
      %v2805 = vpop.f32.mrf.mxu0
      %v2806 = vadd.f32 0.0, %v2805
      %v2807 = vpop.f32.mrf.mxu0
      %v2808 = vadd.f32 0.0, %v2807
      %2809 = vmatmul.bf16.gmra.mxu0 %v1197
      %v2810 = vpop.f32.mrf.mxu0
      %v2811 = vadd.f32 0.0, %v2810
      %v2812 = vpop.f32.mrf.mxu0
      %v2813 = vadd.f32 0.0, %v2812
      %2814 = vmatmul.bf16.gmra.mxu0 %v1200
      %v2815 = vpop.f32.mrf.mxu0
      %v2816 = vadd.f32 0.0, %v2815
      %v2817 = vpop.f32.mrf.mxu0
      %v2818 = vadd.f32 0.0, %v2817
      %2819 = vmatmul.bf16.gmra.mxu0 %v1203
      %v2820 = vpop.f32.mrf.mxu0
      %v2821 = vadd.f32 0.0, %v2820
      %v2822 = vpop.f32.mrf.mxu0
      %v2823 = vadd.f32 0.0, %v2822
      %2824 = vmatmul.bf16.gmra.mxu0 %v1206
      %v2825 = vpop.f32.mrf.mxu0
      %v2826 = vadd.f32 0.0, %v2825
      %v2827 = vpop.f32.mrf.mxu0
      %v2828 = vadd.f32 0.0, %v2827
      %2829 = vmatmul.bf16.gmra.mxu0 %v1209
      %v2830 = vpop.f32.mrf.mxu0
      %v2831 = vadd.f32 0.0, %v2830
      %v2832 = vpop.f32.mrf.mxu0
      %v2833 = vadd.f32 0.0, %v2832
      %2834 = vmatmul.bf16.gmra.mxu0 %v1212
      %v2835 = vpop.f32.mrf.mxu0
      %v2836 = vadd.f32 0.0, %v2835
      %v2837 = vpop.f32.mrf.mxu0
      %v2838 = vadd.f32 0.0, %v2837
      %2839 = vmatmul.bf16.gmra.mxu0 %v1215
      %v2840 = vpop.f32.mrf.mxu0
      %v2841 = vadd.f32 0.0, %v2840
      %v2842 = vpop.f32.mrf.mxu0
      %v2843 = vadd.f32 0.0, %v2842
      %2844 = vmatmul.bf16.gmra.mxu0 %v1218
      %v2845 = vpop.f32.mrf.mxu0
      %v2846 = vadd.f32 0.0, %v2845
      %v2847 = vpop.f32.mrf.mxu0
      %v2848 = vadd.f32 0.0, %v2847
      %2849 = vmatmul.bf16.gmra.mxu0 %v1221
      %v2850 = vpop.f32.mrf.mxu0
      %v2851 = vadd.f32 0.0, %v2850
      %v2852 = vpop.f32.mrf.mxu0
      %v2853 = vadd.f32 0.0, %v2852
      %2854 = vmatmul.bf16.gmra.mxu0 %v1224
      %v2855 = vpop.f32.mrf.mxu0
      %v2856 = vadd.f32 0.0, %v2855
      %v2857 = vpop.f32.mrf.mxu0
      %v2858 = vadd.f32 0.0, %v2857
      %2859 = vmatmul.bf16.gmra.mxu0 %v1227
      %v2860 = vpop.f32.mrf.mxu0
      %v2861 = vadd.f32 0.0, %v2860
      %v2862 = vpop.f32.mrf.mxu0
      %v2863 = vadd.f32 0.0, %v2862
      %2864 = vmatmul.bf16.gmra.mxu0 %v1230
      %v2865 = vpop.f32.mrf.mxu0
      %v2866 = vadd.f32 0.0, %v2865
      %v2867 = vpop.f32.mrf.mxu0
      %v2868 = vadd.f32 0.0, %v2867
      %2869 = vmatmul.bf16.gmra.mxu0 %v1233
      %v2870 = vpop.f32.mrf.mxu0
      %v2871 = vadd.f32 0.0, %v2870
      %v2872 = vpop.f32.mrf.mxu0
      %v2873 = vadd.f32 0.0, %v2872
      %2874 = vmatmul.bf16.gmra.mxu0 %v2119
      %v2875 = vpop.f32.mrf.mxu0
      %v2876 = vadd.f32 0.0, %v2875
      %v2877 = vpop.f32.mrf.mxu0
      %v2878 = vadd.f32 0.0, %v2877
      %2879 = vmatmul.bf16.gmra.mxu0 %v2667
      %v2880 = vpop.f32.mrf.mxu0
      %v2881 = vadd.f32 0.0, %v2880
      %v2882 = vpop.f32.mrf.mxu0
      %v2883 = vadd.f32 0.0, %v2882
      %2884 = vdwg.mxu0
      %v2885 = vadd.f32 %v2475, %v2806
      %v2886 = vadd.f32 %v2476, %v2808
      %v2887 = vadd.f32 %v2477, %v2811
      %v2888 = vadd.f32 %v2478, %v2813
      %v2889 = vadd.f32 %v2479, %v2816
      %v2890 = vadd.f32 %v2480, %v2818
      %v2891 = vadd.f32 %v2481, %v2821
      %v2892 = vadd.f32 %v2482, %v2823
      %v2893 = vadd.f32 %v2483, %v2826
      %v2894 = vadd.f32 %v2484, %v2828
      %v2895 = vadd.f32 %v2485, %v2831
      %v2896 = vadd.f32 %v2486, %v2833
      %v2897 = vadd.f32 %v2487, %v2836
      %v2898 = vadd.f32 %v2488, %v2838
      %v2899 = vadd.f32 %v2489, %v2841
      %v2900 = vadd.f32 %v2490, %v2843
      %v2901 = vadd.f32 %v2491, %v2846
      %v2902 = vadd.f32 %v2492, %v2848
      %v2903 = vadd.f32 %v2493, %v2851
      %v2904 = vadd.f32 %v2494, %v2853
      %v2905 = vadd.f32 %v2495, %v2856
      %v2906 = vadd.f32 %v2496, %v2858
      %v2907 = vadd.f32 %v2497, %v2861
      %v2908 = vadd.f32 %v2498, %v2863
      %v2909 = vadd.f32 %v2499, %v2866
      %v2910 = vadd.f32 %v2500, %v2868
      %v2911 = vadd.f32 %v2501, %v2871
      %v2912 = vadd.f32 %v2502, %v2873
      %v2913 = vadd.f32 %v2503, %v2876
      %v2914 = vadd.f32 %v2504, %v2878
      %v2915 = vadd.f32 %v2505, %v2881
      %v2916 = vadd.f32 %v2506, %v2883
      %v2918 = vrot.slane %v736, 5
      %v2919 = vrot.slane %v2918, 4
      %v2920 = vrot.slane %v737, 5
      %v2921 = vsel %vm1566, %v2919, %v2920
      %v2922 = vrot.slane %v2920, 4
      %v2923 = vrot.slane %v738, 5
      %v2924 = vsel %vm1566, %v2922, %v2923
      %v2925 = vunpack.c.l.b16 %v2921
      %v2926 = vunpack.c.l.b16 %v2924
      %v2927 = vpack.c.b16 %v2926, %v2925
      %v2929 = vsel %vm1186, %v2927, 0
      %v2932 = vsel %vm1235, %v750, 0
      %2934 = vmatpush.bf16.msra.mxu0 0
      %2935 = vmatpush.bf16.msra.mxu0 0
      %2936 = vmatpush.bf16.msra.mxu0 0
      %2937 = vmatpush.bf16.msra.mxu0 0
      %2938 = vmatpush.bf16.msra.mxu0 0
      %2939 = vmatpush.bf16.msra.mxu0 0
      %2940 = vmatpush.bf16.msra.mxu0 0
      %2941 = vmatpush.bf16.msra.mxu0 %v2932
      %2942 = vmatmul.bf16.gmra.mxu0 %v1734
      %v2943 = vpop.f32.mrf.mxu0
      %v2944 = vadd.f32 0.0, %v2943
      %v2945 = vpop.f32.mrf.mxu0
      %v2946 = vadd.f32 0.0, %v2945
      %2947 = vmatmul.bf16.gmra.mxu0 %v1737
      %v2948 = vpop.f32.mrf.mxu0
      %v2949 = vadd.f32 0.0, %v2948
      %v2950 = vpop.f32.mrf.mxu0
      %v2951 = vadd.f32 0.0, %v2950
      %2952 = vmatmul.bf16.gmra.mxu0 %v1740
      %v2953 = vpop.f32.mrf.mxu0
      %v2954 = vadd.f32 0.0, %v2953
      %v2955 = vpop.f32.mrf.mxu0
      %v2956 = vadd.f32 0.0, %v2955
      %2957 = vmatmul.bf16.gmra.mxu0 %v1743
      %v2958 = vpop.f32.mrf.mxu0
      %v2959 = vadd.f32 0.0, %v2958
      %v2960 = vpop.f32.mrf.mxu0
      %v2961 = vadd.f32 0.0, %v2960
      %2962 = vmatmul.bf16.gmra.mxu0 %v1746
      %v2963 = vpop.f32.mrf.mxu0
      %v2964 = vadd.f32 0.0, %v2963
      %v2965 = vpop.f32.mrf.mxu0
      %v2966 = vadd.f32 0.0, %v2965
      %2967 = vmatmul.bf16.gmra.mxu0 %v1749
      %v2968 = vpop.f32.mrf.mxu0
      %v2969 = vadd.f32 0.0, %v2968
      %v2970 = vpop.f32.mrf.mxu0
      %v2971 = vadd.f32 0.0, %v2970
      %2972 = vmatmul.bf16.gmra.mxu0 %v1752
      %v2973 = vpop.f32.mrf.mxu0
      %v2974 = vadd.f32 0.0, %v2973
      %v2975 = vpop.f32.mrf.mxu0
      %v2976 = vadd.f32 0.0, %v2975
      %2977 = vmatmul.bf16.gmra.mxu0 %v1755
      %v2978 = vpop.f32.mrf.mxu0
      %v2979 = vadd.f32 0.0, %v2978
      %v2980 = vpop.f32.mrf.mxu0
      %v2981 = vadd.f32 0.0, %v2980
      %2982 = vmatmul.bf16.gmra.mxu0 %v1758
      %v2983 = vpop.f32.mrf.mxu0
      %v2984 = vadd.f32 0.0, %v2983
      %v2985 = vpop.f32.mrf.mxu0
      %v2986 = vadd.f32 0.0, %v2985
      %2987 = vmatmul.bf16.gmra.mxu0 %v1761
      %v2988 = vpop.f32.mrf.mxu0
      %v2989 = vadd.f32 0.0, %v2988
      %v2990 = vpop.f32.mrf.mxu0
      %v2991 = vadd.f32 0.0, %v2990
      %2992 = vmatmul.bf16.gmra.mxu0 %v1764
      %v2993 = vpop.f32.mrf.mxu0
      %v2994 = vadd.f32 0.0, %v2993
      %v2995 = vpop.f32.mrf.mxu0
      %v2996 = vadd.f32 0.0, %v2995
      %2997 = vmatmul.bf16.gmra.mxu0 %v1767
      %v2998 = vpop.f32.mrf.mxu0
      %v2999 = vadd.f32 0.0, %v2998
      %v3000 = vpop.f32.mrf.mxu0
      %v3001 = vadd.f32 0.0, %v3000
      %3002 = vmatmul.bf16.gmra.mxu0 %v1770
      %v3003 = vpop.f32.mrf.mxu0
      %v3004 = vadd.f32 0.0, %v3003
      %v3005 = vpop.f32.mrf.mxu0
      %v3006 = vadd.f32 0.0, %v3005
      %3007 = vmatmul.bf16.gmra.mxu0 %v1773
      %v3008 = vpop.f32.mrf.mxu0
      %v3009 = vadd.f32 0.0, %v3008
      %v3010 = vpop.f32.mrf.mxu0
      %v3011 = vadd.f32 0.0, %v3010
      %3012 = vmatmul.bf16.gmra.mxu0 %v2381
      %v3013 = vpop.f32.mrf.mxu0
      %v3014 = vadd.f32 0.0, %v3013
      %v3015 = vpop.f32.mrf.mxu0
      %v3016 = vadd.f32 0.0, %v3015
      %3017 = vmatmul.bf16.gmra.mxu0 %v2929
      %v3018 = vpop.f32.mrf.mxu0
      %v3019 = vadd.f32 0.0, %v3018
      %v3020 = vpop.f32.mrf.mxu0
      %v3021 = vadd.f32 0.0, %v3020
      %3022 = vdwg.mxu0
      %v3023 = vadd.f32 %v2885, %v2944
      %v3024 = vadd.f32 %v2886, %v2946
      %v3025 = vadd.f32 %v2887, %v2949
      %v3026 = vadd.f32 %v2888, %v2951
      %v3027 = vadd.f32 %v2889, %v2954
      %v3028 = vadd.f32 %v2890, %v2956
      %v3029 = vadd.f32 %v2891, %v2959
      %v3030 = vadd.f32 %v2892, %v2961
      %v3031 = vadd.f32 %v2893, %v2964
      %v3032 = vadd.f32 %v2894, %v2966
      %v3033 = vadd.f32 %v2895, %v2969
      %v3034 = vadd.f32 %v2896, %v2971
      %v3035 = vadd.f32 %v2897, %v2974
      %v3036 = vadd.f32 %v2898, %v2976
      %v3037 = vadd.f32 %v2899, %v2979
      %v3038 = vadd.f32 %v2900, %v2981
      %v3039 = vadd.f32 %v2901, %v2984
      %v3040 = vadd.f32 %v2902, %v2986
      %v3041 = vadd.f32 %v2903, %v2989
      %v3042 = vadd.f32 %v2904, %v2991
      %v3043 = vadd.f32 %v2905, %v2994
      %v3044 = vadd.f32 %v2906, %v2996
      %v3045 = vadd.f32 %v2907, %v2999
      %v3046 = vadd.f32 %v2908, %v3001
      %v3047 = vadd.f32 %v2909, %v3004
      %v3048 = vadd.f32 %v2910, %v3006
      %v3049 = vadd.f32 %v2911, %v3009
      %v3050 = vadd.f32 %v2912, %v3011
      %v3051 = vadd.f32 %v2913, %v3014
      %v3052 = vadd.f32 %v2914, %v3016
      %v3053 = vadd.f32 %v2915, %v3019
      %v3054 = vadd.f32 %v2916, %v3021
      %v3055 = vld [vmem:[%s2] sm:$0x1]
      %v3057 = vperm.slane %v3055, 0
      %v3059 = vadd.f32 %v2761, %v3057
      %v3060 = vadd.f32 %v2762, %v3057
      %v3061 = vadd.f32 %v2763, %v3057
      %v3062 = vadd.f32 %v2764, %v3057
      %v3063 = vadd.f32 %v2765, %v3057
      %v3064 = vadd.f32 %v2766, %v3057
      %v3065 = vadd.f32 %v2767, %v3057
      %v3066 = vadd.f32 %v2768, %v3057
      %v3067 = vadd.f32 %v2769, %v3057
      %v3068 = vadd.f32 %v2770, %v3057
      %v3069 = vadd.f32 %v2771, %v3057
      %v3070 = vadd.f32 %v2772, %v3057
      %v3071 = vadd.f32 %v2773, %v3057
      %v3072 = vadd.f32 %v2774, %v3057
      %v3073 = vadd.f32 %v2775, %v3057
      %v3074 = vadd.f32 %v2776, %v3057
      %v3075 = vadd.f32 %v2777, %v3057
      %v3076 = vadd.f32 %v2778, %v3057
      %v3077 = vadd.f32 %v2779, %v3057
      %v3078 = vadd.f32 %v2780, %v3057
      %v3079 = vadd.f32 %v2781, %v3057
      %v3080 = vadd.f32 %v2782, %v3057
      %v3081 = vadd.f32 %v2783, %v3057
      %v3082 = vadd.f32 %v2784, %v3057
      %v3083 = vadd.f32 %v2785, %v3057
      %v3084 = vadd.f32 %v2786, %v3057
      %v3085 = vadd.f32 %v2787, %v3057
      %v3086 = vadd.f32 %v2788, %v3057
      %v3087 = vadd.f32 %v2789, %v3057
      %v3088 = vadd.f32 %v2790, %v3057
      %v3089 = vadd.f32 %v2791, %v3057
      %v3090 = vadd.f32 %v2792, %v3057
      %v3091 = vadd.f32 %v3023, %v3057
      %v3092 = vadd.f32 %v3024, %v3057
      %v3093 = vadd.f32 %v3025, %v3057
      %v3094 = vadd.f32 %v3026, %v3057
      %v3095 = vadd.f32 %v3027, %v3057
      %v3096 = vadd.f32 %v3028, %v3057
      %v3097 = vadd.f32 %v3029, %v3057
      %v3098 = vadd.f32 %v3030, %v3057
      %v3099 = vadd.f32 %v3031, %v3057
      %v3100 = vadd.f32 %v3032, %v3057
      %v3101 = vadd.f32 %v3033, %v3057
      %v3102 = vadd.f32 %v3034, %v3057
      %v3103 = vadd.f32 %v3035, %v3057
      %v3104 = vadd.f32 %v3036, %v3057
      %v3105 = vadd.f32 %v3037, %v3057
      %v3106 = vadd.f32 %v3038, %v3057
      %v3107 = vadd.f32 %v3039, %v3057
      %v3108 = vadd.f32 %v3040, %v3057
      %v3109 = vadd.f32 %v3041, %v3057
      %v3110 = vadd.f32 %v3042, %v3057
      %v3111 = vadd.f32 %v3043, %v3057
      %v3112 = vadd.f32 %v3044, %v3057
      %v3113 = vadd.f32 %v3045, %v3057
      %v3114 = vadd.f32 %v3046, %v3057
      %v3115 = vadd.f32 %v3047, %v3057
      %v3116 = vadd.f32 %v3048, %v3057
      %v3117 = vadd.f32 %v3049, %v3057
      %v3118 = vadd.f32 %v3050, %v3057
      %v3119 = vadd.f32 %v3051, %v3057
      %v3120 = vadd.f32 %v3052, %v3057
      %v3121 = vadd.f32 %v3053, %v3057
      %v3122 = vadd.f32 %v3054, %v3057
      %vm3123 = vcmask 64512
      %3124 = vst.msk [vmem:[%s234] sm:$0xff] %vm3123, %v3059
      %3125 = vst.msk [vmem:[%s234 + $0x8] sm:$0xff] %vm3123, %v3060
      %3126 = vst.msk [vmem:[%s234 + $0x20] sm:$0xff] %vm3123, %v3061
      %3127 = vst.msk [vmem:[%s234 + $0x28] sm:$0xff] %vm3123, %v3062
      %3128 = vst.msk [vmem:[%s234 + $0x40] sm:$0xff] %vm3123, %v3063
      %3129 = vst.msk [vmem:[%s234 + $0x48] sm:$0xff] %vm3123, %v3064
      %3130 = vst.msk [vmem:[%s234 + $0x60] sm:$0xff] %vm3123, %v3065
      %3131 = vst.msk [vmem:[%s234 + $0x68] sm:$0xff] %vm3123, %v3066
      %3132 = vst.msk [vmem:[%s234 + $0x80] sm:$0xff] %vm3123, %v3067
      %3133 = vst.msk [vmem:[%s234 + $0x88] sm:$0xff] %vm3123, %v3068
      %3134 = vst.msk [vmem:[%s234 + $0xa0] sm:$0xff] %vm3123, %v3069
      %3135 = vst.msk [vmem:[%s234 + $0xa8] sm:$0xff] %vm3123, %v3070
      %3136 = vst.msk [vmem:[%s234 + $0xc0] sm:$0xff] %vm3123, %v3071
      %3137 = vst.msk [vmem:[%s234 + $0xc8] sm:$0xff] %vm3123, %v3072
      %3138 = vst.msk [vmem:[%s234 + $0xe0] sm:$0xff] %vm3123, %v3073
      %3139 = vst.msk [vmem:[%s234 + $0xe8] sm:$0xff] %vm3123, %v3074
      %3140 = vst.msk [vmem:[%s234 + $0x100] sm:$0xff] %vm3123, %v3075
      %3141 = vst.msk [vmem:[%s234 + $0x108] sm:$0xff] %vm3123, %v3076
      %3142 = vst.msk [vmem:[%s234 + $0x120] sm:$0xff] %vm3123, %v3077
      %3143 = vst.msk [vmem:[%s234 + $0x128] sm:$0xff] %vm3123, %v3078
      %3144 = vst.msk [vmem:[%s234 + $0x140] sm:$0xff] %vm3123, %v3079
      %3145 = vst.msk [vmem:[%s234 + $0x148] sm:$0xff] %vm3123, %v3080
      %3146 = vst.msk [vmem:[%s234 + $0x160] sm:$0xff] %vm3123, %v3081
      %3147 = vst.msk [vmem:[%s234 + $0x168] sm:$0xff] %vm3123, %v3082
      %3148 = vst.msk [vmem:[%s234 + $0x180] sm:$0xff] %vm3123, %v3083
      %3149 = vst.msk [vmem:[%s234 + $0x188] sm:$0xff] %vm3123, %v3084
      %3150 = vst.msk [vmem:[%s234 + $0x1a0] sm:$0xff] %vm3123, %v3085
      %3151 = vst.msk [vmem:[%s234 + $0x1a8] sm:$0xff] %vm3123, %v3086
      %3152 = vst.msk [vmem:[%s234 + $0x1c0] sm:$0xff] %vm3123, %v3087
      %3153 = vst.msk [vmem:[%s234 + $0x1c8] sm:$0xff] %vm3123, %v3088
      %3154 = vst.msk [vmem:[%s234 + $0x1e0] sm:$0xff] %vm3123, %v3089
      %3155 = vst.msk [vmem:[%s234 + $0x1e8] sm:$0xff] %vm3123, %v3090
      %s3156 = scalar_lea.vmem %s234, 16
      %3157 = vst.msk [vmem:[%s3156] sm:$0xff] %vm3123, %v3091
      %3158 = vst.msk [vmem:[%s3156 + $0x8] sm:$0xff] %vm3123, %v3092
      %3159 = vst.msk [vmem:[%s3156 + $0x20] sm:$0xff] %vm3123, %v3093
      %3160 = vst.msk [vmem:[%s3156 + $0x28] sm:$0xff] %vm3123, %v3094
      %3161 = vst.msk [vmem:[%s3156 + $0x40] sm:$0xff] %vm3123, %v3095
      %3162 = vst.msk [vmem:[%s3156 + $0x48] sm:$0xff] %vm3123, %v3096
      %3163 = vst.msk [vmem:[%s3156 + $0x60] sm:$0xff] %vm3123, %v3097
      %3164 = vst.msk [vmem:[%s3156 + $0x68] sm:$0xff] %vm3123, %v3098
      %3165 = vst.msk [vmem:[%s3156 + $0x80] sm:$0xff] %vm3123, %v3099
      %3166 = vst.msk [vmem:[%s3156 + $0x88] sm:$0xff] %vm3123, %v3100
      %3167 = vst.msk [vmem:[%s3156 + $0xa0] sm:$0xff] %vm3123, %v3101
      %3168 = vst.msk [vmem:[%s3156 + $0xa8] sm:$0xff] %vm3123, %v3102
      %3169 = vst.msk [vmem:[%s3156 + $0xc0] sm:$0xff] %vm3123, %v3103
      %3170 = vst.msk [vmem:[%s3156 + $0xc8] sm:$0xff] %vm3123, %v3104
      %3171 = vst.msk [vmem:[%s3156 + $0xe0] sm:$0xff] %vm3123, %v3105
      %3172 = vst.msk [vmem:[%s3156 + $0xe8] sm:$0xff] %vm3123, %v3106
      %3173 = vst.msk [vmem:[%s3156 + $0x100] sm:$0xff] %vm3123, %v3107
      %3174 = vst.msk [vmem:[%s3156 + $0x108] sm:$0xff] %vm3123, %v3108
      %3175 = vst.msk [vmem:[%s3156 + $0x120] sm:$0xff] %vm3123, %v3109
      %3176 = vst.msk [vmem:[%s3156 + $0x128] sm:$0xff] %vm3123, %v3110
      %3177 = vst.msk [vmem:[%s3156 + $0x140] sm:$0xff] %vm3123, %v3111
      %3178 = vst.msk [vmem:[%s3156 + $0x148] sm:$0xff] %vm3123, %v3112
      %3179 = vst.msk [vmem:[%s3156 + $0x160] sm:$0xff] %vm3123, %v3113
      %3180 = vst.msk [vmem:[%s3156 + $0x168] sm:$0xff] %vm3123, %v3114
      %3181 = vst.msk [vmem:[%s3156 + $0x180] sm:$0xff] %vm3123, %v3115
      %3182 = vst.msk [vmem:[%s3156 + $0x188] sm:$0xff] %vm3123, %v3116
      %3183 = vst.msk [vmem:[%s3156 + $0x1a0] sm:$0xff] %vm3123, %v3117
      %3184 = vst.msk [vmem:[%s3156 + $0x1a8] sm:$0xff] %vm3123, %v3118
      %3185 = vst.msk [vmem:[%s3156 + $0x1c0] sm:$0xff] %vm3123, %v3119
      %3186 = vst.msk [vmem:[%s3156 + $0x1c8] sm:$0xff] %vm3123, %v3120
      %3187 = vst.msk [vmem:[%s3156 + $0x1e0] sm:$0xff] %vm3123, %v3121
      %3188 = vst.msk [vmem:[%s3156 + $0x1e8] sm:$0xff] %vm3123, %v3122
      %v3189 = vsel %vm3123, %v3059, 0.0
      %v3190 = vsel %vm3123, %v3060, 0.0
      %v3191 = vadd.f32 %v3189, %v3190
      %v3192 = vsel %vm3123, %v3061, 0.0
      %v3193 = vadd.f32 %v3191, %v3192
      %v3194 = vsel %vm3123, %v3062, 0.0
      %v3195 = vadd.f32 %v3193, %v3194
      %v3196 = vsel %vm3123, %v3063, 0.0
      %v3197 = vadd.f32 %v3195, %v3196
      %v3198 = vsel %vm3123, %v3064, 0.0
      %v3199 = vadd.f32 %v3197, %v3198
      %v3200 = vsel %vm3123, %v3065, 0.0
      %v3201 = vadd.f32 %v3199, %v3200
      %v3202 = vsel %vm3123, %v3066, 0.0
      %v3203 = vadd.f32 %v3201, %v3202
      %v3204 = vsel %vm3123, %v3067, 0.0
      %v3205 = vadd.f32 %v3203, %v3204
      %v3206 = vsel %vm3123, %v3068, 0.0
      %v3207 = vadd.f32 %v3205, %v3206
      %v3208 = vsel %vm3123, %v3069, 0.0
      %v3209 = vadd.f32 %v3207, %v3208
      %v3210 = vsel %vm3123, %v3070, 0.0
      %v3211 = vadd.f32 %v3209, %v3210
      %v3212 = vsel %vm3123, %v3071, 0.0
      %v3213 = vadd.f32 %v3211, %v3212
      %v3214 = vsel %vm3123, %v3072, 0.0
      %v3215 = vadd.f32 %v3213, %v3214
      %v3216 = vsel %vm3123, %v3073, 0.0
      %v3217 = vadd.f32 %v3215, %v3216
      %v3218 = vsel %vm3123, %v3074, 0.0
      %v3219 = vadd.f32 %v3217, %v3218
      %v3220 = vsel %vm3123, %v3075, 0.0
      %v3221 = vadd.f32 %v3219, %v3220
      %v3222 = vsel %vm3123, %v3076, 0.0
      %v3223 = vadd.f32 %v3221, %v3222
      %v3224 = vsel %vm3123, %v3077, 0.0
      %v3225 = vadd.f32 %v3223, %v3224
      %v3226 = vsel %vm3123, %v3078, 0.0
      %v3227 = vadd.f32 %v3225, %v3226
      %v3228 = vsel %vm3123, %v3079, 0.0
      %v3229 = vadd.f32 %v3227, %v3228
      %v3230 = vsel %vm3123, %v3080, 0.0
      %v3231 = vadd.f32 %v3229, %v3230
      %v3232 = vsel %vm3123, %v3081, 0.0
      %v3233 = vadd.f32 %v3231, %v3232
      %v3234 = vsel %vm3123, %v3082, 0.0
      %v3235 = vadd.f32 %v3233, %v3234
      %v3236 = vsel %vm3123, %v3083, 0.0
      %v3237 = vadd.f32 %v3235, %v3236
      %v3238 = vsel %vm3123, %v3084, 0.0
      %v3239 = vadd.f32 %v3237, %v3238
      %v3240 = vsel %vm3123, %v3085, 0.0
      %v3241 = vadd.f32 %v3239, %v3240
      %v3242 = vsel %vm3123, %v3086, 0.0
      %v3243 = vadd.f32 %v3241, %v3242
      %v3244 = vsel %vm3123, %v3087, 0.0
      %v3245 = vadd.f32 %v3243, %v3244
      %v3246 = vsel %vm3123, %v3088, 0.0
      %v3247 = vadd.f32 %v3245, %v3246
      %v3248 = vsel %vm3123, %v3089, 0.0
      %v3249 = vadd.f32 %v3247, %v3248
      %v3250 = vsel %vm3123, %v3090, 0.0
      %v3251 = vadd.f32 %v3249, %v3250
      %v3252 = vrot.slane %v3251, 4
      %v3253 = vadd.f32 %v3251, %v3252
      %v3254 = vrot.slane %v3253, 2
      %v3255 = vadd.f32 %v3253, %v3254
      %v3256 = vrot.slane %v3255, 1
      %v3257 = vadd.f32 %v3255, %v3256
      %v3258 = vsel %vm3123, %v3091, 0.0
      %v3259 = vsel %vm3123, %v3092, 0.0
      %v3260 = vadd.f32 %v3258, %v3259
      %v3261 = vsel %vm3123, %v3093, 0.0
      %v3262 = vadd.f32 %v3260, %v3261
      %v3263 = vsel %vm3123, %v3094, 0.0
      %v3264 = vadd.f32 %v3262, %v3263
      %v3265 = vsel %vm3123, %v3095, 0.0
      %v3266 = vadd.f32 %v3264, %v3265
      %v3267 = vsel %vm3123, %v3096, 0.0
      %v3268 = vadd.f32 %v3266, %v3267
      %v3269 = vsel %vm3123, %v3097, 0.0
      %v3270 = vadd.f32 %v3268, %v3269
      %v3271 = vsel %vm3123, %v3098, 0.0
      %v3272 = vadd.f32 %v3270, %v3271
      %v3273 = vsel %vm3123, %v3099, 0.0
      %v3274 = vadd.f32 %v3272, %v3273
      %v3275 = vsel %vm3123, %v3100, 0.0
      %v3276 = vadd.f32 %v3274, %v3275
      %v3277 = vsel %vm3123, %v3101, 0.0
      %v3278 = vadd.f32 %v3276, %v3277
      %v3279 = vsel %vm3123, %v3102, 0.0
      %v3280 = vadd.f32 %v3278, %v3279
      %v3281 = vsel %vm3123, %v3103, 0.0
      %v3282 = vadd.f32 %v3280, %v3281
      %v3283 = vsel %vm3123, %v3104, 0.0
      %v3284 = vadd.f32 %v3282, %v3283
      %v3285 = vsel %vm3123, %v3105, 0.0
      %v3286 = vadd.f32 %v3284, %v3285
      %v3287 = vsel %vm3123, %v3106, 0.0
      %v3288 = vadd.f32 %v3286, %v3287
      %v3289 = vsel %vm3123, %v3107, 0.0
      %v3290 = vadd.f32 %v3288, %v3289
      %v3291 = vsel %vm3123, %v3108, 0.0
      %v3292 = vadd.f32 %v3290, %v3291
      %v3293 = vsel %vm3123, %v3109, 0.0
      %v3294 = vadd.f32 %v3292, %v3293
      %v3295 = vsel %vm3123, %v3110, 0.0
      %v3296 = vadd.f32 %v3294, %v3295
      %v3297 = vsel %vm3123, %v3111, 0.0
      %v3298 = vadd.f32 %v3296, %v3297
      %v3299 = vsel %vm3123, %v3112, 0.0
      %v3300 = vadd.f32 %v3298, %v3299
      %v3301 = vsel %vm3123, %v3113, 0.0
      %v3302 = vadd.f32 %v3300, %v3301
      %v3303 = vsel %vm3123, %v3114, 0.0
      %v3304 = vadd.f32 %v3302, %v3303
      %v3305 = vsel %vm3123, %v3115, 0.0
      %v3306 = vadd.f32 %v3304, %v3305
      %v3307 = vsel %vm3123, %v3116, 0.0
      %v3308 = vadd.f32 %v3306, %v3307
      %v3309 = vsel %vm3123, %v3117, 0.0
      %v3310 = vadd.f32 %v3308, %v3309
      %v3311 = vsel %vm3123, %v3118, 0.0
      %v3312 = vadd.f32 %v3310, %v3311
      %v3313 = vsel %vm3123, %v3119, 0.0
      %v3314 = vadd.f32 %v3312, %v3313
      %v3315 = vsel %vm3123, %v3120, 0.0
      %v3316 = vadd.f32 %v3314, %v3315
      %v3317 = vsel %vm3123, %v3121, 0.0
      %v3318 = vadd.f32 %v3316, %v3317
      %v3319 = vsel %vm3123, %v3122, 0.0
      %v3320 = vadd.f32 %v3318, %v3319
      %v3321 = vrot.slane %v3320, 4
      %v3322 = vadd.f32 %v3320, %v3321
      %v3323 = vrot.slane %v3322, 2
      %v3324 = vadd.f32 %v3322, %v3323
      %v3325 = vrot.slane %v3324, 1
      %v3326 = vadd.f32 %v3324, %v3325
      %v3327 = vadd.f32 %v3257, %v3326
      %v3328 = vmul.f32 %v3059, %v3059
      %v3329 = vmul.f32 %v3060, %v3060
      %v3330 = vmul.f32 %v3061, %v3061
      %v3331 = vmul.f32 %v3062, %v3062
      %v3332 = vmul.f32 %v3063, %v3063
      %v3333 = vmul.f32 %v3064, %v3064
      %v3334 = vmul.f32 %v3065, %v3065
      %v3335 = vmul.f32 %v3066, %v3066
      %v3336 = vmul.f32 %v3067, %v3067
      %v3337 = vmul.f32 %v3068, %v3068
      %v3338 = vmul.f32 %v3069, %v3069
      %v3339 = vmul.f32 %v3070, %v3070
      %v3340 = vmul.f32 %v3071, %v3071
      %v3341 = vmul.f32 %v3072, %v3072
      %v3342 = vmul.f32 %v3073, %v3073
      %v3343 = vmul.f32 %v3074, %v3074
      %v3344 = vmul.f32 %v3075, %v3075
      %v3345 = vmul.f32 %v3076, %v3076
      %v3346 = vmul.f32 %v3077, %v3077
      %v3347 = vmul.f32 %v3078, %v3078
      %v3348 = vmul.f32 %v3079, %v3079
      %v3349 = vmul.f32 %v3080, %v3080
      %v3350 = vmul.f32 %v3081, %v3081
      %v3351 = vmul.f32 %v3082, %v3082
      %v3352 = vmul.f32 %v3083, %v3083
      %v3353 = vmul.f32 %v3084, %v3084
      %v3354 = vmul.f32 %v3085, %v3085
      %v3355 = vmul.f32 %v3086, %v3086
      %v3356 = vmul.f32 %v3087, %v3087
      %v3357 = vmul.f32 %v3088, %v3088
      %v3358 = vmul.f32 %v3089, %v3089
      %v3359 = vmul.f32 %v3090, %v3090
      %v3360 = vsel %vm3123, %v3328, 0.0
      %v3361 = vsel %vm3123, %v3329, 0.0
      %v3362 = vadd.f32 %v3360, %v3361
      %v3363 = vsel %vm3123, %v3330, 0.0
      %v3364 = vadd.f32 %v3362, %v3363
      %v3365 = vsel %vm3123, %v3331, 0.0
      %v3366 = vadd.f32 %v3364, %v3365
      %v3367 = vsel %vm3123, %v3332, 0.0
      %v3368 = vadd.f32 %v3366, %v3367
      %v3369 = vsel %vm3123, %v3333, 0.0
      %v3370 = vadd.f32 %v3368, %v3369
      %v3371 = vsel %vm3123, %v3334, 0.0
      %v3372 = vadd.f32 %v3370, %v3371
      %v3373 = vsel %vm3123, %v3335, 0.0
      %v3374 = vadd.f32 %v3372, %v3373
      %v3375 = vsel %vm3123, %v3336, 0.0
      %v3376 = vadd.f32 %v3374, %v3375
      %v3377 = vsel %vm3123, %v3337, 0.0
      %v3378 = vadd.f32 %v3376, %v3377
      %v3379 = vsel %vm3123, %v3338, 0.0
      %v3380 = vadd.f32 %v3378, %v3379
      %v3381 = vsel %vm3123, %v3339, 0.0
      %v3382 = vadd.f32 %v3380, %v3381
      %v3383 = vsel %vm3123, %v3340, 0.0
      %v3384 = vadd.f32 %v3382, %v3383
      %v3385 = vsel %vm3123, %v3341, 0.0
      %v3386 = vadd.f32 %v3384, %v3385
      %v3387 = vsel %vm3123, %v3342, 0.0
      %v3388 = vadd.f32 %v3386, %v3387
      %v3389 = vsel %vm3123, %v3343, 0.0
      %v3390 = vadd.f32 %v3388, %v3389
      %v3391 = vsel %vm3123, %v3344, 0.0
      %v3392 = vadd.f32 %v3390, %v3391
      %v3393 = vsel %vm3123, %v3345, 0.0
      %v3394 = vadd.f32 %v3392, %v3393
      %v3395 = vsel %vm3123, %v3346, 0.0
      %v3396 = vadd.f32 %v3394, %v3395
      %v3397 = vsel %vm3123, %v3347, 0.0
      %v3398 = vadd.f32 %v3396, %v3397
      %v3399 = vsel %vm3123, %v3348, 0.0
      %v3400 = vadd.f32 %v3398, %v3399
      %v3401 = vsel %vm3123, %v3349, 0.0
      %v3402 = vadd.f32 %v3400, %v3401
      %v3403 = vsel %vm3123, %v3350, 0.0
      %v3404 = vadd.f32 %v3402, %v3403
      %v3405 = vsel %vm3123, %v3351, 0.0
      %v3406 = vadd.f32 %v3404, %v3405
      %v3407 = vsel %vm3123, %v3352, 0.0
      %v3408 = vadd.f32 %v3406, %v3407
      %v3409 = vsel %vm3123, %v3353, 0.0
      %v3410 = vadd.f32 %v3408, %v3409
      %v3411 = vsel %vm3123, %v3354, 0.0
      %v3412 = vadd.f32 %v3410, %v3411
      %v3413 = vsel %vm3123, %v3355, 0.0
      %v3414 = vadd.f32 %v3412, %v3413
      %v3415 = vsel %vm3123, %v3356, 0.0
      %v3416 = vadd.f32 %v3414, %v3415
      %v3417 = vsel %vm3123, %v3357, 0.0
      %v3418 = vadd.f32 %v3416, %v3417
      %v3419 = vsel %vm3123, %v3358, 0.0
      %v3420 = vadd.f32 %v3418, %v3419
      %v3421 = vsel %vm3123, %v3359, 0.0
      %v3422 = vadd.f32 %v3420, %v3421
      %v3423 = vrot.slane %v3422, 4
      %v3424 = vadd.f32 %v3422, %v3423
      %v3425 = vrot.slane %v3424, 2
      %v3426 = vadd.f32 %v3424, %v3425
      %v3427 = vrot.slane %v3426, 1
      %v3428 = vadd.f32 %v3426, %v3427
      %v3429 = vmul.f32 %v3091, %v3091
      %v3430 = vmul.f32 %v3092, %v3092
      %v3431 = vmul.f32 %v3093, %v3093
      %v3432 = vmul.f32 %v3094, %v3094
      %v3433 = vmul.f32 %v3095, %v3095
      %v3434 = vmul.f32 %v3096, %v3096
      %v3435 = vmul.f32 %v3097, %v3097
      %v3436 = vmul.f32 %v3098, %v3098
      %v3437 = vmul.f32 %v3099, %v3099
      %v3438 = vmul.f32 %v3100, %v3100
      %v3439 = vmul.f32 %v3101, %v3101
      %v3440 = vmul.f32 %v3102, %v3102
      %v3441 = vmul.f32 %v3103, %v3103
      %v3442 = vmul.f32 %v3104, %v3104
      %v3443 = vmul.f32 %v3105, %v3105
      %v3444 = vmul.f32 %v3106, %v3106
      %v3445 = vmul.f32 %v3107, %v3107
      %v3446 = vmul.f32 %v3108, %v3108
      %v3447 = vmul.f32 %v3109, %v3109
      %v3448 = vmul.f32 %v3110, %v3110
      %v3449 = vmul.f32 %v3111, %v3111
      %v3450 = vmul.f32 %v3112, %v3112
      %v3451 = vmul.f32 %v3113, %v3113
      %v3452 = vmul.f32 %v3114, %v3114
      %v3453 = vmul.f32 %v3115, %v3115
      %v3454 = vmul.f32 %v3116, %v3116
      %v3455 = vmul.f32 %v3117, %v3117
      %v3456 = vmul.f32 %v3118, %v3118
      %v3457 = vmul.f32 %v3119, %v3119
      %v3458 = vmul.f32 %v3120, %v3120
      %v3459 = vmul.f32 %v3121, %v3121
      %v3460 = vmul.f32 %v3122, %v3122
      %v3461 = vsel %vm3123, %v3429, 0.0
      %v3462 = vsel %vm3123, %v3430, 0.0
      %v3463 = vadd.f32 %v3461, %v3462
      %v3464 = vsel %vm3123, %v3431, 0.0
      %v3465 = vadd.f32 %v3463, %v3464
      %v3466 = vsel %vm3123, %v3432, 0.0
      %v3467 = vadd.f32 %v3465, %v3466
      %v3468 = vsel %vm3123, %v3433, 0.0
      %v3469 = vadd.f32 %v3467, %v3468
      %v3470 = vsel %vm3123, %v3434, 0.0
      %v3471 = vadd.f32 %v3469, %v3470
      %v3472 = vsel %vm3123, %v3435, 0.0
      %v3473 = vadd.f32 %v3471, %v3472
      %v3474 = vsel %vm3123, %v3436, 0.0
      %v3475 = vadd.f32 %v3473, %v3474
      %v3476 = vsel %vm3123, %v3437, 0.0
      %v3477 = vadd.f32 %v3475, %v3476
      %v3478 = vsel %vm3123, %v3438, 0.0
      %v3479 = vadd.f32 %v3477, %v3478
      %v3480 = vsel %vm3123, %v3439, 0.0
      %v3481 = vadd.f32 %v3479, %v3480
      %v3482 = vsel %vm3123, %v3440, 0.0
      %v3483 = vadd.f32 %v3481, %v3482
      %v3484 = vsel %vm3123, %v3441, 0.0
      %v3485 = vadd.f32 %v3483, %v3484
      %v3486 = vsel %vm3123, %v3442, 0.0
      %v3487 = vadd.f32 %v3485, %v3486
      %v3488 = vsel %vm3123, %v3443, 0.0
      %v3489 = vadd.f32 %v3487, %v3488
      %v3490 = vsel %vm3123, %v3444, 0.0
      %v3491 = vadd.f32 %v3489, %v3490
      %v3492 = vsel %vm3123, %v3445, 0.0
      %v3493 = vadd.f32 %v3491, %v3492
      %v3494 = vsel %vm3123, %v3446, 0.0
      %v3495 = vadd.f32 %v3493, %v3494
      %v3496 = vsel %vm3123, %v3447, 0.0
      %v3497 = vadd.f32 %v3495, %v3496
      %v3498 = vsel %vm3123, %v3448, 0.0
      %v3499 = vadd.f32 %v3497, %v3498
      %v3500 = vsel %vm3123, %v3449, 0.0
      %v3501 = vadd.f32 %v3499, %v3500
      %v3502 = vsel %vm3123, %v3450, 0.0
      %v3503 = vadd.f32 %v3501, %v3502
      %v3504 = vsel %vm3123, %v3451, 0.0
      %v3505 = vadd.f32 %v3503, %v3504
      %v3506 = vsel %vm3123, %v3452, 0.0
      %v3507 = vadd.f32 %v3505, %v3506
      %v3508 = vsel %vm3123, %v3453, 0.0
      %v3509 = vadd.f32 %v3507, %v3508
      %v3510 = vsel %vm3123, %v3454, 0.0
      %v3511 = vadd.f32 %v3509, %v3510
      %v3512 = vsel %vm3123, %v3455, 0.0
      %v3513 = vadd.f32 %v3511, %v3512
      %v3514 = vsel %vm3123, %v3456, 0.0
      %v3515 = vadd.f32 %v3513, %v3514
      %v3516 = vsel %vm3123, %v3457, 0.0
      %v3517 = vadd.f32 %v3515, %v3516
      %v3518 = vsel %vm3123, %v3458, 0.0
      %v3519 = vadd.f32 %v3517, %v3518
      %v3520 = vsel %vm3123, %v3459, 0.0
      %v3521 = vadd.f32 %v3519, %v3520
      %v3522 = vsel %vm3123, %v3460, 0.0
      %v3523 = vadd.f32 %v3521, %v3522
      %v3524 = vrot.slane %v3523, 4
      %v3525 = vadd.f32 %v3523, %v3524
      %v3526 = vrot.slane %v3525, 2
      %v3527 = vadd.f32 %v3525, %v3526
      %v3528 = vrot.slane %v3527, 1
      %v3529 = vadd.f32 %v3527, %v3528
      %v3530 = vadd.f32 %v3428, %v3529
      %vm3531 = vcmask 57344
      %3532 = vst.msk [vmem:[%s243] sm:$0x1] %vm3531, %v3327
      %3533 = vst.msk [vmem:[%s243 + $0x1] sm:$0x1] %vm3531, %v3530
      %s3534 = smul.u32 16, %s21
      %p3535 = scmp.lt.s32.totalorder %s20, 1
      %s3536 = scalar_select %p3535, %s20, 1
      %p3537 = scmp.lt.s32.totalorder %s3534, 31
      %s3538 = scalar_select %p3537, %s3534, 31
      %s3539 = smul.addr %s3538, 4
      %s3540 = smul.addr %s3536, 128
      %s3541 = sadd.s32 %s3539, %s3540
      %s3542 = smul.addr %s3541, 8
      %s3543 = scalar_lea.vmem %s3, %s3542
      %p3544 = scmp.lt.s32.totalorder %s20, 1
      %s3545 = scalar_select %p3544, %s20, 1
      %p3546 = scmp.lt.s32.totalorder %s21, 1
      %s3547 = scalar_select %p3546, %s21, 1
      %s3548 = smul.addr %s3545, 2
      %s3549 = sadd.s32 %s3547, %s3548
      %s3550 = smul.addr %s3549, 2
      %s3551 = scalar_lea.vmem %s4, %s3550
      // Predicated region
      $region33: #{up_conv_batch_relu.2} parent=31 // pred_check
        %p3552 = pneg %p116
      $region34: #{up_conv_batch_relu.2} parent=31 // pred_check_branch
        %3554 = sbr.rel (%p3552) target = $region36
      $region35: #{up_conv_batch_relu.2} parent=31 // pred_region
        %s3555 = smul.u32 16, %s21
      $region36: #{up_conv_batch_relu.2} parent=31 // pred_fallthru
        _
      // Predicated region
      $region37: #{up_conv_batch_relu.2} parent=31 // pred_check
        %p3556 = pneg %p144
      $region38: #{up_conv_batch_relu.2} parent=31 // pred_check_branch
        %3558 = sbr.rel (%p3556) target = $region40
      $region39: #{up_conv_batch_relu.2} parent=31 // pred_region
        _
      $region40: #{up_conv_batch_relu.2} parent=31 // pred_fallthru
        _
    $region32: #{up_conv_batch_relu.2} parent=5 // pred_fallthru
      _
    %p3559 = scmp.le.s32.totalorder 2, %s11
    // Predicated region
    $region41: #{up_conv_batch_relu.2} parent=5 // pred_check
      %p3560 = pneg %p3559
    $region42: #{up_conv_batch_relu.2} parent=5 // pred_check_branch
      %3562 = sbr.rel (%p3560) target = $region44
    $region43: #{up_conv_batch_relu.2} parent=5 // pred_region
      %s3563 = ssub.s32 %s11, 2
      // Predicated region
      $region45: #{up_conv_batch_relu.2} parent=43 // pred_check
        %p3564 = pneg %p122
      $region46: #{up_conv_batch_relu.2} parent=43 // pred_check_branch
        %3566 = sbr.rel (%p3564) target = $region48
      $region47: #{up_conv_batch_relu.2} parent=43 // pred_region
        %s3567 = smul.u32 16, %s23
        %p3568 = scmp.lt.s32.totalorder %s22, 1
        %s3569 = scalar_select %p3568, %s22, 1
        %p3570 = scmp.lt.s32.totalorder %s3567, 31
        %s3571 = scalar_select %p3570, %s3567, 31
        %s3572 = smul.addr %s3571, 4
        %s3573 = smul.addr %s3569, 128
        %s3574 = sadd.s32 %s3572, %s3573
        %s3575 = smul.addr %s3574, 8
        %s3576 = scalar_lea.vmem %s3, %s3575
      $region48: #{up_conv_batch_relu.2} parent=43 // pred_fallthru
        _
      // Predicated region
      $region49: #{up_conv_batch_relu.2} parent=43 // pred_check
        %p3577 = pneg %p150
      $region50: #{up_conv_batch_relu.2} parent=43 // pred_check_branch
        %3579 = sbr.rel (%p3577) target = $region52
      $region51: #{up_conv_batch_relu.2} parent=43 // pred_region
        %p3580 = scmp.lt.s32.totalorder %s22, 1
        %s3581 = scalar_select %p3580, %s22, 1
        %p3582 = scmp.lt.s32.totalorder %s23, 1
        %s3583 = scalar_select %p3582, %s23, 1
        %s3584 = smul.addr %s3581, 2
        %s3585 = sadd.s32 %s3583, %s3584
        %s3586 = smul.addr %s3585, 2
        %s3587 = scalar_lea.vmem %s4, %s3586
      $region52: #{up_conv_batch_relu.2} parent=43 // pred_fallthru
        _
    $region44: #{up_conv_batch_relu.2} parent=5 // pred_fallthru
      _
  $region6: #{up_conv_batch_relu.2} parent=0 // loop_footer
    %s15 = sadd.s32 1, %s11
  $region7: #{up_conv_batch_relu.2} parent=0 // loop_footer_branch
    %10 = sbr.rel target = $region3
  $region8: #{up_conv_batch_relu.2} parent=0 // loop_exit
    _

</llo_original>
